<compile_context>
chip_gen: v5e
topology: v5e:2x2
jax: 0.10.0
libtpu: 0.0.40
codegen_flags: <defaults>
</compile_context>

<pallas_src>
import numpy as np
import jax
import jax.numpy as jnp
from jax import lax
from jax.experimental import pallas as pl
from jax.experimental.pallas import tpu as pltpu

NEG_SLOPE = 0.01     # nn.LeakyReLU default
BN_EPS = 1e-5        # nn.BatchNorm2d default
LANE = 128           # TPU lane width


def _leaky(x):
    return jnp.where(x > 0, x, NEG_SLOPE * x)


# ---------------------------------------------------------------------------
# Parameters: PyTorch layouts (for the reference) + packing into kernel layouts
# ---------------------------------------------------------------------------

def init_torch_params(key, cfg):
    """Deterministic synthetic parameters in the nn.Module's own layouts."""
    Cin, C1, C2 = cfg["Cin"], cfg["C1"], cfg["C2"]
    R = cfg["ratio"]
    K = 2 * R + 1
    H2 = cfg["H"] // R // R
    W2 = cfg["W"] // R // R
    M1, M2 = cfg["size_MLP"]
    nb = cfg["nb_classes"]
    feat_in = C2 * H2 * W2

    ks = jax.random.split(key, 10)
    nrm = lambda k, shape, s: jax.random.normal(k, shape, jnp.float32) * s
    return {
        "conv1_w": nrm(ks[0], (C1, Cin, K, K), 1.0 / (Cin * K * K) ** 0.5),
        "conv1_b": nrm(ks[1], (C1,), 0.1),
        "bn1_g": jnp.ones((C1,), jnp.float32),
        "bn1_b": jnp.zeros((C1,), jnp.float32),
        "conv2_w": nrm(ks[2], (C2, C1, K, K), 1.0 / (C1 * K * K) ** 0.5),
        "conv2_b": nrm(ks[3], (C2,), 0.1),
        "bn2_g": jnp.ones((C2,), jnp.float32),
        "bn2_b": jnp.zeros((C2,), jnp.float32),
        "fc1_w": nrm(ks[4], (M1, feat_in), 1.0 / feat_in ** 0.5),
        "fc1_b": nrm(ks[5], (M1,), 0.05),
        "fc2_w": nrm(ks[6], (M2, M1), 1.0 / M1 ** 0.5),
        "fc2_b": nrm(ks[7], (M2,), 0.05),
        "fc3_w": nrm(ks[8], (nb, M2), 1.0 / M2 ** 0.5),
        "fc3_b": nrm(ks[9], (nb,), 0.05),
    }


def pack_params(p, cfg):
    """Repack the PyTorch-layout parameters into the lane-packed layouts the fused
    kernel consumes.  Done once at init (numpy)."""
    Cin, C1, C2 = cfg["Cin"], cfg["C1"], cfg["C2"]
    R = cfg["ratio"]
    K, P = 2 * R + 1, R
    H1, W1 = cfg["H"] // R, cfg["W"] // R
    H2, W2 = H1 // R, W1 // R
    M1, M2 = cfg["size_MLP"]
    nb = cfg["nb_classes"]
    WP = cfg["W"] + 2 * P

    # lane-budget assumptions of the packed-lane conv formulation
    assert WP * Cin <= LANE and W1 * C1 <= LANE and W1 * C2 <= LANE
    assert max(M1, M2, nb) <= LANE

    w1_pt = np.asarray(p["conv1_w"], np.float32)          # (C1, Cin, K, K)
    w2_pt = np.asarray(p["conv2_w"], np.float32)          # (C2, C1, K, K)

    # conv1 weight: rows = packed input lanes (w_pad*Cin + cin),
    # cols = packed output lanes (w_out*C1 + cout); one (128,128) matrix per H-tap kh.
    w1 = np.zeros((K, LANE, LANE), np.float32)
    for kh in range(K):
        for kw in range(K):
            blk = w1_pt[:, :, kh, kw].T                   # (Cin, C1)
            for j in range(W1):
                wl = R * j + kw                           # padded input column read
                w1[kh, wl * Cin:(wl + 1) * Cin, j * C1:(j + 1) * C1] = blk

    # conv2 weight (DENSE / stride-1 form): rows = conv1-output lanes (w*C1 + c),
    # cols = dense-output lanes (w_dense*C2 + cout); one matrix per H-tap kh.
    w2 = np.zeros((K, LANE, LANE), np.float32)
    for kh in range(K):
        for kw in range(K):
            blk = w2_pt[:, :, kh, kw].T                   # (C1, C2)
            for j2 in range(W1):
                j = j2 + kw - P                           # conv1-output column read
                if 0 <= j < W1:
                    w2[kh, j * C1:(j + 1) * C1, j2 * C2:(j2 + 1) * C2] = blk

    # BatchNorm lane projectors: fold packed (w, c) lanes into per-channel sums and
    # broadcast them back, as one constant 0/1 matmul each.
    ii = np.arange(LANE)
    p1 = ((ii[:, None] % C1 == ii[None, :] % C1)
          & (ii[:, None] < W1 * C1) & (ii[None, :] < W1 * C1)).astype(np.float32)
    p2 = ((ii[:, None] % C2 == ii[None, :] % C2)
          & ((ii[:, None] // C2) % R == 0)                # only REAL (even) dense cols
          & (ii[:, None] < W1 * C2) & (ii[None, :] < W1 * C2)).astype(np.float32)

    def lane_tiled(v, reps, width):
        out = np.zeros((1, LANE), np.float32)
        out[0, :reps * width] = np.tile(np.asarray(v, np.float32), reps)
        return out

    g1 = lane_tiled(p["bn1_g"], W1, C1)
    b1 = lane_tiled(p["bn1_b"], W1, C1)
    g2 = lane_tiled(p["bn2_g"], W1, C2)
    b2 = lane_tiled(p["bn2_b"], W1, C2)

    # First MLP weight: folds (i) the NCHW Flatten order, (ii) the dense->strided conv2
    # position selection (zero rows at odd dense positions), (iii) lane padding.
    fc1 = np.asarray(p["fc1_w"], np.float32)              # (M1, C2*H2*W2)
    wm0 = np.zeros((H1 * LANE, LANE), np.float32)
    for hh in range(H2):
        for ww in range(W2):
            i2, j2 = R * hh, R * ww                       # real -> dense position
            for co in range(C2):
                f_idx = co * (H2 * W2) + hh * W2 + ww     # PyTorch (c, h, w) order
                wm0[i2 * LANE + j2 * C2 + co, :M1] = fc1[:, f_idx]
    bm0 = np.zeros((1, LANE), np.float32)
    bm0[0, :M1] = np.asarray(p["fc1_b"], np.float32)

    wm1 = np.zeros((LANE, LANE), np.float32)
    wm1[:M1, :M2] = np.asarray(p["fc2_w"], np.float32).T
    bm1 = np.zeros((1, LANE), np.float32)
    bm1[0, :M2] = np.asarray(p["fc2_b"], np.float32)

    wm2 = np.zeros((LANE, LANE), np.float32)
    wm2[:M2, :nb] = np.asarray(p["fc3_w"], np.float32).T
    bm2 = np.zeros((1, LANE), np.float32)
    bm2[0, :nb] = np.asarray(p["fc3_b"], np.float32)

    bf, f32 = jnp.bfloat16, jnp.float32
    return dict(
        w1=jnp.asarray(w1, bf), w2=jnp.asarray(w2, bf),
        p1=jnp.asarray(p1, f32), p2=jnp.asarray(p2, f32),
        g1=jnp.asarray(g1, f32), b1=jnp.asarray(b1, f32),
        g2=jnp.asarray(g2, f32), b2=jnp.asarray(b2, f32),
        wm0=jnp.asarray(wm0, bf), bm0=jnp.asarray(bm0, f32),
        wm1=jnp.asarray(wm1, bf), bm1=jnp.asarray(bm1, f32),
        wm2=jnp.asarray(wm2, bf), bm2=jnp.asarray(bm2, f32),
    )


# ---------------------------------------------------------------------------
# Fused forward (single pallas_call)
# ---------------------------------------------------------------------------

def make_forward(packed, cfg):
    N, Cin, H, W = cfg["N"], cfg["Cin"], cfg["H"], cfg["W"]
    R = cfg["ratio"]
    K, P = 2 * R + 1, R
    C1, C2 = cfg["C1"], cfg["C2"]
    nb_classes = cfg["nb_classes"]
    H1, W1 = H // R, W // R
    H2, W2 = H1 // R, W1 // R
    WP = W + 2 * P                 # padded input width
    A1 = (H + 2 * P) // R          # H phase blocks for conv1
    HP2 = H1 + 2 * P               # H of conv2's (dense) input slab
    FEAT = H1 * LANE               # flattened dense-feature width fed to the MLP

    assert (H + 2 * P) % R == 0
    inv_cnt1 = 1.0 / float(N * H1 * W1)      # BN1 batch-stat count
    inv_cnt2 = 1.0 / float(N * H2 * W2)      # BN2 batch-stat count (real positions only)

    def kernel(x1_ref, w1_ref, p1_ref, g1_ref, be1_ref,
               w2_ref, p2_ref, g2_ref, be2_ref,
               wm0_ref, bm0_ref, wm1_ref, bm1_ref, wm2_ref, bm2_ref,
               o_ref, z1s, x2s, z2s, feats):
        f32 = jnp.float32

        # ---- conv1: stride-R conv as K row-shifted MXU matmuls -----------------
        # x1 is H-phase-split (wrapper), so every tap is a unit-stride row slice;
        # the W / Cin dims live on the lane axis and all W taps are folded into w1.
        for n in range(N):
            acc = jnp.zeros((H1, LANE), f32)
            for kh in range(K):
                bh, qh = kh % R, kh // R
                lhs = x1_ref[bh, n, pl.ds(qh, H1), :]              # (H1, 128) bf16
                acc = acc + jnp.dot(lhs, w1_ref[kh],
                                    preferred_element_type=f32)
            z1s[pl.ds(n * H1, H1), :] = acc

        # ---- BatchNorm1 (train-mode batch stats, single pass) + LeakyReLU ------
        z1 = z1s[...]                                              # (N*H1, 128) f32
        s1 = jnp.sum(z1, axis=0, keepdims=True)
        q1 = jnp.sum(z1 * z1, axis=0, keepdims=True)
        mean1 = jnp.dot(s1, p1_ref[...], preferred_element_type=f32) * inv_cnt1
        var1 = jnp.dot(q1, p1_ref[...], preferred_element_type=f32) * inv_cnt1 \
            - mean1 * mean1
        a1 = g1_ref[...] * lax.rsqrt(var1 + BN_EPS)
        c1 = be1_ref[...] - mean1 * a1
        y1 = _leaky(z1 * a1 + c1)                                  # (N*H1, 128) f32

        # ---- handoff to conv2: H-padded VMEM slab (never leaves the core) ------
        x2s[...] = jnp.zeros_like(x2s)
        for n in range(N):
            x2s[n, pl.ds(P, H1), :] = y1[n * H1:(n + 1) * H1, :].astype(x2s.dtype)

        # ---- conv2 computed DENSE (stride 1): the stride-R subsampling is ------
        # ---- folded into zero rows of wm0, so no strided access is needed ------
        for n in range(N):
            acc = jnp.zeros((H1, LANE), f32)
            for kh in range(K):
                lhs = x2s[n, pl.ds(kh, H1), :]                     # (H1, 128) bf16
                acc = acc + jnp.dot(lhs, w2_ref[kh],
                                    preferred_element_type=f32)
            z2s[pl.ds(n * H1, H1), :] = acc

        # ---- BatchNorm2: stats over the REAL (even-position) outputs only ------
        z2 = z2s[...]                                              # (N*H1, 128) f32
        ri = lax.broadcasted_iota(jnp.int32, (N * H1, LANE), 0)
        rmask = ((ri % R) == 0).astype(f32)                        # even dense rows
        s2 = jnp.sum(z2 * rmask, axis=0, keepdims=True)
        q2 = jnp.sum(z2 * z2 * rmask, axis=0, keepdims=True)
        mean2 = jnp.dot(s2, p2_ref[...], preferred_element_type=f32) * inv_cnt2
        var2 = jnp.dot(q2, p2_ref[...], preferred_element_type=f32) * inv_cnt2 \
            - mean2 * mean2
        a2 = g2_ref[...] * lax.rsqrt(var2 + BN_EPS)
        c2 = be2_ref[...] - mean2 * a2
        y2 = _leaky(z2 * a2 + c2).astype(jnp.bfloat16)             # (N*H1, 128)

        # ---- flatten: lay each sample's dense feature rows out along lanes -----
        for n in range(N):
            for i in range(H1):
                feats[pl.ds(n, 1), pl.ds(i * LANE, LANE)] = \
                    y2[n * H1 + i:n * H1 + i + 1, :]

        # ---- fused MLP tail: (Linear+LeakyReLU) x 2, Linear + Softmax ----------
        h = jnp.dot(feats[...], wm0_ref[...], preferred_element_type=f32) + bm0_ref[...]
        h = _leaky(h).astype(jnp.bfloat16)
        h = jnp.dot(h, wm1_ref[...], preferred_element_type=f32) + bm1_ref[...]
        h = _leaky(h).astype(jnp.bfloat16)
        z = jnp.dot(h, wm2_ref[...], preferred_element_type=f32) + bm2_ref[...]
        lane_i = lax.broadcasted_iota(jnp.int32, z.shape, 1)
        z = jnp.where(lane_i < nb_classes, z, -1e30)               # mask padded classes
        m = jnp.max(z, axis=-1, keepdims=True)
        e = jnp.exp(z - m)
        s = jnp.sum(e, axis=-1, keepdims=True)
        inv = pl.reciprocal(s, approx=True)                        # EUP slot
        inv = inv * (2.0 - s * inv)                                # one Newton step
        o_ref[...] = e * inv

    operands = (packed["w1"], packed["p1"], packed["g1"], packed["b1"],
                packed["w2"], packed["p2"], packed["g2"], packed["b2"],
                packed["wm0"], packed["bm0"], packed["wm1"], packed["bm1"],
                packed["wm2"], packed["bm2"])

    # Scoped-VMEM limit sized from actual operand/scratch bytes (v5e default is 16 MiB).
    op_bytes = sum(int(np.prod(a.shape)) * a.dtype.itemsize for a in operands)
    op_bytes += R * N * A1 * LANE * 2 + N * LANE * 4               # x1 input + output
    scratch_bytes = 2 * N * H1 * LANE * 4 + N * HP2 * LANE * 2 + N * FEAT * 2
    vmem_limit = int(max(4 * 1024 * 1024, 4 * (op_bytes + scratch_bytes)))

    vmem = pl.BlockSpec(memory_space=pltpu.MemorySpace.VMEM)
    fused = pl.pallas_call(
        kernel,
        out_shape=jax.ShapeDtypeStruct((N, LANE), jnp.float32),
        in_specs=[vmem] * (1 + len(operands)),
        out_specs=vmem,
        scratch_shapes=[
            pltpu.VMEM((N * H1, LANE), jnp.float32),     # z1s: conv1 pre-BN acc
            pltpu.VMEM((N, HP2, LANE), jnp.bfloat16),    # x2s: conv2 input slab
            pltpu.VMEM((N * H1, LANE), jnp.float32),     # z2s: conv2 (dense) pre-BN acc
            pltpu.VMEM((N, FEAT), jnp.bfloat16),         # feats: flattened features
        ],
        compiler_params=pltpu.CompilerParams(vmem_limit_bytes=vmem_limit),
    )

    def forward(x_nchw):
        # Input prep (XLA, on 1x-sized data only): NCHW->NHWC, spatial zero-pad,
        # R-way H phase split, (W, Cin) packed onto 128 lanes, cast to bf16.
        xp = jnp.pad(jnp.transpose(x_nchw, (0, 2, 3, 1)),
                     ((0, 0), (P, P), (P, P), (0, 0)))             # (N, H+2P, W+2P, Cin)
        x1 = xp.reshape(N, A1, R, WP, Cin)
        x1 = jnp.transpose(x1, (2, 0, 1, 3, 4)).reshape(R, N, A1, WP * Cin)
        x1 = jnp.pad(x1, ((0, 0), (0, 0), (0, 0), (0, LANE - WP * Cin)))
        out = fused(x1.astype(jnp.bfloat16), *operands)
        return out[:, :nb_classes]

    return forward


# ---------------------------------------------------------------------------
# Pure-JAX reference of the PyTorch module (train-mode BN), for verification.
# ---------------------------------------------------------------------------

def reference_forward(x, p, cfg):
    R = cfg["ratio"]
    z = x
    for wn, bn, gn, betan in (("conv1_w", "conv1_b", "bn1_g", "bn1_b"),
                              ("conv2_w", "conv2_b", "bn2_g", "bn2_b")):
        z = lax.conv_general_dilated(z, p[wn], (R, R), [(R, R), (R, R)],
                                     dimension_numbers=("NCHW", "OIHW", "NCHW"))
        z = z + p[bn].reshape(1, -1, 1, 1)
        mu = jnp.mean(z, axis=(0, 2, 3), keepdims=True)
        var = jnp.mean((z - mu) ** 2, axis=(0, 2, 3), keepdims=True)
        z = (z - mu) * lax.rsqrt(var + BN_EPS) * p[gn].reshape(1, -1, 1, 1) \
            + p[betan].reshape(1, -1, 1, 1)
        z = jnp.where(z > 0, z, NEG_SLOPE * z)
    f = z.reshape(z.shape[0], -1)                         # NCHW flatten: (c, h, w)
    f = f @ p["fc1_w"].T + p["fc1_b"]
    f = jnp.where(f > 0, f, NEG_SLOPE * f)
    f = f @ p["fc2_w"].T + p["fc2_b"]
    f = jnp.where(f > 0, f, NEG_SLOPE * f)
    f = f @ p["fc3_w"].T + p["fc3_b"]
    return jax.nn.softmax(f, axis=1)


# ---------------------------------------------------------------------------

if __name__ == "__main__":
    # CNN_MLP(data, nb_classes=5, ratios_CNN=[2, 2], channel_size=[8, 16],
    #         size_MLP=[32, 16]) on x = (2, 4, 16, 16).
    cfg = dict(N=2, Cin=4, H=16, W=16, ratio=2, C1=8, C2=16,
               size_MLP=(32, 16), nb_classes=5)

    key = jax.random.PRNGKey(0)
    kx, kp = jax.random.split(key)
    x = jax.random.normal(kx, (cfg["N"], cfg["Cin"], cfg["H"], cfg["W"]), jnp.float32)

    torch_params = init_torch_params(kp, cfg)
    packed = pack_params(torch_params, cfg)

    fwd = jax.jit(make_forward(packed, cfg))
    out = jax.block_until_ready(fwd(x))

    assert out.shape == (cfg["N"], cfg["nb_classes"]), out.shape
    assert bool(jnp.all(jnp.isfinite(out)))
    assert bool(jnp.allclose(jnp.sum(out, axis=1), 1.0, atol=1e-3))

    # Verify the fused kernel against a straight-line JAX implementation of the module
    # (bf16 MXU operands vs f32 reference -> loose tolerance).
    ref = reference_forward(x, torch_params, cfg)
    max_err = float(jnp.max(jnp.abs(out - ref)))
    assert max_err < 8e-2, f"kernel vs reference max |diff| = {max_err}"

    print("KERNEL_OK")
</pallas_src>

<mosaic_0001>
module attributes {stable_mosaic.version = 11 : i64} {
  func.func @kernel(%arg0: memref<2x2x10x128xbf16, #tpu.memory_space<vmem>>, %arg1: memref<5x128x128xbf16, #tpu.memory_space<vmem>>, %arg2: memref<128x128xf32, #tpu.memory_space<vmem>>, %arg3: memref<1x128xf32, #tpu.memory_space<vmem>>, %arg4: memref<1x128xf32, #tpu.memory_space<vmem>>, %arg5: memref<5x128x128xbf16, #tpu.memory_space<vmem>>, %arg6: memref<128x128xf32, #tpu.memory_space<vmem>>, %arg7: memref<1x128xf32, #tpu.memory_space<vmem>>, %arg8: memref<1x128xf32, #tpu.memory_space<vmem>>, %arg9: memref<1024x128xbf16, #tpu.memory_space<vmem>>, %arg10: memref<1x128xf32, #tpu.memory_space<vmem>>, %arg11: memref<128x128xbf16, #tpu.memory_space<vmem>>, %arg12: memref<1x128xf32, #tpu.memory_space<vmem>>, %arg13: memref<128x128xbf16, #tpu.memory_space<vmem>>, %arg14: memref<1x128xf32, #tpu.memory_space<vmem>>, %arg15: memref<2x128xf32, #tpu.memory_space<vmem>>, %arg16: memref<16x128xf32, #tpu.memory_space<vmem>>, %arg17: memref<2x12x128xbf16, #tpu.memory_space<vmem>>, %arg18: memref<16x128xf32, #tpu.memory_space<vmem>>, %arg19: memref<2x1024xbf16, #tpu.memory_space<vmem>>) attributes {dimension_semantics = [], scalar_prefetch = 0 : i64, scratch_operands = 4 : i64, tpu.core_type = #tpu.core_type<tc>} {
    %cst = arith.constant 0.000000e+00 : f32
    %0 = vector.broadcast %cst : f32 to vector<8x128xf32>
    %c0 = arith.constant 0 : index
    %c0_0 = arith.constant 0 : index
    %c0_1 = arith.constant 0 : index
    %c0_2 = arith.constant 0 : index
    %1 = vector.load %arg0[%c0, %c0_0, %c0_1, %c0_2] : memref<2x2x10x128xbf16, #tpu.memory_space<vmem>>, vector<1x1x8x128xbf16>
    %2 = vector.shape_cast %1 : vector<1x1x8x128xbf16> to vector<8x128xbf16>
    %c0_3 = arith.constant 0 : index
    %c0_4 = arith.constant 0 : index
    %c0_5 = arith.constant 0 : index
    %3 = vector.load %arg1[%c0_3, %c0_4, %c0_5] : memref<5x128x128xbf16, #tpu.memory_space<vmem>>, vector<1x128x128xbf16>
    %4 = vector.shape_cast %3 : vector<1x128x128xbf16> to vector<128x128xbf16>
    %cst_6 = arith.constant dense<0.000000e+00> : vector<8x128xf32>
    %5 = tpu.matmul %2, %4, %cst_6 {dimension_numbers = #tpu.dot_dimension_numbers<[1], [0], [0], [1], [0, 0, 1, 1], [], []>} : vector<8x128xbf16>, vector<128x128xbf16>, vector<8x128xf32> -> vector<8x128xf32>
    %6 = arith.addf %0, %5 : vector<8x128xf32>
    %c1 = arith.constant 1 : index
    %c0_7 = arith.constant 0 : index
    %c0_8 = arith.constant 0 : index
    %c0_9 = arith.constant 0 : index
    %7 = vector.load %arg0[%c1, %c0_7, %c0_8, %c0_9] : memref<2x2x10x128xbf16, #tpu.memory_space<vmem>>, vector<1x1x8x128xbf16>
    %8 = vector.shape_cast %7 : vector<1x1x8x128xbf16> to vector<8x128xbf16>
    %c1_10 = arith.constant 1 : index
    %c0_11 = arith.constant 0 : index
    %c0_12 = arith.constant 0 : index
    %9 = vector.load %arg1[%c1_10, %c0_11, %c0_12] : memref<5x128x128xbf16, #tpu.memory_space<vmem>>, vector<1x128x128xbf16>
    %10 = vector.shape_cast %9 : vector<1x128x128xbf16> to vector<128x128xbf16>
    %cst_13 = arith.constant dense<0.000000e+00> : vector<8x128xf32>
    %11 = tpu.matmul %8, %10, %cst_13 {dimension_numbers = #tpu.dot_dimension_numbers<[1], [0], [0], [1], [0, 0, 1, 1], [], []>} : vector<8x128xbf16>, vector<128x128xbf16>, vector<8x128xf32> -> vector<8x128xf32>
    %12 = arith.addf %6, %11 : vector<8x128xf32>
    %c0_14 = arith.constant 0 : index
    %c0_15 = arith.constant 0 : index
    %c1_16 = arith.constant 1 : index
    %c0_17 = arith.constant 0 : index
    %13 = vector.load %arg0[%c0_14, %c0_15, %c1_16, %c0_17] : memref<2x2x10x128xbf16, #tpu.memory_space<vmem>>, vector<1x1x8x128xbf16>
    %14 = vector.shape_cast %13 : vector<1x1x8x128xbf16> to vector<8x128xbf16>
    %c2 = arith.constant 2 : index
    %c0_18 = arith.constant 0 : index
    %c0_19 = arith.constant 0 : index
    %15 = vector.load %arg1[%c2, %c0_18, %c0_19] : memref<5x128x128xbf16, #tpu.memory_space<vmem>>, vector<1x128x128xbf16>
    %16 = vector.shape_cast %15 : vector<1x128x128xbf16> to vector<128x128xbf16>
    %cst_20 = arith.constant dense<0.000000e+00> : vector<8x128xf32>
    %17 = tpu.matmul %14, %16, %cst_20 {dimension_numbers = #tpu.dot_dimension_numbers<[1], [0], [0], [1], [0, 0, 1, 1], [], []>} : vector<8x128xbf16>, vector<128x128xbf16>, vector<8x128xf32> -> vector<8x128xf32>
    %18 = arith.addf %12, %17 : vector<8x128xf32>
    %c1_21 = arith.constant 1 : index
    %c0_22 = arith.constant 0 : index
    %c1_23 = arith.constant 1 : index
    %c0_24 = arith.constant 0 : index
    %19 = vector.load %arg0[%c1_21, %c0_22, %c1_23, %c0_24] : memref<2x2x10x128xbf16, #tpu.memory_space<vmem>>, vector<1x1x8x128xbf16>
    %20 = vector.shape_cast %19 : vector<1x1x8x128xbf16> to vector<8x128xbf16>
    %c3 = arith.constant 3 : index
    %c0_25 = arith.constant 0 : index
    %c0_26 = arith.constant 0 : index
    %21 = vector.load %arg1[%c3, %c0_25, %c0_26] : memref<5x128x128xbf16, #tpu.memory_space<vmem>>, vector<1x128x128xbf16>
    %22 = vector.shape_cast %21 : vector<1x128x128xbf16> to vector<128x128xbf16>
    %cst_27 = arith.constant dense<0.000000e+00> : vector<8x128xf32>
    %23 = tpu.matmul %20, %22, %cst_27 {dimension_numbers = #tpu.dot_dimension_numbers<[1], [0], [0], [1], [0, 0, 1, 1], [], []>} : vector<8x128xbf16>, vector<128x128xbf16>, vector<8x128xf32> -> vector<8x128xf32>
    %24 = arith.addf %18, %23 : vector<8x128xf32>
    %c0_28 = arith.constant 0 : index
    %c0_29 = arith.constant 0 : index
    %c2_30 = arith.constant 2 : index
    %c0_31 = arith.constant 0 : index
    %25 = vector.load %arg0[%c0_28, %c0_29, %c2_30, %c0_31] : memref<2x2x10x128xbf16, #tpu.memory_space<vmem>>, vector<1x1x8x128xbf16>
    %26 = vector.shape_cast %25 : vector<1x1x8x128xbf16> to vector<8x128xbf16>
    %c4 = arith.constant 4 : index
    %c0_32 = arith.constant 0 : index
    %c0_33 = arith.constant 0 : index
    %27 = vector.load %arg1[%c4, %c0_32, %c0_33] : memref<5x128x128xbf16, #tpu.memory_space<vmem>>, vector<1x128x128xbf16>
    %28 = vector.shape_cast %27 : vector<1x128x128xbf16> to vector<128x128xbf16>
    %cst_34 = arith.constant dense<0.000000e+00> : vector<8x128xf32>
    %29 = tpu.matmul %26, %28, %cst_34 {dimension_numbers = #tpu.dot_dimension_numbers<[1], [0], [0], [1], [0, 0, 1, 1], [], []>} : vector<8x128xbf16>, vector<128x128xbf16>, vector<8x128xf32> -> vector<8x128xf32>
    %30 = arith.addf %24, %29 : vector<8x128xf32>
    %c0_35 = arith.constant 0 : index
    %c0_36 = arith.constant 0 : index
    %31 = vector.load %arg16[%c0_35, %c0_36] : memref<16x128xf32, #tpu.memory_space<vmem>>, vector<8x128xf32>
    tpu.vector_store %arg16[%c0_35, %c0_36], %30 {strides = array<i32>} : memref<16x128xf32, #tpu.memory_space<vmem>>, vector<8x128xf32>,
    %cst_37 = arith.constant 0.000000e+00 : f32
    %32 = vector.broadcast %cst_37 : f32 to vector<8x128xf32>
    %c0_38 = arith.constant 0 : index
    %c1_39 = arith.constant 1 : index
    %c0_40 = arith.constant 0 : index
    %c0_41 = arith.constant 0 : index
    %33 = vector.load %arg0[%c0_38, %c1_39, %c0_40, %c0_41] : memref<2x2x10x128xbf16, #tpu.memory_space<vmem>>, vector<1x1x8x128xbf16>
    %34 = vector.shape_cast %33 : vector<1x1x8x128xbf16> to vector<8x128xbf16>
    %c0_42 = arith.constant 0 : index
    %c0_43 = arith.constant 0 : index
    %c0_44 = arith.constant 0 : index
    %35 = vector.load %arg1[%c0_42, %c0_43, %c0_44] : memref<5x128x128xbf16, #tpu.memory_space<vmem>>, vector<1x128x128xbf16>
    %36 = vector.shape_cast %35 : vector<1x128x128xbf16> to vector<128x128xbf16>
    %cst_45 = arith.constant dense<0.000000e+00> : vector<8x128xf32>
    %37 = tpu.matmul %34, %36, %cst_45 {dimension_numbers = #tpu.dot_dimension_numbers<[1], [0], [0], [1], [0, 0, 1, 1], [], []>} : vector<8x128xbf16>, vector<128x128xbf16>, vector<8x128xf32> -> vector<8x128xf32>
    %38 = arith.addf %32, %37 : vector<8x128xf32>
    %c1_46 = arith.constant 1 : index
    %c1_47 = arith.constant 1 : index
    %c0_48 = arith.constant 0 : index
    %c0_49 = arith.constant 0 : index
    %39 = vector.load %arg0[%c1_46, %c1_47, %c0_48, %c0_49] : memref<2x2x10x128xbf16, #tpu.memory_space<vmem>>, vector<1x1x8x128xbf16>
    %40 = vector.shape_cast %39 : vector<1x1x8x128xbf16> to vector<8x128xbf16>
    %c1_50 = arith.constant 1 : index
    %c0_51 = arith.constant 0 : index
    %c0_52 = arith.constant 0 : index
    %41 = vector.load %arg1[%c1_50, %c0_51, %c0_52] : memref<5x128x128xbf16, #tpu.memory_space<vmem>>, vector<1x128x128xbf16>
    %42 = vector.shape_cast %41 : vector<1x128x128xbf16> to vector<128x128xbf16>
    %cst_53 = arith.constant dense<0.000000e+00> : vector<8x128xf32>
    %43 = tpu.matmul %40, %42, %cst_53 {dimension_numbers = #tpu.dot_dimension_numbers<[1], [0], [0], [1], [0, 0, 1, 1], [], []>} : vector<8x128xbf16>, vector<128x128xbf16>, vector<8x128xf32> -> vector<8x128xf32>
    %44 = arith.addf %38, %43 : vector<8x128xf32>
    %c0_54 = arith.constant 0 : index
    %c1_55 = arith.constant 1 : index
    %c1_56 = arith.constant 1 : index
    %c0_57 = arith.constant 0 : index
    %45 = vector.load %arg0[%c0_54, %c1_55, %c1_56, %c0_57] : memref<2x2x10x128xbf16, #tpu.memory_space<vmem>>, vector<1x1x8x128xbf16>
    %46 = vector.shape_cast %45 : vector<1x1x8x128xbf16> to vector<8x128xbf16>
    %c2_58 = arith.constant 2 : index
    %c0_59 = arith.constant 0 : index
    %c0_60 = arith.constant 0 : index
    %47 = vector.load %arg1[%c2_58, %c0_59, %c0_60] : memref<5x128x128xbf16, #tpu.memory_space<vmem>>, vector<1x128x128xbf16>
    %48 = vector.shape_cast %47 : vector<1x128x128xbf16> to vector<128x128xbf16>
    %cst_61 = arith.constant dense<0.000000e+00> : vector<8x128xf32>
    %49 = tpu.matmul %46, %48, %cst_61 {dimension_numbers = #tpu.dot_dimension_numbers<[1], [0], [0], [1], [0, 0, 1, 1], [], []>} : vector<8x128xbf16>, vector<128x128xbf16>, vector<8x128xf32> -> vector<8x128xf32>
    %50 = arith.addf %44, %49 : vector<8x128xf32>
    %c1_62 = arith.constant 1 : index
    %c1_63 = arith.constant 1 : index
    %c1_64 = arith.constant 1 : index
    %c0_65 = arith.constant 0 : index
    %51 = vector.load %arg0[%c1_62, %c1_63, %c1_64, %c0_65] : memref<2x2x10x128xbf16, #tpu.memory_space<vmem>>, vector<1x1x8x128xbf16>
    %52 = vector.shape_cast %51 : vector<1x1x8x128xbf16> to vector<8x128xbf16>
    %c3_66 = arith.constant 3 : index
    %c0_67 = arith.constant 0 : index
    %c0_68 = arith.constant 0 : index
    %53 = vector.load %arg1[%c3_66, %c0_67, %c0_68] : memref<5x128x128xbf16, #tpu.memory_space<vmem>>, vector<1x128x128xbf16>
    %54 = vector.shape_cast %53 : vector<1x128x128xbf16> to vector<128x128xbf16>
    %cst_69 = arith.constant dense<0.000000e+00> : vector<8x128xf32>
    %55 = tpu.matmul %52, %54, %cst_69 {dimension_numbers = #tpu.dot_dimension_numbers<[1], [0], [0], [1], [0, 0, 1, 1], [], []>} : vector<8x128xbf16>, vector<128x128xbf16>, vector<8x128xf32> -> vector<8x128xf32>
    %56 = arith.addf %50, %55 : vector<8x128xf32>
    %c0_70 = arith.constant 0 : index
    %c1_71 = arith.constant 1 : index
    %c2_72 = arith.constant 2 : index
    %c0_73 = arith.constant 0 : index
    %57 = vector.load %arg0[%c0_70, %c1_71, %c2_72, %c0_73] : memref<2x2x10x128xbf16, #tpu.memory_space<vmem>>, vector<1x1x8x128xbf16>
    %58 = vector.shape_cast %57 : vector<1x1x8x128xbf16> to vector<8x128xbf16>
    %c4_74 = arith.constant 4 : index
    %c0_75 = arith.constant 0 : index
    %c0_76 = arith.constant 0 : index
    %59 = vector.load %arg1[%c4_74, %c0_75, %c0_76] : memref<5x128x128xbf16, #tpu.memory_space<vmem>>, vector<1x128x128xbf16>
    %60 = vector.shape_cast %59 : vector<1x128x128xbf16> to vector<128x128xbf16>
    %cst_77 = arith.constant dense<0.000000e+00> : vector<8x128xf32>
    %61 = tpu.matmul %58, %60, %cst_77 {dimension_numbers = #tpu.dot_dimension_numbers<[1], [0], [0], [1], [0, 0, 1, 1], [], []>} : vector<8x128xbf16>, vector<128x128xbf16>, vector<8x128xf32> -> vector<8x128xf32>
    %62 = arith.addf %56, %61 : vector<8x128xf32>
    %c8 = arith.constant 8 : index
    %c0_78 = arith.constant 0 : index
    %63 = vector.load %arg16[%c8, %c0_78] : memref<16x128xf32, #tpu.memory_space<vmem>>, vector<8x128xf32>
    tpu.vector_store %arg16[%c8, %c0_78], %62 {strides = array<i32>} : memref<16x128xf32, #tpu.memory_space<vmem>>, vector<8x128xf32>,
    %c0_79 = arith.constant 0 : index
    %c0_80 = arith.constant 0 : index
    %64 = vector.load %arg16[%c0_79, %c0_80] : memref<16x128xf32, #tpu.memory_space<vmem>>, vector<16x128xf32>
    %cst_81 = arith.constant dense<0.000000e+00> : vector<128xf32>
    %65 = vector.multi_reduction <add>, %64, %cst_81 [0] : vector<16x128xf32> to vector<128xf32>
    %66 = vector.shape_cast %65 : vector<128xf32> to vector<1x128xf32>
    %67 = arith.mulf %64, %64 : vector<16x128xf32>
    %cst_82 = arith.constant dense<0.000000e+00> : vector<128xf32>
    %68 = vector.multi_reduction <add>, %67, %cst_82 [0] : vector<16x128xf32> to vector<128xf32>
    %69 = vector.shape_cast %68 : vector<128xf32> to vector<1x128xf32>
    %c0_83 = arith.constant 0 : index
    %c0_84 = arith.constant 0 : index
    %70 = vector.load %arg2[%c0_83, %c0_84] : memref<128x128xf32, #tpu.memory_space<vmem>>, vector<128x128xf32>
    %cst_85 = arith.constant dense<0.000000e+00> : vector<1x128xf32>
    %71 = tpu.matmul %66, %70, %cst_85 {dimension_numbers = #tpu.dot_dimension_numbers<[1], [0], [0], [1], [0, 0, 1, 1], [], []>} : vector<1x128xf32>, vector<128x128xf32>, vector<1x128xf32> -> vector<1x128xf32>
    %cst_86 = arith.constant 7.812500e-03 : f32
    %72 = vector.broadcast %cst_86 : f32 to vector<1x128xf32>
    %73 = arith.mulf %71, %72 : vector<1x128xf32>
    %c0_87 = arith.constant 0 : index
    %c0_88 = arith.constant 0 : index
    %74 = vector.load %arg2[%c0_87, %c0_88] : memref<128x128xf32, #tpu.memory_space<vmem>>, vector<128x128xf32>
    %cst_89 = arith.constant dense<0.000000e+00> : vector<1x128xf32>
    %75 = tpu.matmul %69, %74, %cst_89 {dimension_numbers = #tpu.dot_dimension_numbers<[1], [0], [0], [1], [0, 0, 1, 1], [], []>} : vector<1x128xf32>, vector<128x128xf32>, vector<1x128xf32> -> vector<1x128xf32>
    %cst_90 = arith.constant 7.812500e-03 : f32
    %76 = vector.broadcast %cst_90 : f32 to vector<1x128xf32>
    %77 = arith.mulf %75, %76 : vector<1x128xf32>
    %78 = arith.mulf %73, %73 : vector<1x128xf32>
    %79 = arith.subf %77, %78 : vector<1x128xf32>
    %c0_91 = arith.constant 0 : index
    %c0_92 = arith.constant 0 : index
    %80 = vector.load %arg3[%c0_91, %c0_92] : memref<1x128xf32, #tpu.memory_space<vmem>>, vector<1x128xf32>
    %cst_93 = arith.constant 9.99999974E-6 : f32
    %81 = vector.broadcast %cst_93 : f32 to vector<1x128xf32>
    %82 = arith.addf %79, %81 : vector<1x128xf32>
    %83 = math.rsqrt %82 : vector<1x128xf32>
    %84 = arith.mulf %80, %83 : vector<1x128xf32>
    %c0_94 = arith.constant 0 : index
    %c0_95 = arith.constant 0 : index
    %85 = vector.load %arg4[%c0_94, %c0_95] : memref<1x128xf32, #tpu.memory_space<vmem>>, vector<1x128xf32>
    %86 = arith.mulf %73, %84 : vector<1x128xf32>
    %87 = arith.subf %85, %86 : vector<1x128xf32>
    %88 = vector.broadcast %84 : vector<1x128xf32> to vector<16x128xf32>
    %89 = arith.mulf %64, %88 : vector<16x128xf32>
    %90 = vector.broadcast %87 : vector<1x128xf32> to vector<16x128xf32>
    %91 = arith.addf %89, %90 : vector<16x128xf32>
    %cst_96 = arith.constant 0.000000e+00 : f32
    %92 = vector.broadcast %cst_96 : f32 to vector<16x128xf32>
    %93 = arith.cmpf ogt, %91, %92 : vector<16x128xf32>
    %cst_97 = arith.constant 0.00999999977 : f32
    %94 = vector.broadcast %cst_97 : f32 to vector<16x128xf32>
    %95 = arith.mulf %94, %91 : vector<16x128xf32>
    %96 = arith.select %93, %91, %95 : vector<16x128xi1>, vector<16x128xf32>
    %cst_98 = arith.constant 0.000000e+00 : bf16
    %97 = vector.broadcast %cst_98 : bf16 to vector<2x12x128xbf16>
    %c0_99 = arith.constant 0 : index
    %c0_100 = arith.constant 0 : index
    %c0_101 = arith.constant 0 : index
    %98 = vector.load %arg17[%c0_99, %c0_100, %c0_101] : memref<2x12x128xbf16, #tpu.memory_space<vmem>>, vector<2x12x128xbf16>
    tpu.vector_store %arg17[%c0_99, %c0_100, %c0_101], %97 {strides = array<i32>} : memref<2x12x128xbf16, #tpu.memory_space<vmem>>, vector<2x12x128xbf16>,
    %99 = vector.extract_strided_slice %96 {offsets = [0, 0], sizes = [8, 128], strides = [1, 1]} : vector<16x128xf32> to vector<8x128xf32>
    %100 = arith.truncf %99 : vector<8x128xf32> to vector<8x128xbf16>
    %c0_102 = arith.constant 0 : index
    %c2_103 = arith.constant 2 : index
    %c0_104 = arith.constant 0 : index
    %101 = vector.load %arg17[%c0_102, %c2_103, %c0_104] : memref<2x12x128xbf16, #tpu.memory_space<vmem>>, vector<1x8x128xbf16>
    %102 = vector.shape_cast %101 : vector<1x8x128xbf16> to vector<8x128xbf16>
    %103 = vector.shape_cast %100 : vector<8x128xbf16> to vector<1x8x128xbf16>
    tpu.vector_store %arg17[%c0_102, %c2_103, %c0_104], %103 {strides = array<i32>} : memref<2x12x128xbf16, #tpu.memory_space<vmem>>, vector<1x8x128xbf16>,
    %104 = vector.extract_strided_slice %96 {offsets = [8, 0], sizes = [8, 128], strides = [1, 1]} : vector<16x128xf32> to vector<8x128xf32>
    %105 = arith.truncf %104 : vector<8x128xf32> to vector<8x128xbf16>
    %c1_105 = arith.constant 1 : index
    %c2_106 = arith.constant 2 : index
    %c0_107 = arith.constant 0 : index
    %106 = vector.load %arg17[%c1_105, %c2_106, %c0_107] : memref<2x12x128xbf16, #tpu.memory_space<vmem>>, vector<1x8x128xbf16>
    %107 = vector.shape_cast %106 : vector<1x8x128xbf16> to vector<8x128xbf16>
    %108 = vector.shape_cast %105 : vector<8x128xbf16> to vector<1x8x128xbf16>
    tpu.vector_store %arg17[%c1_105, %c2_106, %c0_107], %108 {strides = array<i32>} : memref<2x12x128xbf16, #tpu.memory_space<vmem>>, vector<1x8x128xbf16>,
    %cst_108 = arith.constant 0.000000e+00 : f32
    %109 = vector.broadcast %cst_108 : f32 to vector<8x128xf32>
    %c0_109 = arith.constant 0 : index
    %c0_110 = arith.constant 0 : index
    %c0_111 = arith.constant 0 : index
    %110 = vector.load %arg17[%c0_109, %c0_110, %c0_111] : memref<2x12x128xbf16, #tpu.memory_space<vmem>>, vector<1x8x128xbf16>
    %111 = vector.shape_cast %110 : vector<1x8x128xbf16> to vector<8x128xbf16>
    %c0_112 = arith.constant 0 : index
    %c0_113 = arith.constant 0 : index
    %c0_114 = arith.constant 0 : index
    %112 = vector.load %arg5[%c0_112, %c0_113, %c0_114] : memref<5x128x128xbf16, #tpu.memory_space<vmem>>, vector<1x128x128xbf16>
    %113 = vector.shape_cast %112 : vector<1x128x128xbf16> to vector<128x128xbf16>
    %cst_115 = arith.constant dense<0.000000e+00> : vector<8x128xf32>
    %114 = tpu.matmul %111, %113, %cst_115 {dimension_numbers = #tpu.dot_dimension_numbers<[1], [0], [0], [1], [0, 0, 1, 1], [], []>} : vector<8x128xbf16>, vector<128x128xbf16>, vector<8x128xf32> -> vector<8x128xf32>
    %115 = arith.addf %109, %114 : vector<8x128xf32>
    %c0_116 = arith.constant 0 : index
    %c1_117 = arith.constant 1 : index
    %c0_118 = arith.constant 0 : index
    %116 = vector.load %arg17[%c0_116, %c1_117, %c0_118] : memref<2x12x128xbf16, #tpu.memory_space<vmem>>, vector<1x8x128xbf16>
    %117 = vector.shape_cast %116 : vector<1x8x128xbf16> to vector<8x128xbf16>
    %c1_119 = arith.constant 1 : index
    %c0_120 = arith.constant 0 : index
    %c0_121 = arith.constant 0 : index
    %118 = vector.load %arg5[%c1_119, %c0_120, %c0_121] : memref<5x128x128xbf16, #tpu.memory_space<vmem>>, vector<1x128x128xbf16>
    %119 = vector.shape_cast %118 : vector<1x128x128xbf16> to vector<128x128xbf16>
    %cst_122 = arith.constant dense<0.000000e+00> : vector<8x128xf32>
    %120 = tpu.matmul %117, %119, %cst_122 {dimension_numbers = #tpu.dot_dimension_numbers<[1], [0], [0], [1], [0, 0, 1, 1], [], []>} : vector<8x128xbf16>, vector<128x128xbf16>, vector<8x128xf32> -> vector<8x128xf32>
    %121 = arith.addf %115, %120 : vector<8x128xf32>
    %c0_123 = arith.constant 0 : index
    %c2_124 = arith.constant 2 : index
    %c0_125 = arith.constant 0 : index
    %122 = vector.load %arg17[%c0_123, %c2_124, %c0_125] : memref<2x12x128xbf16, #tpu.memory_space<vmem>>, vector<1x8x128xbf16>
    %123 = vector.shape_cast %122 : vector<1x8x128xbf16> to vector<8x128xbf16>
    %c2_126 = arith.constant 2 : index
    %c0_127 = arith.constant 0 : index
    %c0_128 = arith.constant 0 : index
    %124 = vector.load %arg5[%c2_126, %c0_127, %c0_128] : memref<5x128x128xbf16, #tpu.memory_space<vmem>>, vector<1x128x128xbf16>
    %125 = vector.shape_cast %124 : vector<1x128x128xbf16> to vector<128x128xbf16>
    %cst_129 = arith.constant dense<0.000000e+00> : vector<8x128xf32>
    %126 = tpu.matmul %123, %125, %cst_129 {dimension_numbers = #tpu.dot_dimension_numbers<[1], [0], [0], [1], [0, 0, 1, 1], [], []>} : vector<8x128xbf16>, vector<128x128xbf16>, vector<8x128xf32> -> vector<8x128xf32>
    %127 = arith.addf %121, %126 : vector<8x128xf32>
    %c0_130 = arith.constant 0 : index
    %c3_131 = arith.constant 3 : index
    %c0_132 = arith.constant 0 : index
    %128 = vector.load %arg17[%c0_130, %c3_131, %c0_132] : memref<2x12x128xbf16, #tpu.memory_space<vmem>>, vector<1x8x128xbf16>
    %129 = vector.shape_cast %128 : vector<1x8x128xbf16> to vector<8x128xbf16>
    %c3_133 = arith.constant 3 : index
    %c0_134 = arith.constant 0 : index
    %c0_135 = arith.constant 0 : index
    %130 = vector.load %arg5[%c3_133, %c0_134, %c0_135] : memref<5x128x128xbf16, #tpu.memory_space<vmem>>, vector<1x128x128xbf16>
    %131 = vector.shape_cast %130 : vector<1x128x128xbf16> to vector<128x128xbf16>
    %cst_136 = arith.constant dense<0.000000e+00> : vector<8x128xf32>
    %132 = tpu.matmul %129, %131, %cst_136 {dimension_numbers = #tpu.dot_dimension_numbers<[1], [0], [0], [1], [0, 0, 1, 1], [], []>} : vector<8x128xbf16>, vector<128x128xbf16>, vector<8x128xf32> -> vector<8x128xf32>
    %133 = arith.addf %127, %132 : vector<8x128xf32>
    %c0_137 = arith.constant 0 : index
    %c4_138 = arith.constant 4 : index
    %c0_139 = arith.constant 0 : index
    %134 = vector.load %arg17[%c0_137, %c4_138, %c0_139] : memref<2x12x128xbf16, #tpu.memory_space<vmem>>, vector<1x8x128xbf16>
    %135 = vector.shape_cast %134 : vector<1x8x128xbf16> to vector<8x128xbf16>
    %c4_140 = arith.constant 4 : index
    %c0_141 = arith.constant 0 : index
    %c0_142 = arith.constant 0 : index
    %136 = vector.load %arg5[%c4_140, %c0_141, %c0_142] : memref<5x128x128xbf16, #tpu.memory_space<vmem>>, vector<1x128x128xbf16>
    %137 = vector.shape_cast %136 : vector<1x128x128xbf16> to vector<128x128xbf16>
    %cst_143 = arith.constant dense<0.000000e+00> : vector<8x128xf32>
    %138 = tpu.matmul %135, %137, %cst_143 {dimension_numbers = #tpu.dot_dimension_numbers<[1], [0], [0], [1], [0, 0, 1, 1], [], []>} : vector<8x128xbf16>, vector<128x128xbf16>, vector<8x128xf32> -> vector<8x128xf32>
    %139 = arith.addf %133, %138 : vector<8x128xf32>
    %c0_144 = arith.constant 0 : index
    %c0_145 = arith.constant 0 : index
    %140 = vector.load %arg18[%c0_144, %c0_145] : memref<16x128xf32, #tpu.memory_space<vmem>>, vector<8x128xf32>
    tpu.vector_store %arg18[%c0_144, %c0_145], %139 {strides = array<i32>} : memref<16x128xf32, #tpu.memory_space<vmem>>, vector<8x128xf32>,
    %cst_146 = arith.constant 0.000000e+00 : f32
    %141 = vector.broadcast %cst_146 : f32 to vector<8x128xf32>
    %c1_147 = arith.constant 1 : index
    %c0_148 = arith.constant 0 : index
    %c0_149 = arith.constant 0 : index
    %142 = vector.load %arg17[%c1_147, %c0_148, %c0_149] : memref<2x12x128xbf16, #tpu.memory_space<vmem>>, vector<1x8x128xbf16>
    %143 = vector.shape_cast %142 : vector<1x8x128xbf16> to vector<8x128xbf16>
    %c0_150 = arith.constant 0 : index
    %c0_151 = arith.constant 0 : index
    %c0_152 = arith.constant 0 : index
    %144 = vector.load %arg5[%c0_150, %c0_151, %c0_152] : memref<5x128x128xbf16, #tpu.memory_space<vmem>>, vector<1x128x128xbf16>
    %145 = vector.shape_cast %144 : vector<1x128x128xbf16> to vector<128x128xbf16>
    %cst_153 = arith.constant dense<0.000000e+00> : vector<8x128xf32>
    %146 = tpu.matmul %143, %145, %cst_153 {dimension_numbers = #tpu.dot_dimension_numbers<[1], [0], [0], [1], [0, 0, 1, 1], [], []>} : vector<8x128xbf16>, vector<128x128xbf16>, vector<8x128xf32> -> vector<8x128xf32>
    %147 = arith.addf %141, %146 : vector<8x128xf32>
    %c1_154 = arith.constant 1 : index
    %c1_155 = arith.constant 1 : index
    %c0_156 = arith.constant 0 : index
    %148 = vector.load %arg17[%c1_154, %c1_155, %c0_156] : memref<2x12x128xbf16, #tpu.memory_space<vmem>>, vector<1x8x128xbf16>
    %149 = vector.shape_cast %148 : vector<1x8x128xbf16> to vector<8x128xbf16>
    %c1_157 = arith.constant 1 : index
    %c0_158 = arith.constant 0 : index
    %c0_159 = arith.constant 0 : index
    %150 = vector.load %arg5[%c1_157, %c0_158, %c0_159] : memref<5x128x128xbf16, #tpu.memory_space<vmem>>, vector<1x128x128xbf16>
    %151 = vector.shape_cast %150 : vector<1x128x128xbf16> to vector<128x128xbf16>
    %cst_160 = arith.constant dense<0.000000e+00> : vector<8x128xf32>
    %152 = tpu.matmul %149, %151, %cst_160 {dimension_numbers = #tpu.dot_dimension_numbers<[1], [0], [0], [1], [0, 0, 1, 1], [], []>} : vector<8x128xbf16>, vector<128x128xbf16>, vector<8x128xf32> -> vector<8x128xf32>
    %153 = arith.addf %147, %152 : vector<8x128xf32>
    %c1_161 = arith.constant 1 : index
    %c2_162 = arith.constant 2 : index
    %c0_163 = arith.constant 0 : index
    %154 = vector.load %arg17[%c1_161, %c2_162, %c0_163] : memref<2x12x128xbf16, #tpu.memory_space<vmem>>, vector<1x8x128xbf16>
    %155 = vector.shape_cast %154 : vector<1x8x128xbf16> to vector<8x128xbf16>
    %c2_164 = arith.constant 2 : index
    %c0_165 = arith.constant 0 : index
    %c0_166 = arith.constant 0 : index
    %156 = vector.load %arg5[%c2_164, %c0_165, %c0_166] : memref<5x128x128xbf16, #tpu.memory_space<vmem>>, vector<1x128x128xbf16>
    %157 = vector.shape_cast %156 : vector<1x128x128xbf16> to vector<128x128xbf16>
    %cst_167 = arith.constant dense<0.000000e+00> : vector<8x128xf32>
    %158 = tpu.matmul %155, %157, %cst_167 {dimension_numbers = #tpu.dot_dimension_numbers<[1], [0], [0], [1], [0, 0, 1, 1], [], []>} : vector<8x128xbf16>, vector<128x128xbf16>, vector<8x128xf32> -> vector<8x128xf32>
    %159 = arith.addf %153, %158 : vector<8x128xf32>
    %c1_168 = arith.constant 1 : index
    %c3_169 = arith.constant 3 : index
    %c0_170 = arith.constant 0 : index
    %160 = vector.load %arg17[%c1_168, %c3_169, %c0_170] : memref<2x12x128xbf16, #tpu.memory_space<vmem>>, vector<1x8x128xbf16>
    %161 = vector.shape_cast %160 : vector<1x8x128xbf16> to vector<8x128xbf16>
    %c3_171 = arith.constant 3 : index
    %c0_172 = arith.constant 0 : index
    %c0_173 = arith.constant 0 : index
    %162 = vector.load %arg5[%c3_171, %c0_172, %c0_173] : memref<5x128x128xbf16, #tpu.memory_space<vmem>>, vector<1x128x128xbf16>
    %163 = vector.shape_cast %162 : vector<1x128x128xbf16> to vector<128x128xbf16>
    %cst_174 = arith.constant dense<0.000000e+00> : vector<8x128xf32>
    %164 = tpu.matmul %161, %163, %cst_174 {dimension_numbers = #tpu.dot_dimension_numbers<[1], [0], [0], [1], [0, 0, 1, 1], [], []>} : vector<8x128xbf16>, vector<128x128xbf16>, vector<8x128xf32> -> vector<8x128xf32>
    %165 = arith.addf %159, %164 : vector<8x128xf32>
    %c1_175 = arith.constant 1 : index
    %c4_176 = arith.constant 4 : index
    %c0_177 = arith.constant 0 : index
    %166 = vector.load %arg17[%c1_175, %c4_176, %c0_177] : memref<2x12x128xbf16, #tpu.memory_space<vmem>>, vector<1x8x128xbf16>
    %167 = vector.shape_cast %166 : vector<1x8x128xbf16> to vector<8x128xbf16>
    %c4_178 = arith.constant 4 : index
    %c0_179 = arith.constant 0 : index
    %c0_180 = arith.constant 0 : index
    %168 = vector.load %arg5[%c4_178, %c0_179, %c0_180] : memref<5x128x128xbf16, #tpu.memory_space<vmem>>, vector<1x128x128xbf16>
    %169 = vector.shape_cast %168 : vector<1x128x128xbf16> to vector<128x128xbf16>
    %cst_181 = arith.constant dense<0.000000e+00> : vector<8x128xf32>
    %170 = tpu.matmul %167, %169, %cst_181 {dimension_numbers = #tpu.dot_dimension_numbers<[1], [0], [0], [1], [0, 0, 1, 1], [], []>} : vector<8x128xbf16>, vector<128x128xbf16>, vector<8x128xf32> -> vector<8x128xf32>
    %171 = arith.addf %165, %170 : vector<8x128xf32>
    %c8_182 = arith.constant 8 : index
    %c0_183 = arith.constant 0 : index
    %172 = vector.load %arg18[%c8_182, %c0_183] : memref<16x128xf32, #tpu.memory_space<vmem>>, vector<8x128xf32>
    tpu.vector_store %arg18[%c8_182, %c0_183], %171 {strides = array<i32>} : memref<16x128xf32, #tpu.memory_space<vmem>>, vector<8x128xf32>,
    %c0_184 = arith.constant 0 : index
    %c0_185 = arith.constant 0 : index
    %173 = vector.load %arg18[%c0_184, %c0_185] : memref<16x128xf32, #tpu.memory_space<vmem>>, vector<16x128xf32>
    %174 = tpu.iota {dimensions = array<i32: 0>} : vector<16x128xi32>
    %c2_i32 = arith.constant 2 : i32
    %c0_i32 = arith.constant 0 : i32
    %175 = arith.cmpi eq, %c2_i32, %c0_i32 : i32
    %c1_i32 = arith.constant 1 : i32
    %176 = arith.select %175, %c1_i32, %c2_i32 : i32
    %177 = vector.broadcast %176 : i32 to vector<16x128xi32>
    %178 = arith.remsi %174, %177 : vector<16x128xi32>
    %c0_i32_186 = arith.constant 0 : i32
    %179 = vector.broadcast %c0_i32_186 : i32 to vector<16x128xi32>
    %180 = arith.cmpi ne, %178, %179 : vector<16x128xi32>
    %c0_i32_187 = arith.constant 0 : i32
    %181 = vector.broadcast %c0_i32_187 : i32 to vector<16x128xi32>
    %182 = arith.cmpi slt, %178, %181 : vector<16x128xi32>
    %c0_i32_188 = arith.constant 0 : i32
    %183 = arith.cmpi slt, %176, %c0_i32_188 : i32
    %184 = vector.broadcast %183 : i1 to vector<16x128xi1>
    %185 = vector.broadcast %184 : vector<16x128xi1> to vector<16x128xi1>
    %186 = arith.xori %182, %185 : vector<16x128xi1>
    %187 = arith.andi %186, %180 : vector<16x128xi1>
    %188 = vector.broadcast %176 : i32 to vector<16x128xi32>
    %189 = arith.addi %178, %188 : vector<16x128xi32>
    %190 = arith.select %187, %189, %178 : vector<16x128xi1>, vector<16x128xi32>
    %c0_i32_189 = arith.constant 0 : i32
    %191 = vector.broadcast %c0_i32_189 : i32 to vector<16x128xi32>
    %192 = arith.cmpi eq, %190, %191 : vector<16x128xi32>
    %193 = arith.extui %192 : vector<16x128xi1> to vector<16x128xi32>
    %194 = arith.sitofp %193 : vector<16x128xi32> to vector<16x128xf32>
    %195 = arith.mulf %173, %194 : vector<16x128xf32>
    %cst_190 = arith.constant dense<0.000000e+00> : vector<128xf32>
    %196 = vector.multi_reduction <add>, %195, %cst_190 [0] : vector<16x128xf32> to vector<128xf32>
    %197 = vector.shape_cast %196 : vector<128xf32> to vector<1x128xf32>
    %198 = arith.mulf %173, %173 : vector<16x128xf32>
    %199 = arith.mulf %198, %194 : vector<16x128xf32>
    %cst_191 = arith.constant dense<0.000000e+00> : vector<128xf32>
    %200 = vector.multi_reduction <add>, %199, %cst_191 [0] : vector<16x128xf32> to vector<128xf32>
    %201 = vector.shape_cast %200 : vector<128xf32> to vector<1x128xf32>
    %c0_192 = arith.constant 0 : index
    %c0_193 = arith.constant 0 : index
    %202 = vector.load %arg6[%c0_192, %c0_193] : memref<128x128xf32, #tpu.memory_space<vmem>>, vector<128x128xf32>
    %cst_194 = arith.constant dense<0.000000e+00> : vector<1x128xf32>
    %203 = tpu.matmul %197, %202, %cst_194 {dimension_numbers = #tpu.dot_dimension_numbers<[1], [0], [0], [1], [0, 0, 1, 1], [], []>} : vector<1x128xf32>, vector<128x128xf32>, vector<1x128xf32> -> vector<1x128xf32>
    %cst_195 = arith.constant 3.125000e-02 : f32
    %204 = vector.broadcast %cst_195 : f32 to vector<1x128xf32>
    %205 = arith.mulf %203, %204 : vector<1x128xf32>
    %c0_196 = arith.constant 0 : index
    %c0_197 = arith.constant 0 : index
    %206 = vector.load %arg6[%c0_196, %c0_197] : memref<128x128xf32, #tpu.memory_space<vmem>>, vector<128x128xf32>
    %cst_198 = arith.constant dense<0.000000e+00> : vector<1x128xf32>
    %207 = tpu.matmul %201, %206, %cst_198 {dimension_numbers = #tpu.dot_dimension_numbers<[1], [0], [0], [1], [0, 0, 1, 1], [], []>} : vector<1x128xf32>, vector<128x128xf32>, vector<1x128xf32> -> vector<1x128xf32>
    %cst_199 = arith.constant 3.125000e-02 : f32
    %208 = vector.broadcast %cst_199 : f32 to vector<1x128xf32>
    %209 = arith.mulf %207, %208 : vector<1x128xf32>
    %210 = arith.mulf %205, %205 : vector<1x128xf32>
    %211 = arith.subf %209, %210 : vector<1x128xf32>
    %c0_200 = arith.constant 0 : index
    %c0_201 = arith.constant 0 : index
    %212 = vector.load %arg7[%c0_200, %c0_201] : memref<1x128xf32, #tpu.memory_space<vmem>>, vector<1x128xf32>
    %cst_202 = arith.constant 9.99999974E-6 : f32
    %213 = vector.broadcast %cst_202 : f32 to vector<1x128xf32>
    %214 = arith.addf %211, %213 : vector<1x128xf32>
    %215 = math.rsqrt %214 : vector<1x128xf32>
    %216 = arith.mulf %212, %215 : vector<1x128xf32>
    %c0_203 = arith.constant 0 : index
    %c0_204 = arith.constant 0 : index
    %217 = vector.load %arg8[%c0_203, %c0_204] : memref<1x128xf32, #tpu.memory_space<vmem>>, vector<1x128xf32>
    %218 = arith.mulf %205, %216 : vector<1x128xf32>
    %219 = arith.subf %217, %218 : vector<1x128xf32>
    %220 = vector.broadcast %216 : vector<1x128xf32> to vector<16x128xf32>
    %221 = arith.mulf %173, %220 : vector<16x128xf32>
    %222 = vector.broadcast %219 : vector<1x128xf32> to vector<16x128xf32>
    %223 = arith.addf %221, %222 : vector<16x128xf32>
    %cst_205 = arith.constant 0.000000e+00 : f32
    %224 = vector.broadcast %cst_205 : f32 to vector<16x128xf32>
    %225 = arith.cmpf ogt, %223, %224 : vector<16x128xf32>
    %cst_206 = arith.constant 0.00999999977 : f32
    %226 = vector.broadcast %cst_206 : f32 to vector<16x128xf32>
    %227 = arith.mulf %226, %223 : vector<16x128xf32>
    %228 = arith.select %225, %223, %227 : vector<16x128xi1>, vector<16x128xf32>
    %229 = arith.truncf %228 : vector<16x128xf32> to vector<16x128xbf16>
    %230 = vector.extract_strided_slice %229 {offsets = [0, 0], sizes = [1, 128], strides = [1, 1]} : vector<16x128xbf16> to vector<1x128xbf16>
    %c0_207 = arith.constant 0 : index
    %c0_208 = arith.constant 0 : index
    %231 = vector.load %arg19[%c0_207, %c0_208] : memref<2x1024xbf16, #tpu.memory_space<vmem>>, vector<1x128xbf16>
    tpu.vector_store %arg19[%c0_207, %c0_208], %230 {strides = array<i32>} : memref<2x1024xbf16, #tpu.memory_space<vmem>>, vector<1x128xbf16>,
    %232 = vector.extract_strided_slice %229 {offsets = [1, 0], sizes = [1, 128], strides = [1, 1]} : vector<16x128xbf16> to vector<1x128xbf16>
    %c0_209 = arith.constant 0 : index
    %c128 = arith.constant 128 : index
    %233 = vector.load %arg19[%c0_209, %c128] : memref<2x1024xbf16, #tpu.memory_space<vmem>>, vector<1x128xbf16>
    tpu.vector_store %arg19[%c0_209, %c128], %232 {strides = array<i32>} : memref<2x1024xbf16, #tpu.memory_space<vmem>>, vector<1x128xbf16>,
    %234 = vector.extract_strided_slice %229 {offsets = [2, 0], sizes = [1, 128], strides = [1, 1]} : vector<16x128xbf16> to vector<1x128xbf16>
    %c0_210 = arith.constant 0 : index
    %c256 = arith.constant 256 : index
    %235 = vector.load %arg19[%c0_210, %c256] : memref<2x1024xbf16, #tpu.memory_space<vmem>>, vector<1x128xbf16>
    tpu.vector_store %arg19[%c0_210, %c256], %234 {strides = array<i32>} : memref<2x1024xbf16, #tpu.memory_space<vmem>>, vector<1x128xbf16>,
    %236 = vector.extract_strided_slice %229 {offsets = [3, 0], sizes = [1, 128], strides = [1, 1]} : vector<16x128xbf16> to vector<1x128xbf16>
    %c0_211 = arith.constant 0 : index
    %c384 = arith.constant 384 : index
    %237 = vector.load %arg19[%c0_211, %c384] : memref<2x1024xbf16, #tpu.memory_space<vmem>>, vector<1x128xbf16>
    tpu.vector_store %arg19[%c0_211, %c384], %236 {strides = array<i32>} : memref<2x1024xbf16, #tpu.memory_space<vmem>>, vector<1x128xbf16>,
    %238 = vector.extract_strided_slice %229 {offsets = [4, 0], sizes = [1, 128], strides = [1, 1]} : vector<16x128xbf16> to vector<1x128xbf16>
    %c0_212 = arith.constant 0 : index
    %c512 = arith.constant 512 : index
    %239 = vector.load %arg19[%c0_212, %c512] : memref<2x1024xbf16, #tpu.memory_space<vmem>>, vector<1x128xbf16>
    tpu.vector_store %arg19[%c0_212, %c512], %238 {strides = array<i32>} : memref<2x1024xbf16, #tpu.memory_space<vmem>>, vector<1x128xbf16>,
    %240 = vector.extract_strided_slice %229 {offsets = [5, 0], sizes = [1, 128], strides = [1, 1]} : vector<16x128xbf16> to vector<1x128xbf16>
    %c0_213 = arith.constant 0 : index
    %c640 = arith.constant 640 : index
    %241 = vector.load %arg19[%c0_213, %c640] : memref<2x1024xbf16, #tpu.memory_space<vmem>>, vector<1x128xbf16>
    tpu.vector_store %arg19[%c0_213, %c640], %240 {strides = array<i32>} : memref<2x1024xbf16, #tpu.memory_space<vmem>>, vector<1x128xbf16>,
    %242 = vector.extract_strided_slice %229 {offsets = [6, 0], sizes = [1, 128], strides = [1, 1]} : vector<16x128xbf16> to vector<1x128xbf16>
    %c0_214 = arith.constant 0 : index
    %c768 = arith.constant 768 : index
    %243 = vector.load %arg19[%c0_214, %c768] : memref<2x1024xbf16, #tpu.memory_space<vmem>>, vector<1x128xbf16>
    tpu.vector_store %arg19[%c0_214, %c768], %242 {strides = array<i32>} : memref<2x1024xbf16, #tpu.memory_space<vmem>>, vector<1x128xbf16>,
    %244 = vector.extract_strided_slice %229 {offsets = [7, 0], sizes = [1, 128], strides = [1, 1]} : vector<16x128xbf16> to vector<1x128xbf16>
    %c0_215 = arith.constant 0 : index
    %c896 = arith.constant 896 : index
    %245 = vector.load %arg19[%c0_215, %c896] : memref<2x1024xbf16, #tpu.memory_space<vmem>>, vector<1x128xbf16>
    tpu.vector_store %arg19[%c0_215, %c896], %244 {strides = array<i32>} : memref<2x1024xbf16, #tpu.memory_space<vmem>>, vector<1x128xbf16>,
    %246 = vector.extract_strided_slice %229 {offsets = [8, 0], sizes = [1, 128], strides = [1, 1]} : vector<16x128xbf16> to vector<1x128xbf16>
    %c1_216 = arith.constant 1 : index
    %c0_217 = arith.constant 0 : index
    %247 = vector.load %arg19[%c1_216, %c0_217] : memref<2x1024xbf16, #tpu.memory_space<vmem>>, vector<1x128xbf16>
    tpu.vector_store %arg19[%c1_216, %c0_217], %246 {strides = array<i32>} : memref<2x1024xbf16, #tpu.memory_space<vmem>>, vector<1x128xbf16>,
    %248 = vector.extract_strided_slice %229 {offsets = [9, 0], sizes = [1, 128], strides = [1, 1]} : vector<16x128xbf16> to vector<1x128xbf16>
    %c1_218 = arith.constant 1 : index
    %c128_219 = arith.constant 128 : index
    %249 = vector.load %arg19[%c1_218, %c128_219] : memref<2x1024xbf16, #tpu.memory_space<vmem>>, vector<1x128xbf16>
    tpu.vector_store %arg19[%c1_218, %c128_219], %248 {strides = array<i32>} : memref<2x1024xbf16, #tpu.memory_space<vmem>>, vector<1x128xbf16>,
    %250 = vector.extract_strided_slice %229 {offsets = [10, 0], sizes = [1, 128], strides = [1, 1]} : vector<16x128xbf16> to vector<1x128xbf16>
    %c1_220 = arith.constant 1 : index
    %c256_221 = arith.constant 256 : index
    %251 = vector.load %arg19[%c1_220, %c256_221] : memref<2x1024xbf16, #tpu.memory_space<vmem>>, vector<1x128xbf16>
    tpu.vector_store %arg19[%c1_220, %c256_221], %250 {strides = array<i32>} : memref<2x1024xbf16, #tpu.memory_space<vmem>>, vector<1x128xbf16>,
    %252 = vector.extract_strided_slice %229 {offsets = [11, 0], sizes = [1, 128], strides = [1, 1]} : vector<16x128xbf16> to vector<1x128xbf16>
    %c1_222 = arith.constant 1 : index
    %c384_223 = arith.constant 384 : index
    %253 = vector.load %arg19[%c1_222, %c384_223] : memref<2x1024xbf16, #tpu.memory_space<vmem>>, vector<1x128xbf16>
    tpu.vector_store %arg19[%c1_222, %c384_223], %252 {strides = array<i32>} : memref<2x1024xbf16, #tpu.memory_space<vmem>>, vector<1x128xbf16>,
    %254 = vector.extract_strided_slice %229 {offsets = [12, 0], sizes = [1, 128], strides = [1, 1]} : vector<16x128xbf16> to vector<1x128xbf16>
    %c1_224 = arith.constant 1 : index
    %c512_225 = arith.constant 512 : index
    %255 = vector.load %arg19[%c1_224, %c512_225] : memref<2x1024xbf16, #tpu.memory_space<vmem>>, vector<1x128xbf16>
    tpu.vector_store %arg19[%c1_224, %c512_225], %254 {strides = array<i32>} : memref<2x1024xbf16, #tpu.memory_space<vmem>>, vector<1x128xbf16>,
    %256 = vector.extract_strided_slice %229 {offsets = [13, 0], sizes = [1, 128], strides = [1, 1]} : vector<16x128xbf16> to vector<1x128xbf16>
    %c1_226 = arith.constant 1 : index
    %c640_227 = arith.constant 640 : index
    %257 = vector.load %arg19[%c1_226, %c640_227] : memref<2x1024xbf16, #tpu.memory_space<vmem>>, vector<1x128xbf16>
    tpu.vector_store %arg19[%c1_226, %c640_227], %256 {strides = array<i32>} : memref<2x1024xbf16, #tpu.memory_space<vmem>>, vector<1x128xbf16>,
    %258 = vector.extract_strided_slice %229 {offsets = [14, 0], sizes = [1, 128], strides = [1, 1]} : vector<16x128xbf16> to vector<1x128xbf16>
    %c1_228 = arith.constant 1 : index
    %c768_229 = arith.constant 768 : index
    %259 = vector.load %arg19[%c1_228, %c768_229] : memref<2x1024xbf16, #tpu.memory_space<vmem>>, vector<1x128xbf16>
    tpu.vector_store %arg19[%c1_228, %c768_229], %258 {strides = array<i32>} : memref<2x1024xbf16, #tpu.memory_space<vmem>>, vector<1x128xbf16>,
    %260 = vector.extract_strided_slice %229 {offsets = [15, 0], sizes = [1, 128], strides = [1, 1]} : vector<16x128xbf16> to vector<1x128xbf16>
    %c1_230 = arith.constant 1 : index
    %c896_231 = arith.constant 896 : index
    %261 = vector.load %arg19[%c1_230, %c896_231] : memref<2x1024xbf16, #tpu.memory_space<vmem>>, vector<1x128xbf16>
    tpu.vector_store %arg19[%c1_230, %c896_231], %260 {strides = array<i32>} : memref<2x1024xbf16, #tpu.memory_space<vmem>>, vector<1x128xbf16>,
    %c0_232 = arith.constant 0 : index
    %c0_233 = arith.constant 0 : index
    %262 = vector.load %arg19[%c0_232, %c0_233] : memref<2x1024xbf16, #tpu.memory_space<vmem>>, vector<2x1024xbf16>
    %c0_234 = arith.constant 0 : index
    %c0_235 = arith.constant 0 : index
    %263 = vector.load %arg9[%c0_234, %c0_235] : memref<1024x128xbf16, #tpu.memory_space<vmem>>, vector<1024x128xbf16>
    %cst_236 = arith.constant dense<0.000000e+00> : vector<2x128xf32>
    %264 = tpu.matmul %262, %263, %cst_236 {dimension_numbers = #tpu.dot_dimension_numbers<[1], [0], [0], [1], [0, 0, 1, 1], [], []>} : vector<2x1024xbf16>, vector<1024x128xbf16>, vector<2x128xf32> -> vector<2x128xf32>
    %c0_237 = arith.constant 0 : index
    %c0_238 = arith.constant 0 : index
    %265 = vector.load %arg10[%c0_237, %c0_238] : memref<1x128xf32, #tpu.memory_space<vmem>>, vector<1x128xf32>
    %266 = vector.broadcast %265 : vector<1x128xf32> to vector<2x128xf32>
    %267 = arith.addf %264, %266 : vector<2x128xf32>
    %cst_239 = arith.constant 0.000000e+00 : f32
    %268 = vector.broadcast %cst_239 : f32 to vector<2x128xf32>
    %269 = arith.cmpf ogt, %267, %268 : vector<2x128xf32>
    %cst_240 = arith.constant 0.00999999977 : f32
    %270 = vector.broadcast %cst_240 : f32 to vector<2x128xf32>
    %271 = arith.mulf %270, %267 : vector<2x128xf32>
    %272 = arith.select %269, %267, %271 : vector<2x128xi1>, vector<2x128xf32>
    %273 = arith.truncf %272 : vector<2x128xf32> to vector<2x128xbf16>
    %c0_241 = arith.constant 0 : index
    %c0_242 = arith.constant 0 : index
    %274 = vector.load %arg11[%c0_241, %c0_242] : memref<128x128xbf16, #tpu.memory_space<vmem>>, vector<128x128xbf16>
    %cst_243 = arith.constant dense<0.000000e+00> : vector<2x128xf32>
    %275 = tpu.matmul %273, %274, %cst_243 {dimension_numbers = #tpu.dot_dimension_numbers<[1], [0], [0], [1], [0, 0, 1, 1], [], []>} : vector<2x128xbf16>, vector<128x128xbf16>, vector<2x128xf32> -> vector<2x128xf32>
    %c0_244 = arith.constant 0 : index
    %c0_245 = arith.constant 0 : index
    %276 = vector.load %arg12[%c0_244, %c0_245] : memref<1x128xf32, #tpu.memory_space<vmem>>, vector<1x128xf32>
    %277 = vector.broadcast %276 : vector<1x128xf32> to vector<2x128xf32>
    %278 = arith.addf %275, %277 : vector<2x128xf32>
    %cst_246 = arith.constant 0.000000e+00 : f32
    %279 = vector.broadcast %cst_246 : f32 to vector<2x128xf32>
    %280 = arith.cmpf ogt, %278, %279 : vector<2x128xf32>
    %cst_247 = arith.constant 0.00999999977 : f32
    %281 = vector.broadcast %cst_247 : f32 to vector<2x128xf32>
    %282 = arith.mulf %281, %278 : vector<2x128xf32>
    %283 = arith.select %280, %278, %282 : vector<2x128xi1>, vector<2x128xf32>
    %284 = arith.truncf %283 : vector<2x128xf32> to vector<2x128xbf16>
    %c0_248 = arith.constant 0 : index
    %c0_249 = arith.constant 0 : index
    %285 = vector.load %arg13[%c0_248, %c0_249] : memref<128x128xbf16, #tpu.memory_space<vmem>>, vector<128x128xbf16>
    %cst_250 = arith.constant dense<0.000000e+00> : vector<2x128xf32>
    %286 = tpu.matmul %284, %285, %cst_250 {dimension_numbers = #tpu.dot_dimension_numbers<[1], [0], [0], [1], [0, 0, 1, 1], [], []>} : vector<2x128xbf16>, vector<128x128xbf16>, vector<2x128xf32> -> vector<2x128xf32>
    %c0_251 = arith.constant 0 : index
    %c0_252 = arith.constant 0 : index
    %287 = vector.load %arg14[%c0_251, %c0_252] : memref<1x128xf32, #tpu.memory_space<vmem>>, vector<1x128xf32>
    %288 = vector.broadcast %287 : vector<1x128xf32> to vector<2x128xf32>
    %289 = arith.addf %286, %288 : vector<2x128xf32>
    %290 = tpu.iota {dimensions = array<i32: 1>} : vector<2x128xi32>
    %c5_i32 = arith.constant 5 : i32
    %291 = vector.broadcast %c5_i32 : i32 to vector<2x128xi32>
    %292 = arith.cmpi slt, %290, %291 : vector<2x128xi32>
    %cst_253 = arith.constant -1.000000e+30 : f32
    %293 = vector.broadcast %cst_253 : f32 to vector<2x128xf32>
    %294 = arith.select %292, %289, %293 : vector<2x128xi1>, vector<2x128xf32>
    %cst_254 = arith.constant dense<0xFF800000> : vector<2xf32>
    %295 = vector.multi_reduction <maximumf>, %294, %cst_254 [1] : vector<2x128xf32> to vector<2xf32>
    %296 = vector.shape_cast %295 : vector<2xf32> to vector<2x1xf32>
    %297 = vector.broadcast %296 : vector<2x1xf32> to vector<2x128xf32>
    %298 = arith.subf %294, %297 : vector<2x128xf32>
    %299 = math.exp %298 : vector<2x128xf32>
    %cst_255 = arith.constant dense<0.000000e+00> : vector<2xf32>
    %300 = vector.multi_reduction <add>, %299, %cst_255 [1] : vector<2x128xf32> to vector<2xf32>
    %301 = vector.shape_cast %300 : vector<2xf32> to vector<2x1xf32>
    %302 = tpu.reciprocal %301 {approx = true} : vector<2x1xf32> -> vector<2x1xf32>
    %303 = arith.mulf %301, %302 : vector<2x1xf32>
    %cst_256 = arith.constant 2.000000e+00 : f32
    %304 = vector.broadcast %cst_256 : f32 to vector<2x1xf32>
    %305 = arith.subf %304, %303 : vector<2x1xf32>
    %306 = arith.mulf %302, %305 : vector<2x1xf32>
    %307 = vector.broadcast %306 : vector<2x1xf32> to vector<2x128xf32>
    %308 = arith.mulf %299, %307 : vector<2x128xf32>
    %c0_257 = arith.constant 0 : index
    %c0_258 = arith.constant 0 : index
    %309 = vector.load %arg15[%c0_257, %c0_258] : memref<2x128xf32, #tpu.memory_space<vmem>>, vector<2x128xf32>
    tpu.vector_store %arg15[%c0_257, %c0_258], %308 {strides = array<i32>} : memref<2x128xf32, #tpu.memory_space<vmem>>, vector<2x128xf32>,
    return
  }
}

</mosaic_0001>

<llo_original>
// kernel: forward.1
$region0: #{forward.1}
  #allocation0 [shape = 'u32[]', space=smem, size = 0x4, offset = 0x4, fixed_abs, tag = 'smem constant byte address 0x4 - core index']
  #allocation1 [shape = 'u32[72,128]{1,0:T(1,128)}', space=vmem, size = 0x9000, scoped, tag = 'internal scratch']
  #allocation2 [shape = 'f32[16,128]{1,0:T(8,128)}', space=vmem, size = 0x2000, scoped, tag = 'scratch operand']
  #allocation3 [shape = 'bf16[2,12,128]{2,1,0:T(8,128)(2,1)}', space=vmem, size = 0x2000, scoped, tag = 'scratch operand']
  #allocation4 [shape = 'f32[16,128]{1,0:T(8,128)}', space=vmem, size = 0x2000, scoped, tag = 'scratch operand']
  #allocation5 [shape = 'bf16[2,1024]{1,0:T(2,128)(2,1)}', space=vmem, size = 0x1000, scoped, tag = 'scratch operand']
  %s0 = inlined_call_operand.vmem [shape: bf16[2,2,10,128], index: 0, kind: input, shape index: {}]
  %s1 = inlined_call_operand.vmem [shape: bf16[5,128,128], index: 1, kind: input, shape index: {}]
  %s2 = inlined_call_operand.vmem [shape: f32[128,128], index: 2, kind: input, shape index: {}]
  %s3 = inlined_call_operand.vmem [shape: f32[1,128], index: 3, kind: input, shape index: {}]
  %s4 = inlined_call_operand.vmem [shape: f32[1,128], index: 4, kind: input, shape index: {}, may-alias: {4,8}]
  %s5 = inlined_call_operand.hbm [shape: bf16[5,128,128], index: 5, kind: input, shape index: {}]
  %s6 = inlined_call_operand.hbm [shape: f32[128,128], index: 6, kind: input, shape index: {}]
  %s7 = inlined_call_operand.vmem [shape: f32[1,128], index: 7, kind: input, shape index: {}]
  %s8 = inlined_call_operand.vmem [shape: f32[1,128], index: 8, kind: input, shape index: {}, may-alias: {4,8}]
  %s9 = inlined_call_operand.vmem [shape: bf16[1024,128], index: 9, kind: input, shape index: {}]
  %s10 = inlined_call_operand.vmem [shape: f32[1,128], index: 10, kind: input, shape index: {}]
  %s11 = inlined_call_operand.hbm [shape: bf16[128,128], index: 11, kind: input, shape index: {}]
  %s12 = inlined_call_operand.vmem [shape: f32[1,128], index: 12, kind: input, shape index: {}]
  %s13 = inlined_call_operand.hbm [shape: bf16[128,128], index: 13, kind: input, shape index: {}]
  %s14 = inlined_call_operand.vmem [shape: f32[1,128], index: 14, kind: input, shape index: {}]
  %s15 = inlined_call_operand.hbm [shape: f32[2,128], index: 15, kind: output, shape index: {}]
  %s16 = sld [smem:[#allocation0]]
  $region86: #{forward.1} parent=0
    _
  %s18 = ssub.s32 1, %s16
  %s19 = scalar_select 0, %s18, %s16
  $region1: #{forward.1} parent=0
    #allocation6 [shape = 'u8[163840]{0}', space=vmem, size = 0x28000, scoped, tag = 'input window, operand 5, single buffered']
    #allocation7 [shape = 's32[1]{0}', space=sflag, size = 0x4, scoped, tag = 'scoped memory for forward.1']
    #allocation8 [shape = 's32[1]{0}', space=sflag, size = 0x4, scoped, tag = 'scoped memory for forward.1']
    #allocation9 [shape = 'u8[65536]{0}', space=vmem, size = 0x10000, scoped, tag = 'input window, operand 6, single buffered']
    #allocation10 [shape = 's32[1]{0}', space=sflag, size = 0x4, scoped, tag = 'scoped memory for forward.1']
    #allocation11 [shape = 'u8[32768]{0}', space=vmem, size = 0x8000, scoped, tag = 'input window, operand 11, single buffered']
    #allocation12 [shape = 'u8[32768]{0}', space=vmem, size = 0x8000, scoped, tag = 'input window, operand 13, single buffered']
    #allocation13 [shape = 's32[1]{0}', space=sflag, size = 0x4, scoped, tag = 'scoped memory for forward.1']
    #allocation14 [shape = 'u8[1024]{0}', space=vmem, size = 0x400, scoped, tag = 'output window, operand 0, single buffered']
    %20 = vsyncpa [#allocation7], 0
    %21 = vsyncpa [#allocation10], 0
    %22 = vsyncpa [#allocation13], 0
    %23 = vsyncpa [#allocation8], 0
    // Predicated region
    $region2: #{forward.1} parent=1 // pred_check
      _
    $region3: #{forward.1} parent=1 // pred_check_branch
      %25 = sbr.rel (0) target = $region5
    $region4: #{forward.1} parent=1 // pred_region
      _
    $region5: #{forward.1} parent=1 // pred_fallthru
      _
    // Predicated region
    $region6: #{forward.1} parent=1 // pred_check
      _
    $region7: #{forward.1} parent=1 // pred_check_branch
      %27 = sbr.rel (0) target = $region9
    $region8: #{forward.1} parent=1 // pred_region
      _
    $region9: #{forward.1} parent=1 // pred_fallthru
      _
    // Predicated region
    $region10: #{forward.1} parent=1 // pred_check
      _
    $region11: #{forward.1} parent=1 // pred_check_branch
      %29 = sbr.rel (0) target = $region13
    $region12: #{forward.1} parent=1 // pred_region
      _
    $region13: #{forward.1} parent=1 // pred_fallthru
      _
    // Predicated region
    $region14: #{forward.1} parent=1 // pred_check
      _
    $region15: #{forward.1} parent=1 // pred_check_branch
      %31 = sbr.rel (0) target = $region17
    $region16: #{forward.1} parent=1 // pred_region
      _
    $region17: #{forward.1} parent=1 // pred_fallthru
      _
    // Predicated region
    $region18: #{forward.1} parent=1 // pred_check
      _
    $region19: #{forward.1} parent=1 // pred_check_branch
      %33 = sbr.rel (0) target = $region21
    $region20: #{forward.1} parent=1 // pred_region
      _
    $region21: #{forward.1} parent=1 // pred_fallthru
      _
    // Predicated region
    $region22: #{forward.1} parent=1 // pred_check
      _
    $region23: #{forward.1} parent=1 // pred_check_branch
      %35 = sbr.rel (0) target = $region25
    $region24: #{forward.1} parent=1 // pred_region
      %37 = vsyncadd [#allocation7], 0
      %s38 = sshll.u32 %s5, 4
      %s39 = int_to_ptr.hbm [resolvable:$true] %s38
      %s40 = sshll.u32 [#allocation6], 4
      %s41 = int_to_ptr.vmem [resolvable:$true] %s40
      %46 = dma.hbm_to_vmem [thread:$0]  %s39, 5120, %s41, [#allocation7], 64, 64, 4
    $region25: #{forward.1} parent=1 // pred_fallthru
      _
    // Predicated region
    $region26: #{forward.1} parent=1 // pred_check
      _
    $region27: #{forward.1} parent=1 // pred_check_branch
      %48 = sbr.rel (0) target = $region29
    $region28: #{forward.1} parent=1 // pred_region
      %50 = vsyncadd [#allocation10], 0
      %s51 = sshll.u32 %s6, 4
      %s52 = int_to_ptr.hbm [resolvable:$true] %s51
      %s53 = sshll.u32 [#allocation9], 4
      %s54 = int_to_ptr.vmem [resolvable:$true] %s53
      %59 = dma.hbm_to_vmem [thread:$0]  %s52, 2048, %s54, [#allocation10], 128, 128, 8
    $region29: #{forward.1} parent=1 // pred_fallthru
      _
    // Predicated region
    $region30: #{forward.1} parent=1 // pred_check
      _
    $region31: #{forward.1} parent=1 // pred_check_branch
      %61 = sbr.rel (0) target = $region33
    $region32: #{forward.1} parent=1 // pred_region
      _
    $region33: #{forward.1} parent=1 // pred_fallthru
      _
    // Predicated region
    $region34: #{forward.1} parent=1 // pred_check
      _
    $region35: #{forward.1} parent=1 // pred_check_branch
      %63 = sbr.rel (0) target = $region37
    $region36: #{forward.1} parent=1 // pred_region
      _
    $region37: #{forward.1} parent=1 // pred_fallthru
      _
    // Predicated region
    $region38: #{forward.1} parent=1 // pred_check
      _
    $region39: #{forward.1} parent=1 // pred_check_branch
      %65 = sbr.rel (0) target = $region41
    $region40: #{forward.1} parent=1 // pred_region
      _
    $region41: #{forward.1} parent=1 // pred_fallthru
      _
    // Predicated region
    $region42: #{forward.1} parent=1 // pred_check
      _
    $region43: #{forward.1} parent=1 // pred_check_branch
      %67 = sbr.rel (0) target = $region45
    $region44: #{forward.1} parent=1 // pred_region
      _
    $region45: #{forward.1} parent=1 // pred_fallthru
      _
    // Predicated region
    $region46: #{forward.1} parent=1 // pred_check
      _
    $region47: #{forward.1} parent=1 // pred_check_branch
      %69 = sbr.rel (0) target = $region49
    $region48: #{forward.1} parent=1 // pred_region
      %71 = vsyncadd [#allocation10], 0
      %s72 = sshll.u32 %s11, 4
      %s73 = int_to_ptr.hbm [resolvable:$true] %s72
      %s74 = sshll.u32 [#allocation11], 4
      %s75 = int_to_ptr.vmem [resolvable:$true] %s74
      %80 = dma.hbm_to_vmem [thread:$0]  %s73, 1024, %s75, [#allocation10], 64, 64, 4
    $region49: #{forward.1} parent=1 // pred_fallthru
      _
    // Predicated region
    $region50: #{forward.1} parent=1 // pred_check
      _
    $region51: #{forward.1} parent=1 // pred_check_branch
      %82 = sbr.rel (0) target = $region53
    $region52: #{forward.1} parent=1 // pred_region
      _
    $region53: #{forward.1} parent=1 // pred_fallthru
      _
    // Predicated region
    $region54: #{forward.1} parent=1 // pred_check
      _
    $region55: #{forward.1} parent=1 // pred_check_branch
      %84 = sbr.rel (0) target = $region57
    $region56: #{forward.1} parent=1 // pred_region
      %86 = vsyncadd [#allocation13], 0
      %s87 = sshll.u32 %s13, 4
      %s88 = int_to_ptr.hbm [resolvable:$true] %s87
      %s89 = sshll.u32 [#allocation12], 4
      %s90 = int_to_ptr.vmem [resolvable:$true] %s89
      %95 = dma.hbm_to_vmem [thread:$0]  %s88, 1024, %s90, [#allocation13], 64, 64, 4
    $region57: #{forward.1} parent=1 // pred_fallthru
      _
    // Predicated region
    $region58: #{forward.1} parent=1 // pred_check
      _
    $region59: #{forward.1} parent=1 // pred_check_branch
      %97 = sbr.rel (0) target = $region61
    $region60: #{forward.1} parent=1 // pred_region
      _
    $region61: #{forward.1} parent=1 // pred_fallthru
      _
    // Predicated region
    $region62: #{forward.1} parent=1 // pred_check
      _
    $region63: #{forward.1} parent=1 // pred_check_branch
      %99 = sbr.rel (0) target = $region65
    $region64: #{forward.1} parent=1 // pred_region
      %101 = dma.done [#allocation7], 5120
    $region65: #{forward.1} parent=1 // pred_fallthru
      _
    // Predicated region
    $region66: #{forward.1} parent=1 // pred_check
      _
    $region67: #{forward.1} parent=1 // pred_check_branch
      %103 = sbr.rel (0) target = $region69
    $region68: #{forward.1} parent=1 // pred_region
      %105 = dma.done [#allocation10], 2048
    $region69: #{forward.1} parent=1 // pred_fallthru
      _
    // Predicated region
    $region70: #{forward.1} parent=1 // pred_check
      _
    $region71: #{forward.1} parent=1 // pred_check_branch
      %107 = sbr.rel (0) target = $region73
    $region72: #{forward.1} parent=1 // pred_region
      %109 = dma.done [#allocation10], 1024
    $region73: #{forward.1} parent=1 // pred_fallthru
      _
    // Predicated region
    $region74: #{forward.1} parent=1 // pred_check
      _
    $region75: #{forward.1} parent=1 // pred_check_branch
      %111 = sbr.rel (0) target = $region77
    $region76: #{forward.1} parent=1 // pred_region
      %113 = dma.done [#allocation13], 1024
    $region77: #{forward.1} parent=1 // pred_fallthru
      _
    %v115 = vld [vmem:[%s0] sm:$0xf]
    %v116 = vld [vmem:[%s1] sm:$0xf]
    %v117 = vld [vmem:[%s1 + $0x4] sm:$0xf]
    %v118 = vld [vmem:[%s1 + $0x8] sm:$0xf]
    %v119 = vld [vmem:[%s1 + $0xc] sm:$0xf]
    %v120 = vld [vmem:[%s1 + $0x10] sm:$0xf]
    %v121 = vld [vmem:[%s1 + $0x14] sm:$0xf]
    %v122 = vld [vmem:[%s1 + $0x18] sm:$0xf]
    %v123 = vld [vmem:[%s1 + $0x1c] sm:$0xf]
    %v124 = vld [vmem:[%s1 + $0x20] sm:$0xf]
    %v125 = vld [vmem:[%s1 + $0x24] sm:$0xf]
    %v126 = vld [vmem:[%s1 + $0x28] sm:$0xf]
    %v127 = vld [vmem:[%s1 + $0x2c] sm:$0xf]
    %v128 = vld [vmem:[%s1 + $0x30] sm:$0xf]
    %v129 = vld [vmem:[%s1 + $0x34] sm:$0xf]
    %v130 = vld [vmem:[%s1 + $0x38] sm:$0xf]
    %v131 = vld [vmem:[%s1 + $0x3c] sm:$0xf]
    %s132 = scalar_lea.vmem %s0, 16
    %v133 = vld [vmem:[%s132] sm:$0xf]
    %s134 = scalar_lea.vmem %s1, 64
    %v135 = vld [vmem:[%s134] sm:$0xf]
    %v136 = vld [vmem:[%s134 + $0x4] sm:$0xf]
    %v137 = vld [vmem:[%s134 + $0x8] sm:$0xf]
    %v138 = vld [vmem:[%s134 + $0xc] sm:$0xf]
    %v139 = vld [vmem:[%s134 + $0x10] sm:$0xf]
    %v140 = vld [vmem:[%s134 + $0x14] sm:$0xf]
    %v141 = vld [vmem:[%s134 + $0x18] sm:$0xf]
    %v142 = vld [vmem:[%s134 + $0x1c] sm:$0xf]
    %v143 = vld [vmem:[%s134 + $0x20] sm:$0xf]
    %v144 = vld [vmem:[%s134 + $0x24] sm:$0xf]
    %v145 = vld [vmem:[%s134 + $0x28] sm:$0xf]
    %v146 = vld [vmem:[%s134 + $0x2c] sm:$0xf]
    %v147 = vld [vmem:[%s134 + $0x30] sm:$0xf]
    %v148 = vld [vmem:[%s134 + $0x34] sm:$0xf]
    %v149 = vld [vmem:[%s134 + $0x38] sm:$0xf]
    %v150 = vld [vmem:[%s134 + $0x3c] sm:$0xf]
    %v167 = vunpack.c.l.b16 %v135
    %v168 = vunpack.c.l.b16 %v136
    %v169 = vunpack.c.l.b16 %v137
    %v170 = vunpack.c.l.b16 %v138
    %v171 = vunpack.c.l.b16 %v139
    %v172 = vunpack.c.l.b16 %v140
    %v173 = vunpack.c.l.b16 %v141
    %v174 = vunpack.c.l.b16 %v142
    %v175 = vunpack.c.l.b16 %v143
    %v176 = vunpack.c.l.b16 %v144
    %v177 = vunpack.c.l.b16 %v145
    %v178 = vunpack.c.l.b16 %v146
    %v179 = vunpack.c.l.b16 %v147
    %v180 = vunpack.c.l.b16 %v148
    %v181 = vunpack.c.l.b16 %v149
    %v182 = vunpack.c.l.b16 %v150
    %v183 = vpack.c.b16 %v168, %v167
    %v184 = vpack.c.b16 %v170, %v169
    %v185 = vpack.c.b16 %v172, %v171
    %v186 = vpack.c.b16 %v174, %v173
    %v187 = vpack.c.b16 %v176, %v175
    %v188 = vpack.c.b16 %v178, %v177
    %v189 = vpack.c.b16 %v180, %v179
    %v190 = vpack.c.b16 %v182, %v181
    %199 = vmatpush.bf16.msra.mxu0 %v190
    %200 = vmatpush.bf16.msra.mxu0 %v189
    %201 = vmatpush.bf16.msra.mxu0 %v188
    %202 = vmatpush.bf16.msra.mxu0 %v187
    %203 = vmatpush.bf16.msra.mxu0 %v186
    %204 = vmatpush.bf16.msra.mxu0 %v185
    %205 = vmatpush.bf16.msra.mxu0 %v184
    %206 = vmatpush.bf16.msra.mxu0 %v183
    %207 = vmatmul.bf16.gmra.mxu0 %v133
    %v208 = vpop.f32.mrf.mxu0
    %v209 = vadd.f32 0.0, %v208
    %v210 = vpop.f32.mrf.mxu0
    %211 = vdwg.mxu0
    %v228 = vunpack.c.l.b16 %v116
    %v229 = vunpack.c.l.b16 %v117
    %v230 = vunpack.c.l.b16 %v118
    %v231 = vunpack.c.l.b16 %v119
    %v232 = vunpack.c.l.b16 %v120
    %v233 = vunpack.c.l.b16 %v121
    %v234 = vunpack.c.l.b16 %v122
    %v235 = vunpack.c.l.b16 %v123
    %v236 = vunpack.c.l.b16 %v124
    %v237 = vunpack.c.l.b16 %v125
    %v238 = vunpack.c.l.b16 %v126
    %v239 = vunpack.c.l.b16 %v127
    %v240 = vunpack.c.l.b16 %v128
    %v241 = vunpack.c.l.b16 %v129
    %v242 = vunpack.c.l.b16 %v130
    %v243 = vunpack.c.l.b16 %v131
    %v244 = vpack.c.b16 %v229, %v228
    %v245 = vpack.c.b16 %v231, %v230
    %v246 = vpack.c.b16 %v233, %v232
    %v247 = vpack.c.b16 %v235, %v234
    %v248 = vpack.c.b16 %v237, %v236
    %v249 = vpack.c.b16 %v239, %v238
    %v250 = vpack.c.b16 %v241, %v240
    %v251 = vpack.c.b16 %v243, %v242
    %260 = vmatpush.bf16.msra.mxu0 %v251
    %261 = vmatpush.bf16.msra.mxu0 %v250
    %262 = vmatpush.bf16.msra.mxu0 %v249
    %263 = vmatpush.bf16.msra.mxu0 %v248
    %264 = vmatpush.bf16.msra.mxu0 %v247
    %265 = vmatpush.bf16.msra.mxu0 %v246
    %266 = vmatpush.bf16.msra.mxu0 %v245
    %267 = vmatpush.bf16.msra.mxu0 %v244
    %268 = vmatmul.bf16.gmra.mxu0 %v115
    %v269 = vpop.f32.mrf.mxu0
    %v270 = vadd.f32 %v209, %v269
    %v271 = vpop.f32.mrf.mxu0
    %272 = vdwg.mxu0
    %v273 = vld [vmem:[%s0] sm:$0xf]
    %v274 = vld [vmem:[%s0 + $0x4] sm:$0x1]
    %s275 = scalar_lea.vmem %s1, 128
    %v276 = vld [vmem:[%s275] sm:$0xf]
    %v277 = vld [vmem:[%s275 + $0x4] sm:$0xf]
    %v278 = vld [vmem:[%s275 + $0x8] sm:$0xf]
    %v279 = vld [vmem:[%s275 + $0xc] sm:$0xf]
    %v280 = vld [vmem:[%s275 + $0x10] sm:$0xf]
    %v281 = vld [vmem:[%s275 + $0x14] sm:$0xf]
    %v282 = vld [vmem:[%s275 + $0x18] sm:$0xf]
    %v283 = vld [vmem:[%s275 + $0x1c] sm:$0xf]
    %v284 = vld [vmem:[%s275 + $0x20] sm:$0xf]
    %v285 = vld [vmem:[%s275 + $0x24] sm:$0xf]
    %v286 = vld [vmem:[%s275 + $0x28] sm:$0xf]
    %v287 = vld [vmem:[%s275 + $0x2c] sm:$0xf]
    %v288 = vld [vmem:[%s275 + $0x30] sm:$0xf]
    %v289 = vld [vmem:[%s275 + $0x34] sm:$0xf]
    %v290 = vld [vmem:[%s275 + $0x38] sm:$0xf]
    %v291 = vld [vmem:[%s275 + $0x3c] sm:$0xf]
    %v294 = vunpack.c.l.b16 %v273
    %v295 = vunpack.c.l.b16 %v274
    %v296 = vpack.c.b16 %v295, %v294
    %v298 = vshrl.u32 %v296, 16
    %v300 = vshll.u32 %v296, 16
    %v302 = vrot.slane %v300, 1
    %v303 = vor.u32 %v298, %v302
    %v321 = vunpack.c.l.b16 %v276
    %v322 = vunpack.c.l.b16 %v277
    %v323 = vunpack.c.l.b16 %v278
    %v324 = vunpack.c.l.b16 %v279
    %v325 = vunpack.c.l.b16 %v280
    %v326 = vunpack.c.l.b16 %v281
    %v327 = vunpack.c.l.b16 %v282
    %v328 = vunpack.c.l.b16 %v283
    %v329 = vunpack.c.l.b16 %v284
    %v330 = vunpack.c.l.b16 %v285
    %v331 = vunpack.c.l.b16 %v286
    %v332 = vunpack.c.l.b16 %v287
    %v333 = vunpack.c.l.b16 %v288
    %v334 = vunpack.c.l.b16 %v289
    %v335 = vunpack.c.l.b16 %v290
    %v336 = vunpack.c.l.b16 %v291
    %v337 = vpack.c.b16 %v322, %v321
    %v338 = vpack.c.b16 %v324, %v323
    %v339 = vpack.c.b16 %v326, %v325
    %v340 = vpack.c.b16 %v328, %v327
    %v341 = vpack.c.b16 %v330, %v329
    %v342 = vpack.c.b16 %v332, %v331
    %v343 = vpack.c.b16 %v334, %v333
    %v344 = vpack.c.b16 %v336, %v335
    %353 = vmatpush.bf16.msra.mxu0 %v344
    %354 = vmatpush.bf16.msra.mxu0 %v343
    %355 = vmatpush.bf16.msra.mxu0 %v342
    %356 = vmatpush.bf16.msra.mxu0 %v341
    %357 = vmatpush.bf16.msra.mxu0 %v340
    %358 = vmatpush.bf16.msra.mxu0 %v339
    %359 = vmatpush.bf16.msra.mxu0 %v338
    %360 = vmatpush.bf16.msra.mxu0 %v337
    %361 = vmatmul.bf16.gmra.mxu0 %v303
    %v362 = vpop.f32.mrf.mxu0
    %v363 = vadd.f32 0.0, %v362
    %v364 = vpop.f32.mrf.mxu0
    %365 = vdwg.mxu0
    %v366 = vadd.f32 %v270, %v363
    %v367 = vld [vmem:[%s132] sm:$0xf]
    %v368 = vld [vmem:[%s132 + $0x4] sm:$0x1]
    %s369 = scalar_lea.vmem %s1, 192
    %v370 = vld [vmem:[%s369] sm:$0xf]
    %v371 = vld [vmem:[%s369 + $0x4] sm:$0xf]
    %v372 = vld [vmem:[%s369 + $0x8] sm:$0xf]
    %v373 = vld [vmem:[%s369 + $0xc] sm:$0xf]
    %v374 = vld [vmem:[%s369 + $0x10] sm:$0xf]
    %v375 = vld [vmem:[%s369 + $0x14] sm:$0xf]
    %v376 = vld [vmem:[%s369 + $0x18] sm:$0xf]
    %v377 = vld [vmem:[%s369 + $0x1c] sm:$0xf]
    %v378 = vld [vmem:[%s369 + $0x20] sm:$0xf]
    %v379 = vld [vmem:[%s369 + $0x24] sm:$0xf]
    %v380 = vld [vmem:[%s369 + $0x28] sm:$0xf]
    %v381 = vld [vmem:[%s369 + $0x2c] sm:$0xf]
    %v382 = vld [vmem:[%s369 + $0x30] sm:$0xf]
    %v383 = vld [vmem:[%s369 + $0x34] sm:$0xf]
    %v384 = vld [vmem:[%s369 + $0x38] sm:$0xf]
    %v385 = vld [vmem:[%s369 + $0x3c] sm:$0xf]
    %v388 = vunpack.c.l.b16 %v367
    %v389 = vunpack.c.l.b16 %v368
    %v390 = vpack.c.b16 %v389, %v388
    %v392 = vshrl.u32 %v390, 16
    %v394 = vshll.u32 %v390, 16
    %v396 = vrot.slane %v394, 1
    %v397 = vor.u32 %v392, %v396
    %v415 = vunpack.c.l.b16 %v370
    %v416 = vunpack.c.l.b16 %v371
    %v417 = vunpack.c.l.b16 %v372
    %v418 = vunpack.c.l.b16 %v373
    %v419 = vunpack.c.l.b16 %v374
    %v420 = vunpack.c.l.b16 %v375
    %v421 = vunpack.c.l.b16 %v376
    %v422 = vunpack.c.l.b16 %v377
    %v423 = vunpack.c.l.b16 %v378
    %v424 = vunpack.c.l.b16 %v379
    %v425 = vunpack.c.l.b16 %v380
    %v426 = vunpack.c.l.b16 %v381
    %v427 = vunpack.c.l.b16 %v382
    %v428 = vunpack.c.l.b16 %v383
    %v429 = vunpack.c.l.b16 %v384
    %v430 = vunpack.c.l.b16 %v385
    %v431 = vpack.c.b16 %v416, %v415
    %v432 = vpack.c.b16 %v418, %v417
    %v433 = vpack.c.b16 %v420, %v419
    %v434 = vpack.c.b16 %v422, %v421
    %v435 = vpack.c.b16 %v424, %v423
    %v436 = vpack.c.b16 %v426, %v425
    %v437 = vpack.c.b16 %v428, %v427
    %v438 = vpack.c.b16 %v430, %v429
    %447 = vmatpush.bf16.msra.mxu0 %v438
    %448 = vmatpush.bf16.msra.mxu0 %v437
    %449 = vmatpush.bf16.msra.mxu0 %v436
    %450 = vmatpush.bf16.msra.mxu0 %v435
    %451 = vmatpush.bf16.msra.mxu0 %v434
    %452 = vmatpush.bf16.msra.mxu0 %v433
    %453 = vmatpush.bf16.msra.mxu0 %v432
    %454 = vmatpush.bf16.msra.mxu0 %v431
    %455 = vmatmul.bf16.gmra.mxu0 %v397
    %v456 = vpop.f32.mrf.mxu0
    %v457 = vadd.f32 0.0, %v456
    %v458 = vpop.f32.mrf.mxu0
    %459 = vdwg.mxu0
    %v460 = vadd.f32 %v366, %v457
    %v461 = vld [vmem:[%s0] sm:$0xe]
    %s462 = scalar_lea.vmem %s1, 256
    %v463 = vld [vmem:[%s462] sm:$0xf]
    %v464 = vld [vmem:[%s462 + $0x4] sm:$0xf]
    %v465 = vld [vmem:[%s462 + $0x8] sm:$0xf]
    %v466 = vld [vmem:[%s462 + $0xc] sm:$0xf]
    %v467 = vld [vmem:[%s462 + $0x10] sm:$0xf]
    %v468 = vld [vmem:[%s462 + $0x14] sm:$0xf]
    %v469 = vld [vmem:[%s462 + $0x18] sm:$0xf]
    %v470 = vld [vmem:[%s462 + $0x1c] sm:$0xf]
    %v471 = vld [vmem:[%s462 + $0x20] sm:$0xf]
    %v472 = vld [vmem:[%s462 + $0x24] sm:$0xf]
    %v473 = vld [vmem:[%s462 + $0x28] sm:$0xf]
    %v474 = vld [vmem:[%s462 + $0x2c] sm:$0xf]
    %v475 = vld [vmem:[%s462 + $0x30] sm:$0xf]
    %v476 = vld [vmem:[%s462 + $0x34] sm:$0xf]
    %v477 = vld [vmem:[%s462 + $0x38] sm:$0xf]
    %v478 = vld [vmem:[%s462 + $0x3c] sm:$0xf]
    %v480 = vunpack.c.l.b16 %v461
    %v481 = vpack.c.b16 %v295, %v480
    %v482 = vrot.slane %v481, 1
    %v500 = vunpack.c.l.b16 %v463
    %v501 = vunpack.c.l.b16 %v464
    %v502 = vunpack.c.l.b16 %v465
    %v503 = vunpack.c.l.b16 %v466
    %v504 = vunpack.c.l.b16 %v467
    %v505 = vunpack.c.l.b16 %v468
    %v506 = vunpack.c.l.b16 %v469
    %v507 = vunpack.c.l.b16 %v470
    %v508 = vunpack.c.l.b16 %v471
    %v509 = vunpack.c.l.b16 %v472
    %v510 = vunpack.c.l.b16 %v473
    %v511 = vunpack.c.l.b16 %v474
    %v512 = vunpack.c.l.b16 %v475
    %v513 = vunpack.c.l.b16 %v476
    %v514 = vunpack.c.l.b16 %v477
    %v515 = vunpack.c.l.b16 %v478
    %v516 = vpack.c.b16 %v501, %v500
    %v517 = vpack.c.b16 %v503, %v502
    %v518 = vpack.c.b16 %v505, %v504
    %v519 = vpack.c.b16 %v507, %v506
    %v520 = vpack.c.b16 %v509, %v508
    %v521 = vpack.c.b16 %v511, %v510
    %v522 = vpack.c.b16 %v513, %v512
    %v523 = vpack.c.b16 %v515, %v514
    %532 = vmatpush.bf16.msra.mxu0 %v523
    %533 = vmatpush.bf16.msra.mxu0 %v522
    %534 = vmatpush.bf16.msra.mxu0 %v521
    %535 = vmatpush.bf16.msra.mxu0 %v520
    %536 = vmatpush.bf16.msra.mxu0 %v519
    %537 = vmatpush.bf16.msra.mxu0 %v518
    %538 = vmatpush.bf16.msra.mxu0 %v517
    %539 = vmatpush.bf16.msra.mxu0 %v516
    %540 = vmatmul.bf16.gmra.mxu0 %v482
    %v541 = vpop.f32.mrf.mxu0
    %v542 = vadd.f32 0.0, %v541
    %v543 = vpop.f32.mrf.mxu0
    %544 = vdwg.mxu0
    %v545 = vadd.f32 %v460, %v542
    %546 = vst [vmem:[#allocation2] sm:$0xff] %v545
    %s547 = scalar_lea.vmem %s0, 8
    %v548 = vld [vmem:[%s547] sm:$0xf]
    %v549 = vld [vmem:[%s1] sm:$0xf]
    %v550 = vld [vmem:[%s1 + $0x4] sm:$0xf]
    %v551 = vld [vmem:[%s1 + $0x8] sm:$0xf]
    %v552 = vld [vmem:[%s1 + $0xc] sm:$0xf]
    %v553 = vld [vmem:[%s1 + $0x10] sm:$0xf]
    %v554 = vld [vmem:[%s1 + $0x14] sm:$0xf]
    %v555 = vld [vmem:[%s1 + $0x18] sm:$0xf]
    %v556 = vld [vmem:[%s1 + $0x1c] sm:$0xf]
    %v557 = vld [vmem:[%s1 + $0x20] sm:$0xf]
    %v558 = vld [vmem:[%s1 + $0x24] sm:$0xf]
    %v559 = vld [vmem:[%s1 + $0x28] sm:$0xf]
    %v560 = vld [vmem:[%s1 + $0x2c] sm:$0xf]
    %v561 = vld [vmem:[%s1 + $0x30] sm:$0xf]
    %v562 = vld [vmem:[%s1 + $0x34] sm:$0xf]
    %v563 = vld [vmem:[%s1 + $0x38] sm:$0xf]
    %v564 = vld [vmem:[%s1 + $0x3c] sm:$0xf]
    %s565 = scalar_lea.vmem %s0, 24
    %v566 = vld [vmem:[%s565] sm:$0xf]
    %v567 = vld [vmem:[%s134] sm:$0xf]
    %v568 = vld [vmem:[%s134 + $0x4] sm:$0xf]
    %v569 = vld [vmem:[%s134 + $0x8] sm:$0xf]
    %v570 = vld [vmem:[%s134 + $0xc] sm:$0xf]
    %v571 = vld [vmem:[%s134 + $0x10] sm:$0xf]
    %v572 = vld [vmem:[%s134 + $0x14] sm:$0xf]
    %v573 = vld [vmem:[%s134 + $0x18] sm:$0xf]
    %v574 = vld [vmem:[%s134 + $0x1c] sm:$0xf]
    %v575 = vld [vmem:[%s134 + $0x20] sm:$0xf]
    %v576 = vld [vmem:[%s134 + $0x24] sm:$0xf]
    %v577 = vld [vmem:[%s134 + $0x28] sm:$0xf]
    %v578 = vld [vmem:[%s134 + $0x2c] sm:$0xf]
    %v579 = vld [vmem:[%s134 + $0x30] sm:$0xf]
    %v580 = vld [vmem:[%s134 + $0x34] sm:$0xf]
    %v581 = vld [vmem:[%s134 + $0x38] sm:$0xf]
    %v582 = vld [vmem:[%s134 + $0x3c] sm:$0xf]
    %v599 = vunpack.c.l.b16 %v567
    %v600 = vunpack.c.l.b16 %v568
    %v601 = vunpack.c.l.b16 %v569
    %v602 = vunpack.c.l.b16 %v570
    %v603 = vunpack.c.l.b16 %v571
    %v604 = vunpack.c.l.b16 %v572
    %v605 = vunpack.c.l.b16 %v573
    %v606 = vunpack.c.l.b16 %v574
    %v607 = vunpack.c.l.b16 %v575
    %v608 = vunpack.c.l.b16 %v576
    %v609 = vunpack.c.l.b16 %v577
    %v610 = vunpack.c.l.b16 %v578
    %v611 = vunpack.c.l.b16 %v579
    %v612 = vunpack.c.l.b16 %v580
    %v613 = vunpack.c.l.b16 %v581
    %v614 = vunpack.c.l.b16 %v582
    %v615 = vpack.c.b16 %v600, %v599
    %v616 = vpack.c.b16 %v602, %v601
    %v617 = vpack.c.b16 %v604, %v603
    %v618 = vpack.c.b16 %v606, %v605
    %v619 = vpack.c.b16 %v608, %v607
    %v620 = vpack.c.b16 %v610, %v609
    %v621 = vpack.c.b16 %v612, %v611
    %v622 = vpack.c.b16 %v614, %v613
    %631 = vmatpush.bf16.msra.mxu0 %v622
    %632 = vmatpush.bf16.msra.mxu0 %v621
    %633 = vmatpush.bf16.msra.mxu0 %v620
    %634 = vmatpush.bf16.msra.mxu0 %v619
    %635 = vmatpush.bf16.msra.mxu0 %v618
    %636 = vmatpush.bf16.msra.mxu0 %v617
    %637 = vmatpush.bf16.msra.mxu0 %v616
    %638 = vmatpush.bf16.msra.mxu0 %v615
    %639 = vmatmul.bf16.gmra.mxu0 %v566
    %v640 = vpop.f32.mrf.mxu0
    %v641 = vadd.f32 0.0, %v640
    %v642 = vpop.f32.mrf.mxu0
    %643 = vdwg.mxu0
    %v660 = vunpack.c.l.b16 %v549
    %v661 = vunpack.c.l.b16 %v550
    %v662 = vunpack.c.l.b16 %v551
    %v663 = vunpack.c.l.b16 %v552
    %v664 = vunpack.c.l.b16 %v553
    %v665 = vunpack.c.l.b16 %v554
    %v666 = vunpack.c.l.b16 %v555
    %v667 = vunpack.c.l.b16 %v556
    %v668 = vunpack.c.l.b16 %v557
    %v669 = vunpack.c.l.b16 %v558
    %v670 = vunpack.c.l.b16 %v559
    %v671 = vunpack.c.l.b16 %v560
    %v672 = vunpack.c.l.b16 %v561
    %v673 = vunpack.c.l.b16 %v562
    %v674 = vunpack.c.l.b16 %v563
    %v675 = vunpack.c.l.b16 %v564
    %v676 = vpack.c.b16 %v661, %v660
    %v677 = vpack.c.b16 %v663, %v662
    %v678 = vpack.c.b16 %v665, %v664
    %v679 = vpack.c.b16 %v667, %v666
    %v680 = vpack.c.b16 %v669, %v668
    %v681 = vpack.c.b16 %v671, %v670
    %v682 = vpack.c.b16 %v673, %v672
    %v683 = vpack.c.b16 %v675, %v674
    %692 = vmatpush.bf16.msra.mxu0 %v683
    %693 = vmatpush.bf16.msra.mxu0 %v682
    %694 = vmatpush.bf16.msra.mxu0 %v681
    %695 = vmatpush.bf16.msra.mxu0 %v680
    %696 = vmatpush.bf16.msra.mxu0 %v679
    %697 = vmatpush.bf16.msra.mxu0 %v678
    %698 = vmatpush.bf16.msra.mxu0 %v677
    %699 = vmatpush.bf16.msra.mxu0 %v676
    %700 = vmatmul.bf16.gmra.mxu0 %v548
    %v701 = vpop.f32.mrf.mxu0
    %v702 = vadd.f32 %v641, %v701
    %v703 = vpop.f32.mrf.mxu0
    %704 = vdwg.mxu0
    %v705 = vld [vmem:[%s547] sm:$0xf]
    %v706 = vld [vmem:[%s547 + $0x4] sm:$0x1]
    %v707 = vld [vmem:[%s275] sm:$0xf]
    %v708 = vld [vmem:[%s275 + $0x4] sm:$0xf]
    %v709 = vld [vmem:[%s275 + $0x8] sm:$0xf]
    %v710 = vld [vmem:[%s275 + $0xc] sm:$0xf]
    %v711 = vld [vmem:[%s275 + $0x10] sm:$0xf]
    %v712 = vld [vmem:[%s275 + $0x14] sm:$0xf]
    %v713 = vld [vmem:[%s275 + $0x18] sm:$0xf]
    %v714 = vld [vmem:[%s275 + $0x1c] sm:$0xf]
    %v715 = vld [vmem:[%s275 + $0x20] sm:$0xf]
    %v716 = vld [vmem:[%s275 + $0x24] sm:$0xf]
    %v717 = vld [vmem:[%s275 + $0x28] sm:$0xf]
    %v718 = vld [vmem:[%s275 + $0x2c] sm:$0xf]
    %v719 = vld [vmem:[%s275 + $0x30] sm:$0xf]
    %v720 = vld [vmem:[%s275 + $0x34] sm:$0xf]
    %v721 = vld [vmem:[%s275 + $0x38] sm:$0xf]
    %v722 = vld [vmem:[%s275 + $0x3c] sm:$0xf]
    %v725 = vunpack.c.l.b16 %v705
    %v726 = vunpack.c.l.b16 %v706
    %v727 = vpack.c.b16 %v726, %v725
    %v729 = vshrl.u32 %v727, 16
    %v731 = vshll.u32 %v727, 16
    %v733 = vrot.slane %v731, 1
    %v734 = vor.u32 %v729, %v733
    %v752 = vunpack.c.l.b16 %v707
    %v753 = vunpack.c.l.b16 %v708
    %v754 = vunpack.c.l.b16 %v709
    %v755 = vunpack.c.l.b16 %v710
    %v756 = vunpack.c.l.b16 %v711
    %v757 = vunpack.c.l.b16 %v712
    %v758 = vunpack.c.l.b16 %v713
    %v759 = vunpack.c.l.b16 %v714
    %v760 = vunpack.c.l.b16 %v715
    %v761 = vunpack.c.l.b16 %v716
    %v762 = vunpack.c.l.b16 %v717
    %v763 = vunpack.c.l.b16 %v718
    %v764 = vunpack.c.l.b16 %v719
    %v765 = vunpack.c.l.b16 %v720
    %v766 = vunpack.c.l.b16 %v721
    %v767 = vunpack.c.l.b16 %v722
    %v768 = vpack.c.b16 %v753, %v752
    %v769 = vpack.c.b16 %v755, %v754
    %v770 = vpack.c.b16 %v757, %v756
    %v771 = vpack.c.b16 %v759, %v758
    %v772 = vpack.c.b16 %v761, %v760
    %v773 = vpack.c.b16 %v763, %v762
    %v774 = vpack.c.b16 %v765, %v764
    %v775 = vpack.c.b16 %v767, %v766
    %784 = vmatpush.bf16.msra.mxu0 %v775
    %785 = vmatpush.bf16.msra.mxu0 %v774
    %786 = vmatpush.bf16.msra.mxu0 %v773
    %787 = vmatpush.bf16.msra.mxu0 %v772
    %788 = vmatpush.bf16.msra.mxu0 %v771
    %789 = vmatpush.bf16.msra.mxu0 %v770
    %790 = vmatpush.bf16.msra.mxu0 %v769
    %791 = vmatpush.bf16.msra.mxu0 %v768
    %792 = vmatmul.bf16.gmra.mxu0 %v734
    %v793 = vpop.f32.mrf.mxu0
    %v794 = vadd.f32 0.0, %v793
    %v795 = vpop.f32.mrf.mxu0
    %796 = vdwg.mxu0
    %v797 = vadd.f32 %v702, %v794
    %v798 = vld [vmem:[%s565] sm:$0xf]
    %v799 = vld [vmem:[%s565 + $0x4] sm:$0x1]
    %v800 = vld [vmem:[%s369] sm:$0xf]
    %v801 = vld [vmem:[%s369 + $0x4] sm:$0xf]
    %v802 = vld [vmem:[%s369 + $0x8] sm:$0xf]
    %v803 = vld [vmem:[%s369 + $0xc] sm:$0xf]
    %v804 = vld [vmem:[%s369 + $0x10] sm:$0xf]
    %v805 = vld [vmem:[%s369 + $0x14] sm:$0xf]
    %v806 = vld [vmem:[%s369 + $0x18] sm:$0xf]
    %v807 = vld [vmem:[%s369 + $0x1c] sm:$0xf]
    %v808 = vld [vmem:[%s369 + $0x20] sm:$0xf]
    %v809 = vld [vmem:[%s369 + $0x24] sm:$0xf]
    %v810 = vld [vmem:[%s369 + $0x28] sm:$0xf]
    %v811 = vld [vmem:[%s369 + $0x2c] sm:$0xf]
    %v812 = vld [vmem:[%s369 + $0x30] sm:$0xf]
    %v813 = vld [vmem:[%s369 + $0x34] sm:$0xf]
    %v814 = vld [vmem:[%s369 + $0x38] sm:$0xf]
    %v815 = vld [vmem:[%s369 + $0x3c] sm:$0xf]
    %v818 = vunpack.c.l.b16 %v798
    %v819 = vunpack.c.l.b16 %v799
    %v820 = vpack.c.b16 %v819, %v818
    %v822 = vshrl.u32 %v820, 16
    %v824 = vshll.u32 %v820, 16
    %v826 = vrot.slane %v824, 1
    %v827 = vor.u32 %v822, %v826
    %v845 = vunpack.c.l.b16 %v800
    %v846 = vunpack.c.l.b16 %v801
    %v847 = vunpack.c.l.b16 %v802
    %v848 = vunpack.c.l.b16 %v803
    %v849 = vunpack.c.l.b16 %v804
    %v850 = vunpack.c.l.b16 %v805
    %v851 = vunpack.c.l.b16 %v806
    %v852 = vunpack.c.l.b16 %v807
    %v853 = vunpack.c.l.b16 %v808
    %v854 = vunpack.c.l.b16 %v809
    %v855 = vunpack.c.l.b16 %v810
    %v856 = vunpack.c.l.b16 %v811
    %v857 = vunpack.c.l.b16 %v812
    %v858 = vunpack.c.l.b16 %v813
    %v859 = vunpack.c.l.b16 %v814
    %v860 = vunpack.c.l.b16 %v815
    %v861 = vpack.c.b16 %v846, %v845
    %v862 = vpack.c.b16 %v848, %v847
    %v863 = vpack.c.b16 %v850, %v849
    %v864 = vpack.c.b16 %v852, %v851
    %v865 = vpack.c.b16 %v854, %v853
    %v866 = vpack.c.b16 %v856, %v855
    %v867 = vpack.c.b16 %v858, %v857
    %v868 = vpack.c.b16 %v860, %v859
    %877 = vmatpush.bf16.msra.mxu0 %v868
    %878 = vmatpush.bf16.msra.mxu0 %v867
    %879 = vmatpush.bf16.msra.mxu0 %v866
    %880 = vmatpush.bf16.msra.mxu0 %v865
    %881 = vmatpush.bf16.msra.mxu0 %v864
    %882 = vmatpush.bf16.msra.mxu0 %v863
    %883 = vmatpush.bf16.msra.mxu0 %v862
    %884 = vmatpush.bf16.msra.mxu0 %v861
    %885 = vmatmul.bf16.gmra.mxu0 %v827
    %v886 = vpop.f32.mrf.mxu0
    %v887 = vadd.f32 0.0, %v886
    %v888 = vpop.f32.mrf.mxu0
    %889 = vdwg.mxu0
    %v890 = vadd.f32 %v797, %v887
    %v891 = vld [vmem:[%s547] sm:$0xe]
    %v892 = vld [vmem:[%s462] sm:$0xf]
    %v893 = vld [vmem:[%s462 + $0x4] sm:$0xf]
    %v894 = vld [vmem:[%s462 + $0x8] sm:$0xf]
    %v895 = vld [vmem:[%s462 + $0xc] sm:$0xf]
    %v896 = vld [vmem:[%s462 + $0x10] sm:$0xf]
    %v897 = vld [vmem:[%s462 + $0x14] sm:$0xf]
    %v898 = vld [vmem:[%s462 + $0x18] sm:$0xf]
    %v899 = vld [vmem:[%s462 + $0x1c] sm:$0xf]
    %v900 = vld [vmem:[%s462 + $0x20] sm:$0xf]
    %v901 = vld [vmem:[%s462 + $0x24] sm:$0xf]
    %v902 = vld [vmem:[%s462 + $0x28] sm:$0xf]
    %v903 = vld [vmem:[%s462 + $0x2c] sm:$0xf]
    %v904 = vld [vmem:[%s462 + $0x30] sm:$0xf]
    %v905 = vld [vmem:[%s462 + $0x34] sm:$0xf]
    %v906 = vld [vmem:[%s462 + $0x38] sm:$0xf]
    %v907 = vld [vmem:[%s462 + $0x3c] sm:$0xf]
    %v909 = vunpack.c.l.b16 %v891
    %v910 = vpack.c.b16 %v726, %v909
    %v911 = vrot.slane %v910, 1
    %v929 = vunpack.c.l.b16 %v892
    %v930 = vunpack.c.l.b16 %v893
    %v931 = vunpack.c.l.b16 %v894
    %v932 = vunpack.c.l.b16 %v895
    %v933 = vunpack.c.l.b16 %v896
    %v934 = vunpack.c.l.b16 %v897
    %v935 = vunpack.c.l.b16 %v898
    %v936 = vunpack.c.l.b16 %v899
    %v937 = vunpack.c.l.b16 %v900
    %v938 = vunpack.c.l.b16 %v901
    %v939 = vunpack.c.l.b16 %v902
    %v940 = vunpack.c.l.b16 %v903
    %v941 = vunpack.c.l.b16 %v904
    %v942 = vunpack.c.l.b16 %v905
    %v943 = vunpack.c.l.b16 %v906
    %v944 = vunpack.c.l.b16 %v907
    %v945 = vpack.c.b16 %v930, %v929
    %v946 = vpack.c.b16 %v932, %v931
    %v947 = vpack.c.b16 %v934, %v933
    %v948 = vpack.c.b16 %v936, %v935
    %v949 = vpack.c.b16 %v938, %v937
    %v950 = vpack.c.b16 %v940, %v939
    %v951 = vpack.c.b16 %v942, %v941
    %v952 = vpack.c.b16 %v944, %v943
    %961 = vmatpush.bf16.msra.mxu0 %v952
    %962 = vmatpush.bf16.msra.mxu0 %v951
    %963 = vmatpush.bf16.msra.mxu0 %v950
    %964 = vmatpush.bf16.msra.mxu0 %v949
    %965 = vmatpush.bf16.msra.mxu0 %v948
    %966 = vmatpush.bf16.msra.mxu0 %v947
    %967 = vmatpush.bf16.msra.mxu0 %v946
    %968 = vmatpush.bf16.msra.mxu0 %v945
    %969 = vmatmul.bf16.gmra.mxu0 %v911
    %v970 = vpop.f32.mrf.mxu0
    %v971 = vadd.f32 0.0, %v970
    %v972 = vpop.f32.mrf.mxu0
    %973 = vdwg.mxu0
    %v974 = vadd.f32 %v890, %v971
    %975 = vst [vmem:[#allocation2 + $0x8] sm:$0xff] %v974
    %v976 = vld [vmem:[#allocation2] sm:$0xff]
    %v977 = vld [vmem:[#allocation2 + $0x8] sm:$0xff]
    %v978 = vadd.f32 %v976, %v977
    %v979 = vrot.slane %v978, 4
    %v980 = vadd.f32 %v978, %v979
    %v981 = vrot.slane %v980, 2
    %v982 = vadd.f32 %v980, %v981
    %v983 = vrot.slane %v982, 1
    %v984 = vadd.f32 %v982, %v983
    %v985 = vmul.f32 %v976, %v976
    %v986 = vmul.f32 %v977, %v977
    %v987 = vadd.f32 %v985, %v986
    %v988 = vrot.slane %v987, 4
    %v989 = vadd.f32 %v987, %v988
    %v990 = vrot.slane %v989, 2
    %v991 = vadd.f32 %v989, %v990
    %v992 = vrot.slane %v991, 1
    %v993 = vadd.f32 %v991, %v992
    %v994 = vld [vmem:[%s2] sm:$0xff]
    %v995 = vld [vmem:[%s2 + $0x8] sm:$0xff]
    %v996 = vld [vmem:[%s2 + $0x10] sm:$0xff]
    %v997 = vld [vmem:[%s2 + $0x18] sm:$0xff]
    %v998 = vld [vmem:[%s2 + $0x20] sm:$0xff]
    %v999 = vld [vmem:[%s2 + $0x28] sm:$0xff]
    %v1000 = vld [vmem:[%s2 + $0x30] sm:$0xff]
    %v1001 = vld [vmem:[%s2 + $0x38] sm:$0xff]
    %v1002 = vld [vmem:[%s2 + $0x40] sm:$0xff]
    %v1003 = vld [vmem:[%s2 + $0x48] sm:$0xff]
    %v1004 = vld [vmem:[%s2 + $0x50] sm:$0xff]
    %v1005 = vld [vmem:[%s2 + $0x58] sm:$0xff]
    %v1006 = vld [vmem:[%s2 + $0x60] sm:$0xff]
    %v1007 = vld [vmem:[%s2 + $0x68] sm:$0xff]
    %v1008 = vld [vmem:[%s2 + $0x70] sm:$0xff]
    %v1009 = vld [vmem:[%s2 + $0x78] sm:$0xff]
    %1010 = vmatpush.msra.mxu0 %v1009
    %1011 = vmatpush.msra.mxu0 %v1008
    %1012 = vmatpush.msra.mxu0 %v1007
    %1013 = vmatpush.msra.mxu0 %v1006
    %1014 = vmatpush.msra.mxu0 %v1005
    %1015 = vmatpush.msra.mxu0 %v1004
    %1016 = vmatpush.msra.mxu0 %v1003
    %1017 = vmatpush.msra.mxu0 %v1002
    %1018 = vmatpush.msra.mxu0 %v1001
    %1019 = vmatpush.msra.mxu0 %v1000
    %1020 = vmatpush.msra.mxu0 %v999
    %1021 = vmatpush.msra.mxu0 %v998
    %1022 = vmatpush.msra.mxu0 %v997
    %1023 = vmatpush.msra.mxu0 %v996
    %1024 = vmatpush.msra.mxu0 %v995
    %1025 = vmatpush.msra.mxu0 %v994
    %1026 = vmatmul.f32.gmra.mxu0 %v984
    %v1027 = vpop.f32.mrf.mxu0
    %v1028 = vadd.f32 0.0, %v1027
    %1029 = vdwg.mxu0
    %v1030 = vmul.f32 %v1028, 0.0078125
    %1031 = vmatpush.msra.mxu0 %v1009
    %1032 = vmatpush.msra.mxu0 %v1008
    %1033 = vmatpush.msra.mxu0 %v1007
    %1034 = vmatpush.msra.mxu0 %v1006
    %1035 = vmatpush.msra.mxu0 %v1005
    %1036 = vmatpush.msra.mxu0 %v1004
    %1037 = vmatpush.msra.mxu0 %v1003
    %1038 = vmatpush.msra.mxu0 %v1002
    %1039 = vmatpush.msra.mxu0 %v1001
    %1040 = vmatpush.msra.mxu0 %v1000
    %1041 = vmatpush.msra.mxu0 %v999
    %1042 = vmatpush.msra.mxu0 %v998
    %1043 = vmatpush.msra.mxu0 %v997
    %1044 = vmatpush.msra.mxu0 %v996
    %1045 = vmatpush.msra.mxu0 %v995
    %1046 = vmatpush.msra.mxu0 %v994
    %1047 = vmatmul.f32.gmra.mxu0 %v993
    %v1048 = vpop.f32.mrf.mxu0
    %v1049 = vadd.f32 0.0, %v1048
    %1050 = vdwg.mxu0
    %v1051 = vmul.f32 %v1049, 0.0078125
    %v1052 = vmul.f32 %v1030, %v1030
    %v1053 = vsub.f32 %v1051, %v1052
    %v1054 = vld [vmem:[%s3] sm:$0x1]
    %v1055 = vadd.f32 %v1053, 1e-05
    %v1056 = vrsqrt.pop %v1055
    %v1057 = vmul.f32 %v1056, %v1055
    %v1058 = vmul.f32 %v1057, %v1056
    %v1059 = vmul.f32 0.5, %v1058
    %v1060 = vsub.f32 1.5, %v1059
    %v1061 = vmul.f32 %v1056, %v1060
    %vm1062 = vweird.f32 %v1055
    %vm1063 = vweird.f32 %v1056
    %vm1064 = vmor %vm1062, %vm1063
    %v1065 = vsel %vm1064, %v1056, %v1061
    %v1066 = vmul.f32 %v1054, %v1065
    %v1067 = vld [vmem:[%s4] sm:$0x1]
    %v1068 = vmul.f32 %v1030, %v1066
    %v1069 = vsub.f32 %v1067, %v1068
    %v1071 = vperm.slane %v1066, 0
    %v1073 = vmul.f32 %v976, %v1071
    %v1074 = vmul.f32 %v977, %v1071
    %v1076 = vperm.slane %v1069, 0
    %v1078 = vadd.f32 %v1073, %v1076
    %v1079 = vadd.f32 %v1074, %v1076
    %vm1080 = vcmp.gt.f32.partialorder %v1078, 0.0
    %vm1081 = vcmp.gt.f32.partialorder %v1079, 0.0
    %v1082 = vmul.f32 %v1078, 0.01
    %v1083 = vmul.f32 %v1079, 0.01
    %v1084 = vsel %vm1080, %v1078, %v1082
    %v1085 = vsel %vm1081, %v1079, %v1083
    %1086 = vst [vmem:[#allocation3] sm:$0xf] 0
    %1087 = vst [vmem:[#allocation3 + $0x4] sm:$0x3] 0
    %1088 = vst [vmem:[#allocation3 + $0x8] sm:$0xf] 0
    %1089 = vst [vmem:[#allocation3 + $0xc] sm:$0x3] 0
    %v1090 = vpack.c.bf16 %v1084, %v1084
    %v1092 = vrot.slane %v1090, 7
    %v1093 = vrot.slane %v1092, 4
    %1096 = vst [vmem:[#allocation3] sm:$0xe] %v1092
    %1097 = vst [vmem:[#allocation3 + $0x4] sm:$0x1] %v1093
    %v1098 = vpack.c.bf16 %v1085, %v1085
    %v1100 = vrot.slane %v1098, 7
    %v1101 = vrot.slane %v1100, 4
    %s1104 = scalar_lea.vmem [#allocation3], 8
    %1105 = vst [vmem:[%s1104] sm:$0xe] %v1100
    %1106 = vst [vmem:[%s1104 + $0x4] sm:$0x1] %v1101
    %v1107 = vld [vmem:[#allocation3] sm:$0xf]
    %v1108 = vld [vmem:[#allocation6] sm:$0xf]
    %v1109 = vld [vmem:[#allocation6 + $0x4] sm:$0xf]
    %v1110 = vld [vmem:[#allocation6 + $0x8] sm:$0xf]
    %v1111 = vld [vmem:[#allocation6 + $0xc] sm:$0xf]
    %v1112 = vld [vmem:[#allocation6 + $0x10] sm:$0xf]
    %v1113 = vld [vmem:[#allocation6 + $0x14] sm:$0xf]
    %v1114 = vld [vmem:[#allocation6 + $0x18] sm:$0xf]
    %v1115 = vld [vmem:[#allocation6 + $0x1c] sm:$0xf]
    %v1116 = vld [vmem:[#allocation6 + $0x20] sm:$0xf]
    %v1117 = vld [vmem:[#allocation6 + $0x24] sm:$0xf]
    %v1118 = vld [vmem:[#allocation6 + $0x28] sm:$0xf]
    %v1119 = vld [vmem:[#allocation6 + $0x2c] sm:$0xf]
    %v1120 = vld [vmem:[#allocation6 + $0x30] sm:$0xf]
    %v1121 = vld [vmem:[#allocation6 + $0x34] sm:$0xf]
    %v1122 = vld [vmem:[#allocation6 + $0x38] sm:$0xf]
    %v1123 = vld [vmem:[#allocation6 + $0x3c] sm:$0xf]
    %v1124 = vld [vmem:[#allocation3 + $0x4] sm:$0x1]
    %s1125 = scalar_lea.vmem [#allocation6], 64
    %v1126 = vld [vmem:[%s1125] sm:$0xf]
    %v1127 = vld [vmem:[%s1125 + $0x4] sm:$0xf]
    %v1128 = vld [vmem:[%s1125 + $0x8] sm:$0xf]
    %v1129 = vld [vmem:[%s1125 + $0xc] sm:$0xf]
    %v1130 = vld [vmem:[%s1125 + $0x10] sm:$0xf]
    %v1131 = vld [vmem:[%s1125 + $0x14] sm:$0xf]
    %v1132 = vld [vmem:[%s1125 + $0x18] sm:$0xf]
    %v1133 = vld [vmem:[%s1125 + $0x1c] sm:$0xf]
    %v1134 = vld [vmem:[%s1125 + $0x20] sm:$0xf]
    %v1135 = vld [vmem:[%s1125 + $0x24] sm:$0xf]
    %v1136 = vld [vmem:[%s1125 + $0x28] sm:$0xf]
    %v1137 = vld [vmem:[%s1125 + $0x2c] sm:$0xf]
    %v1138 = vld [vmem:[%s1125 + $0x30] sm:$0xf]
    %v1139 = vld [vmem:[%s1125 + $0x34] sm:$0xf]
    %v1140 = vld [vmem:[%s1125 + $0x38] sm:$0xf]
    %v1141 = vld [vmem:[%s1125 + $0x3c] sm:$0xf]
    %v1144 = vunpack.c.l.b16 %v1107
    %v1145 = vunpack.c.l.b16 %v1124
    %v1146 = vpack.c.b16 %v1145, %v1144
    %v1148 = vshrl.u32 %v1146, 16
    %v1150 = vshll.u32 %v1146, 16
    %v1152 = vrot.slane %v1150, 1
    %v1153 = vor.u32 %v1148, %v1152
    %v1171 = vunpack.c.l.b16 %v1126
    %v1172 = vunpack.c.l.b16 %v1127
    %v1173 = vunpack.c.l.b16 %v1128
    %v1174 = vunpack.c.l.b16 %v1129
    %v1175 = vunpack.c.l.b16 %v1130
    %v1176 = vunpack.c.l.b16 %v1131
    %v1177 = vunpack.c.l.b16 %v1132
    %v1178 = vunpack.c.l.b16 %v1133
    %v1179 = vunpack.c.l.b16 %v1134
    %v1180 = vunpack.c.l.b16 %v1135
    %v1181 = vunpack.c.l.b16 %v1136
    %v1182 = vunpack.c.l.b16 %v1137
    %v1183 = vunpack.c.l.b16 %v1138
    %v1184 = vunpack.c.l.b16 %v1139
    %v1185 = vunpack.c.l.b16 %v1140
    %v1186 = vunpack.c.l.b16 %v1141
    %v1187 = vpack.c.b16 %v1172, %v1171
    %v1188 = vpack.c.b16 %v1174, %v1173
    %v1189 = vpack.c.b16 %v1176, %v1175
    %v1190 = vpack.c.b16 %v1178, %v1177
    %v1191 = vpack.c.b16 %v1180, %v1179
    %v1192 = vpack.c.b16 %v1182, %v1181
    %v1193 = vpack.c.b16 %v1184, %v1183
    %v1194 = vpack.c.b16 %v1186, %v1185
    %1203 = vmatpush.bf16.msra.mxu0 %v1194
    %1204 = vmatpush.bf16.msra.mxu0 %v1193
    %1205 = vmatpush.bf16.msra.mxu0 %v1192
    %1206 = vmatpush.bf16.msra.mxu0 %v1191
    %1207 = vmatpush.bf16.msra.mxu0 %v1190
    %1208 = vmatpush.bf16.msra.mxu0 %v1189
    %1209 = vmatpush.bf16.msra.mxu0 %v1188
    %1210 = vmatpush.bf16.msra.mxu0 %v1187
    %1211 = vmatmul.bf16.gmra.mxu0 %v1153
    %v1212 = vpop.f32.mrf.mxu0
    %v1213 = vadd.f32 0.0, %v1212
    %v1214 = vpop.f32.mrf.mxu0
    %1215 = vdwg.mxu0
    %v1232 = vunpack.c.l.b16 %v1108
    %v1233 = vunpack.c.l.b16 %v1109
    %v1234 = vunpack.c.l.b16 %v1110
    %v1235 = vunpack.c.l.b16 %v1111
    %v1236 = vunpack.c.l.b16 %v1112
    %v1237 = vunpack.c.l.b16 %v1113
    %v1238 = vunpack.c.l.b16 %v1114
    %v1239 = vunpack.c.l.b16 %v1115
    %v1240 = vunpack.c.l.b16 %v1116
    %v1241 = vunpack.c.l.b16 %v1117
    %v1242 = vunpack.c.l.b16 %v1118
    %v1243 = vunpack.c.l.b16 %v1119
    %v1244 = vunpack.c.l.b16 %v1120
    %v1245 = vunpack.c.l.b16 %v1121
    %v1246 = vunpack.c.l.b16 %v1122
    %v1247 = vunpack.c.l.b16 %v1123
    %v1248 = vpack.c.b16 %v1233, %v1232
    %v1249 = vpack.c.b16 %v1235, %v1234
    %v1250 = vpack.c.b16 %v1237, %v1236
    %v1251 = vpack.c.b16 %v1239, %v1238
    %v1252 = vpack.c.b16 %v1241, %v1240
    %v1253 = vpack.c.b16 %v1243, %v1242
    %v1254 = vpack.c.b16 %v1245, %v1244
    %v1255 = vpack.c.b16 %v1247, %v1246
    %1264 = vmatpush.bf16.msra.mxu0 %v1255
    %1265 = vmatpush.bf16.msra.mxu0 %v1254
    %1266 = vmatpush.bf16.msra.mxu0 %v1253
    %1267 = vmatpush.bf16.msra.mxu0 %v1252
    %1268 = vmatpush.bf16.msra.mxu0 %v1251
    %1269 = vmatpush.bf16.msra.mxu0 %v1250
    %1270 = vmatpush.bf16.msra.mxu0 %v1249
    %1271 = vmatpush.bf16.msra.mxu0 %v1248
    %1272 = vmatmul.bf16.gmra.mxu0 %v1107
    %v1273 = vpop.f32.mrf.mxu0
    %v1274 = vadd.f32 %v1213, %v1273
    %v1275 = vpop.f32.mrf.mxu0
    %1276 = vdwg.mxu0
    %v1277 = vld [vmem:[#allocation3] sm:$0xe]
    %s1278 = scalar_lea.vmem [#allocation6], 128
    %v1279 = vld [vmem:[%s1278] sm:$0xf]
    %v1280 = vld [vmem:[%s1278 + $0x4] sm:$0xf]
    %v1281 = vld [vmem:[%s1278 + $0x8] sm:$0xf]
    %v1282 = vld [vmem:[%s1278 + $0xc] sm:$0xf]
    %v1283 = vld [vmem:[%s1278 + $0x10] sm:$0xf]
    %v1284 = vld [vmem:[%s1278 + $0x14] sm:$0xf]
    %v1285 = vld [vmem:[%s1278 + $0x18] sm:$0xf]
    %v1286 = vld [vmem:[%s1278 + $0x1c] sm:$0xf]
    %v1287 = vld [vmem:[%s1278 + $0x20] sm:$0xf]
    %v1288 = vld [vmem:[%s1278 + $0x24] sm:$0xf]
    %v1289 = vld [vmem:[%s1278 + $0x28] sm:$0xf]
    %v1290 = vld [vmem:[%s1278 + $0x2c] sm:$0xf]
    %v1291 = vld [vmem:[%s1278 + $0x30] sm:$0xf]
    %v1292 = vld [vmem:[%s1278 + $0x34] sm:$0xf]
    %v1293 = vld [vmem:[%s1278 + $0x38] sm:$0xf]
    %v1294 = vld [vmem:[%s1278 + $0x3c] sm:$0xf]
    %v1296 = vunpack.c.l.b16 %v1277
    %v1297 = vpack.c.b16 %v1145, %v1296
    %v1298 = vrot.slane %v1297, 1
    %v1316 = vunpack.c.l.b16 %v1279
    %v1317 = vunpack.c.l.b16 %v1280
    %v1318 = vunpack.c.l.b16 %v1281
    %v1319 = vunpack.c.l.b16 %v1282
    %v1320 = vunpack.c.l.b16 %v1283
    %v1321 = vunpack.c.l.b16 %v1284
    %v1322 = vunpack.c.l.b16 %v1285
    %v1323 = vunpack.c.l.b16 %v1286
    %v1324 = vunpack.c.l.b16 %v1287
    %v1325 = vunpack.c.l.b16 %v1288
    %v1326 = vunpack.c.l.b16 %v1289
    %v1327 = vunpack.c.l.b16 %v1290
    %v1328 = vunpack.c.l.b16 %v1291
    %v1329 = vunpack.c.l.b16 %v1292
    %v1330 = vunpack.c.l.b16 %v1293
    %v1331 = vunpack.c.l.b16 %v1294
    %v1332 = vpack.c.b16 %v1317, %v1316
    %v1333 = vpack.c.b16 %v1319, %v1318
    %v1334 = vpack.c.b16 %v1321, %v1320
    %v1335 = vpack.c.b16 %v1323, %v1322
    %v1336 = vpack.c.b16 %v1325, %v1324
    %v1337 = vpack.c.b16 %v1327, %v1326
    %v1338 = vpack.c.b16 %v1329, %v1328
    %v1339 = vpack.c.b16 %v1331, %v1330
    %1348 = vmatpush.bf16.msra.mxu0 %v1339
    %1349 = vmatpush.bf16.msra.mxu0 %v1338
    %1350 = vmatpush.bf16.msra.mxu0 %v1337
    %1351 = vmatpush.bf16.msra.mxu0 %v1336
    %1352 = vmatpush.bf16.msra.mxu0 %v1335
    %1353 = vmatpush.bf16.msra.mxu0 %v1334
    %1354 = vmatpush.bf16.msra.mxu0 %v1333
    %1355 = vmatpush.bf16.msra.mxu0 %v1332
    %1356 = vmatmul.bf16.gmra.mxu0 %v1298
    %v1357 = vpop.f32.mrf.mxu0
    %v1358 = vadd.f32 0.0, %v1357
    %v1359 = vpop.f32.mrf.mxu0
    %1360 = vdwg.mxu0
    %v1361 = vadd.f32 %v1274, %v1358
    %v1362 = vld [vmem:[#allocation3 + $0x4] sm:$0x3]
    %s1363 = scalar_lea.vmem [#allocation6], 192
    %v1364 = vld [vmem:[%s1363] sm:$0xf]
    %v1365 = vld [vmem:[%s1363 + $0x4] sm:$0xf]
    %v1366 = vld [vmem:[%s1363 + $0x8] sm:$0xf]
    %v1367 = vld [vmem:[%s1363 + $0xc] sm:$0xf]
    %v1368 = vld [vmem:[%s1363 + $0x10] sm:$0xf]
    %v1369 = vld [vmem:[%s1363 + $0x14] sm:$0xf]
    %v1370 = vld [vmem:[%s1363 + $0x18] sm:$0xf]
    %v1371 = vld [vmem:[%s1363 + $0x1c] sm:$0xf]
    %v1372 = vld [vmem:[%s1363 + $0x20] sm:$0xf]
    %v1373 = vld [vmem:[%s1363 + $0x24] sm:$0xf]
    %v1374 = vld [vmem:[%s1363 + $0x28] sm:$0xf]
    %v1375 = vld [vmem:[%s1363 + $0x2c] sm:$0xf]
    %v1376 = vld [vmem:[%s1363 + $0x30] sm:$0xf]
    %v1377 = vld [vmem:[%s1363 + $0x34] sm:$0xf]
    %v1378 = vld [vmem:[%s1363 + $0x38] sm:$0xf]
    %v1379 = vld [vmem:[%s1363 + $0x3c] sm:$0xf]
    %v1381 = vunpack.c.l.b16 %v1362
    %v1382 = vpack.c.b16 %v1381, %v1296
    %v1384 = vshrl.u32 %v1382, 16
    %v1386 = vrot.slane %v1384, 1
    %v1387 = vshll.u32 %v1382, 16
    %v1389 = vrot.slane %v1387, 2
    %v1390 = vor.u32 %v1386, %v1389
    %v1408 = vunpack.c.l.b16 %v1364
    %v1409 = vunpack.c.l.b16 %v1365
    %v1410 = vunpack.c.l.b16 %v1366
    %v1411 = vunpack.c.l.b16 %v1367
    %v1412 = vunpack.c.l.b16 %v1368
    %v1413 = vunpack.c.l.b16 %v1369
    %v1414 = vunpack.c.l.b16 %v1370
    %v1415 = vunpack.c.l.b16 %v1371
    %v1416 = vunpack.c.l.b16 %v1372
    %v1417 = vunpack.c.l.b16 %v1373
    %v1418 = vunpack.c.l.b16 %v1374
    %v1419 = vunpack.c.l.b16 %v1375
    %v1420 = vunpack.c.l.b16 %v1376
    %v1421 = vunpack.c.l.b16 %v1377
    %v1422 = vunpack.c.l.b16 %v1378
    %v1423 = vunpack.c.l.b16 %v1379
    %v1424 = vpack.c.b16 %v1409, %v1408
    %v1425 = vpack.c.b16 %v1411, %v1410
    %v1426 = vpack.c.b16 %v1413, %v1412
    %v1427 = vpack.c.b16 %v1415, %v1414
    %v1428 = vpack.c.b16 %v1417, %v1416
    %v1429 = vpack.c.b16 %v1419, %v1418
    %v1430 = vpack.c.b16 %v1421, %v1420
    %v1431 = vpack.c.b16 %v1423, %v1422
    %1440 = vmatpush.bf16.msra.mxu0 %v1431
    %1441 = vmatpush.bf16.msra.mxu0 %v1430
    %1442 = vmatpush.bf16.msra.mxu0 %v1429
    %1443 = vmatpush.bf16.msra.mxu0 %v1428
    %1444 = vmatpush.bf16.msra.mxu0 %v1427
    %1445 = vmatpush.bf16.msra.mxu0 %v1426
    %1446 = vmatpush.bf16.msra.mxu0 %v1425
    %1447 = vmatpush.bf16.msra.mxu0 %v1424
    %1448 = vmatmul.bf16.gmra.mxu0 %v1390
    %v1449 = vpop.f32.mrf.mxu0
    %v1450 = vadd.f32 0.0, %v1449
    %v1451 = vpop.f32.mrf.mxu0
    %1452 = vdwg.mxu0
    %v1453 = vadd.f32 %v1361, %v1450
    %v1454 = vld [vmem:[#allocation3] sm:$0xc]
    %s1455 = scalar_lea.vmem [#allocation6], 256
    %v1456 = vld [vmem:[%s1455] sm:$0xf]
    %v1457 = vld [vmem:[%s1455 + $0x4] sm:$0xf]
    %v1458 = vld [vmem:[%s1455 + $0x8] sm:$0xf]
    %v1459 = vld [vmem:[%s1455 + $0xc] sm:$0xf]
    %v1460 = vld [vmem:[%s1455 + $0x10] sm:$0xf]
    %v1461 = vld [vmem:[%s1455 + $0x14] sm:$0xf]
    %v1462 = vld [vmem:[%s1455 + $0x18] sm:$0xf]
    %v1463 = vld [vmem:[%s1455 + $0x1c] sm:$0xf]
    %v1464 = vld [vmem:[%s1455 + $0x20] sm:$0xf]
    %v1465 = vld [vmem:[%s1455 + $0x24] sm:$0xf]
    %v1466 = vld [vmem:[%s1455 + $0x28] sm:$0xf]
    %v1467 = vld [vmem:[%s1455 + $0x2c] sm:$0xf]
    %v1468 = vld [vmem:[%s1455 + $0x30] sm:$0xf]
    %v1469 = vld [vmem:[%s1455 + $0x34] sm:$0xf]
    %v1470 = vld [vmem:[%s1455 + $0x38] sm:$0xf]
    %v1471 = vld [vmem:[%s1455 + $0x3c] sm:$0xf]
    %v1473 = vunpack.c.l.b16 %v1454
    %v1474 = vpack.c.b16 %v1381, %v1473
    %v1475 = vrot.slane %v1474, 2
    %v1493 = vunpack.c.l.b16 %v1456
    %v1494 = vunpack.c.l.b16 %v1457
    %v1495 = vunpack.c.l.b16 %v1458
    %v1496 = vunpack.c.l.b16 %v1459
    %v1497 = vunpack.c.l.b16 %v1460
    %v1498 = vunpack.c.l.b16 %v1461
    %v1499 = vunpack.c.l.b16 %v1462
    %v1500 = vunpack.c.l.b16 %v1463
    %v1501 = vunpack.c.l.b16 %v1464
    %v1502 = vunpack.c.l.b16 %v1465
    %v1503 = vunpack.c.l.b16 %v1466
    %v1504 = vunpack.c.l.b16 %v1467
    %v1505 = vunpack.c.l.b16 %v1468
    %v1506 = vunpack.c.l.b16 %v1469
    %v1507 = vunpack.c.l.b16 %v1470
    %v1508 = vunpack.c.l.b16 %v1471
    %v1509 = vpack.c.b16 %v1494, %v1493
    %v1510 = vpack.c.b16 %v1496, %v1495
    %v1511 = vpack.c.b16 %v1498, %v1497
    %v1512 = vpack.c.b16 %v1500, %v1499
    %v1513 = vpack.c.b16 %v1502, %v1501
    %v1514 = vpack.c.b16 %v1504, %v1503
    %v1515 = vpack.c.b16 %v1506, %v1505
    %v1516 = vpack.c.b16 %v1508, %v1507
    %1525 = vmatpush.bf16.msra.mxu0 %v1516
    %1526 = vmatpush.bf16.msra.mxu0 %v1515
    %1527 = vmatpush.bf16.msra.mxu0 %v1514
    %1528 = vmatpush.bf16.msra.mxu0 %v1513
    %1529 = vmatpush.bf16.msra.mxu0 %v1512
    %1530 = vmatpush.bf16.msra.mxu0 %v1511
    %1531 = vmatpush.bf16.msra.mxu0 %v1510
    %1532 = vmatpush.bf16.msra.mxu0 %v1509
    %1533 = vmatmul.bf16.gmra.mxu0 %v1475
    %v1534 = vpop.f32.mrf.mxu0
    %v1535 = vadd.f32 0.0, %v1534
    %v1536 = vpop.f32.mrf.mxu0
    %1537 = vdwg.mxu0
    %v1538 = vadd.f32 %v1453, %v1535
    %1539 = vst [vmem:[#allocation4] sm:$0xff] %v1538
    %v1540 = vld [vmem:[%s1104] sm:$0xf]
    %v1541 = vld [vmem:[#allocation6] sm:$0xf]
    %v1542 = vld [vmem:[#allocation6 + $0x4] sm:$0xf]
    %v1543 = vld [vmem:[#allocation6 + $0x8] sm:$0xf]
    %v1544 = vld [vmem:[#allocation6 + $0xc] sm:$0xf]
    %v1545 = vld [vmem:[#allocation6 + $0x10] sm:$0xf]
    %v1546 = vld [vmem:[#allocation6 + $0x14] sm:$0xf]
    %v1547 = vld [vmem:[#allocation6 + $0x18] sm:$0xf]
    %v1548 = vld [vmem:[#allocation6 + $0x1c] sm:$0xf]
    %v1549 = vld [vmem:[#allocation6 + $0x20] sm:$0xf]
    %v1550 = vld [vmem:[#allocation6 + $0x24] sm:$0xf]
    %v1551 = vld [vmem:[#allocation6 + $0x28] sm:$0xf]
    %v1552 = vld [vmem:[#allocation6 + $0x2c] sm:$0xf]
    %v1553 = vld [vmem:[#allocation6 + $0x30] sm:$0xf]
    %v1554 = vld [vmem:[#allocation6 + $0x34] sm:$0xf]
    %v1555 = vld [vmem:[#allocation6 + $0x38] sm:$0xf]
    %v1556 = vld [vmem:[#allocation6 + $0x3c] sm:$0xf]
    %v1557 = vld [vmem:[%s1104 + $0x4] sm:$0x1]
    %v1558 = vld [vmem:[%s1125] sm:$0xf]
    %v1559 = vld [vmem:[%s1125 + $0x4] sm:$0xf]
    %v1560 = vld [vmem:[%s1125 + $0x8] sm:$0xf]
    %v1561 = vld [vmem:[%s1125 + $0xc] sm:$0xf]
    %v1562 = vld [vmem:[%s1125 + $0x10] sm:$0xf]
    %v1563 = vld [vmem:[%s1125 + $0x14] sm:$0xf]
    %v1564 = vld [vmem:[%s1125 + $0x18] sm:$0xf]
    %v1565 = vld [vmem:[%s1125 + $0x1c] sm:$0xf]
    %v1566 = vld [vmem:[%s1125 + $0x20] sm:$0xf]
    %v1567 = vld [vmem:[%s1125 + $0x24] sm:$0xf]
    %v1568 = vld [vmem:[%s1125 + $0x28] sm:$0xf]
    %v1569 = vld [vmem:[%s1125 + $0x2c] sm:$0xf]
    %v1570 = vld [vmem:[%s1125 + $0x30] sm:$0xf]
    %v1571 = vld [vmem:[%s1125 + $0x34] sm:$0xf]
    %v1572 = vld [vmem:[%s1125 + $0x38] sm:$0xf]
    %v1573 = vld [vmem:[%s1125 + $0x3c] sm:$0xf]
    %v1576 = vunpack.c.l.b16 %v1540
    %v1577 = vunpack.c.l.b16 %v1557
    %v1578 = vpack.c.b16 %v1577, %v1576
    %v1580 = vshrl.u32 %v1578, 16
    %v1582 = vshll.u32 %v1578, 16
    %v1584 = vrot.slane %v1582, 1
    %v1585 = vor.u32 %v1580, %v1584
    %v1603 = vunpack.c.l.b16 %v1558
    %v1604 = vunpack.c.l.b16 %v1559
    %v1605 = vunpack.c.l.b16 %v1560
    %v1606 = vunpack.c.l.b16 %v1561
    %v1607 = vunpack.c.l.b16 %v1562
    %v1608 = vunpack.c.l.b16 %v1563
    %v1609 = vunpack.c.l.b16 %v1564
    %v1610 = vunpack.c.l.b16 %v1565
    %v1611 = vunpack.c.l.b16 %v1566
    %v1612 = vunpack.c.l.b16 %v1567
    %v1613 = vunpack.c.l.b16 %v1568
    %v1614 = vunpack.c.l.b16 %v1569
    %v1615 = vunpack.c.l.b16 %v1570
    %v1616 = vunpack.c.l.b16 %v1571
    %v1617 = vunpack.c.l.b16 %v1572
    %v1618 = vunpack.c.l.b16 %v1573
    %v1619 = vpack.c.b16 %v1604, %v1603
    %v1620 = vpack.c.b16 %v1606, %v1605
    %v1621 = vpack.c.b16 %v1608, %v1607
    %v1622 = vpack.c.b16 %v1610, %v1609
    %v1623 = vpack.c.b16 %v1612, %v1611
    %v1624 = vpack.c.b16 %v1614, %v1613
    %v1625 = vpack.c.b16 %v1616, %v1615
    %v1626 = vpack.c.b16 %v1618, %v1617
    %1635 = vmatpush.bf16.msra.mxu0 %v1626
    %1636 = vmatpush.bf16.msra.mxu0 %v1625
    %1637 = vmatpush.bf16.msra.mxu0 %v1624
    %1638 = vmatpush.bf16.msra.mxu0 %v1623
    %1639 = vmatpush.bf16.msra.mxu0 %v1622
    %1640 = vmatpush.bf16.msra.mxu0 %v1621
    %1641 = vmatpush.bf16.msra.mxu0 %v1620
    %1642 = vmatpush.bf16.msra.mxu0 %v1619
    %1643 = vmatmul.bf16.gmra.mxu0 %v1585
    %v1644 = vpop.f32.mrf.mxu0
    %v1645 = vadd.f32 0.0, %v1644
    %v1646 = vpop.f32.mrf.mxu0
    %1647 = vdwg.mxu0
    %v1664 = vunpack.c.l.b16 %v1541
    %v1665 = vunpack.c.l.b16 %v1542
    %v1666 = vunpack.c.l.b16 %v1543
    %v1667 = vunpack.c.l.b16 %v1544
    %v1668 = vunpack.c.l.b16 %v1545
    %v1669 = vunpack.c.l.b16 %v1546
    %v1670 = vunpack.c.l.b16 %v1547
    %v1671 = vunpack.c.l.b16 %v1548
    %v1672 = vunpack.c.l.b16 %v1549
    %v1673 = vunpack.c.l.b16 %v1550
    %v1674 = vunpack.c.l.b16 %v1551
    %v1675 = vunpack.c.l.b16 %v1552
    %v1676 = vunpack.c.l.b16 %v1553
    %v1677 = vunpack.c.l.b16 %v1554
    %v1678 = vunpack.c.l.b16 %v1555
    %v1679 = vunpack.c.l.b16 %v1556
    %v1680 = vpack.c.b16 %v1665, %v1664
    %v1681 = vpack.c.b16 %v1667, %v1666
    %v1682 = vpack.c.b16 %v1669, %v1668
    %v1683 = vpack.c.b16 %v1671, %v1670
    %v1684 = vpack.c.b16 %v1673, %v1672
    %v1685 = vpack.c.b16 %v1675, %v1674
    %v1686 = vpack.c.b16 %v1677, %v1676
    %v1687 = vpack.c.b16 %v1679, %v1678
    %1696 = vmatpush.bf16.msra.mxu0 %v1687
    %1697 = vmatpush.bf16.msra.mxu0 %v1686
    %1698 = vmatpush.bf16.msra.mxu0 %v1685
    %1699 = vmatpush.bf16.msra.mxu0 %v1684
    %1700 = vmatpush.bf16.msra.mxu0 %v1683
    %1701 = vmatpush.bf16.msra.mxu0 %v1682
    %1702 = vmatpush.bf16.msra.mxu0 %v1681
    %1703 = vmatpush.bf16.msra.mxu0 %v1680
    %1704 = vmatmul.bf16.gmra.mxu0 %v1540
    %v1705 = vpop.f32.mrf.mxu0
    %v1706 = vadd.f32 %v1645, %v1705
    %v1707 = vpop.f32.mrf.mxu0
    %1708 = vdwg.mxu0
    %v1709 = vld [vmem:[%s1104] sm:$0xe]
    %v1710 = vld [vmem:[%s1278] sm:$0xf]
    %v1711 = vld [vmem:[%s1278 + $0x4] sm:$0xf]
    %v1712 = vld [vmem:[%s1278 + $0x8] sm:$0xf]
    %v1713 = vld [vmem:[%s1278 + $0xc] sm:$0xf]
    %v1714 = vld [vmem:[%s1278 + $0x10] sm:$0xf]
    %v1715 = vld [vmem:[%s1278 + $0x14] sm:$0xf]
    %v1716 = vld [vmem:[%s1278 + $0x18] sm:$0xf]
    %v1717 = vld [vmem:[%s1278 + $0x1c] sm:$0xf]
    %v1718 = vld [vmem:[%s1278 + $0x20] sm:$0xf]
    %v1719 = vld [vmem:[%s1278 + $0x24] sm:$0xf]
    %v1720 = vld [vmem:[%s1278 + $0x28] sm:$0xf]
    %v1721 = vld [vmem:[%s1278 + $0x2c] sm:$0xf]
    %v1722 = vld [vmem:[%s1278 + $0x30] sm:$0xf]
    %v1723 = vld [vmem:[%s1278 + $0x34] sm:$0xf]
    %v1724 = vld [vmem:[%s1278 + $0x38] sm:$0xf]
    %v1725 = vld [vmem:[%s1278 + $0x3c] sm:$0xf]
    %v1727 = vunpack.c.l.b16 %v1709
    %v1728 = vpack.c.b16 %v1577, %v1727
    %v1729 = vrot.slane %v1728, 1
    %v1747 = vunpack.c.l.b16 %v1710
    %v1748 = vunpack.c.l.b16 %v1711
    %v1749 = vunpack.c.l.b16 %v1712
    %v1750 = vunpack.c.l.b16 %v1713
    %v1751 = vunpack.c.l.b16 %v1714
    %v1752 = vunpack.c.l.b16 %v1715
    %v1753 = vunpack.c.l.b16 %v1716
    %v1754 = vunpack.c.l.b16 %v1717
    %v1755 = vunpack.c.l.b16 %v1718
    %v1756 = vunpack.c.l.b16 %v1719
    %v1757 = vunpack.c.l.b16 %v1720
    %v1758 = vunpack.c.l.b16 %v1721
    %v1759 = vunpack.c.l.b16 %v1722
    %v1760 = vunpack.c.l.b16 %v1723
    %v1761 = vunpack.c.l.b16 %v1724
    %v1762 = vunpack.c.l.b16 %v1725
    %v1763 = vpack.c.b16 %v1748, %v1747
    %v1764 = vpack.c.b16 %v1750, %v1749
    %v1765 = vpack.c.b16 %v1752, %v1751
    %v1766 = vpack.c.b16 %v1754, %v1753
    %v1767 = vpack.c.b16 %v1756, %v1755
    %v1768 = vpack.c.b16 %v1758, %v1757
    %v1769 = vpack.c.b16 %v1760, %v1759
    %v1770 = vpack.c.b16 %v1762, %v1761
    %1779 = vmatpush.bf16.msra.mxu0 %v1770
    %1780 = vmatpush.bf16.msra.mxu0 %v1769
    %1781 = vmatpush.bf16.msra.mxu0 %v1768
    %1782 = vmatpush.bf16.msra.mxu0 %v1767
    %1783 = vmatpush.bf16.msra.mxu0 %v1766
    %1784 = vmatpush.bf16.msra.mxu0 %v1765
    %1785 = vmatpush.bf16.msra.mxu0 %v1764
    %1786 = vmatpush.bf16.msra.mxu0 %v1763
    %1787 = vmatmul.bf16.gmra.mxu0 %v1729
    %v1788 = vpop.f32.mrf.mxu0
    %v1789 = vadd.f32 0.0, %v1788
    %v1790 = vpop.f32.mrf.mxu0
    %1791 = vdwg.mxu0
    %v1792 = vadd.f32 %v1706, %v1789
    %v1793 = vld [vmem:[%s1104 + $0x4] sm:$0x3]
    %v1794 = vld [vmem:[%s1363] sm:$0xf]
    %v1795 = vld [vmem:[%s1363 + $0x4] sm:$0xf]
    %v1796 = vld [vmem:[%s1363 + $0x8] sm:$0xf]
    %v1797 = vld [vmem:[%s1363 + $0xc] sm:$0xf]
    %v1798 = vld [vmem:[%s1363 + $0x10] sm:$0xf]
    %v1799 = vld [vmem:[%s1363 + $0x14] sm:$0xf]
    %v1800 = vld [vmem:[%s1363 + $0x18] sm:$0xf]
    %v1801 = vld [vmem:[%s1363 + $0x1c] sm:$0xf]
    %v1802 = vld [vmem:[%s1363 + $0x20] sm:$0xf]
    %v1803 = vld [vmem:[%s1363 + $0x24] sm:$0xf]
    %v1804 = vld [vmem:[%s1363 + $0x28] sm:$0xf]
    %v1805 = vld [vmem:[%s1363 + $0x2c] sm:$0xf]
    %v1806 = vld [vmem:[%s1363 + $0x30] sm:$0xf]
    %v1807 = vld [vmem:[%s1363 + $0x34] sm:$0xf]
    %v1808 = vld [vmem:[%s1363 + $0x38] sm:$0xf]
    %v1809 = vld [vmem:[%s1363 + $0x3c] sm:$0xf]
    %v1811 = vunpack.c.l.b16 %v1793
    %v1812 = vpack.c.b16 %v1811, %v1727
    %v1814 = vshrl.u32 %v1812, 16
    %v1816 = vrot.slane %v1814, 1
    %v1817 = vshll.u32 %v1812, 16
    %v1819 = vrot.slane %v1817, 2
    %v1820 = vor.u32 %v1816, %v1819
    %v1838 = vunpack.c.l.b16 %v1794
    %v1839 = vunpack.c.l.b16 %v1795
    %v1840 = vunpack.c.l.b16 %v1796
    %v1841 = vunpack.c.l.b16 %v1797
    %v1842 = vunpack.c.l.b16 %v1798
    %v1843 = vunpack.c.l.b16 %v1799
    %v1844 = vunpack.c.l.b16 %v1800
    %v1845 = vunpack.c.l.b16 %v1801
    %v1846 = vunpack.c.l.b16 %v1802
    %v1847 = vunpack.c.l.b16 %v1803
    %v1848 = vunpack.c.l.b16 %v1804
    %v1849 = vunpack.c.l.b16 %v1805
    %v1850 = vunpack.c.l.b16 %v1806
    %v1851 = vunpack.c.l.b16 %v1807
    %v1852 = vunpack.c.l.b16 %v1808
    %v1853 = vunpack.c.l.b16 %v1809
    %v1854 = vpack.c.b16 %v1839, %v1838
    %v1855 = vpack.c.b16 %v1841, %v1840
    %v1856 = vpack.c.b16 %v1843, %v1842
    %v1857 = vpack.c.b16 %v1845, %v1844
    %v1858 = vpack.c.b16 %v1847, %v1846
    %v1859 = vpack.c.b16 %v1849, %v1848
    %v1860 = vpack.c.b16 %v1851, %v1850
    %v1861 = vpack.c.b16 %v1853, %v1852
    %1870 = vmatpush.bf16.msra.mxu0 %v1861
    %1871 = vmatpush.bf16.msra.mxu0 %v1860
    %1872 = vmatpush.bf16.msra.mxu0 %v1859
    %1873 = vmatpush.bf16.msra.mxu0 %v1858
    %1874 = vmatpush.bf16.msra.mxu0 %v1857
    %1875 = vmatpush.bf16.msra.mxu0 %v1856
    %1876 = vmatpush.bf16.msra.mxu0 %v1855
    %1877 = vmatpush.bf16.msra.mxu0 %v1854
    %1878 = vmatmul.bf16.gmra.mxu0 %v1820
    %v1879 = vpop.f32.mrf.mxu0
    %v1880 = vadd.f32 0.0, %v1879
    %v1881 = vpop.f32.mrf.mxu0
    %1882 = vdwg.mxu0
    %v1883 = vadd.f32 %v1792, %v1880
    %v1884 = vld [vmem:[%s1104] sm:$0xc]
    %v1885 = vld [vmem:[%s1455] sm:$0xf]
    %v1886 = vld [vmem:[%s1455 + $0x4] sm:$0xf]
    %v1887 = vld [vmem:[%s1455 + $0x8] sm:$0xf]
    %v1888 = vld [vmem:[%s1455 + $0xc] sm:$0xf]
    %v1889 = vld [vmem:[%s1455 + $0x10] sm:$0xf]
    %v1890 = vld [vmem:[%s1455 + $0x14] sm:$0xf]
    %v1891 = vld [vmem:[%s1455 + $0x18] sm:$0xf]
    %v1892 = vld [vmem:[%s1455 + $0x1c] sm:$0xf]
    %v1893 = vld [vmem:[%s1455 + $0x20] sm:$0xf]
    %v1894 = vld [vmem:[%s1455 + $0x24] sm:$0xf]
    %v1895 = vld [vmem:[%s1455 + $0x28] sm:$0xf]
    %v1896 = vld [vmem:[%s1455 + $0x2c] sm:$0xf]
    %v1897 = vld [vmem:[%s1455 + $0x30] sm:$0xf]
    %v1898 = vld [vmem:[%s1455 + $0x34] sm:$0xf]
    %v1899 = vld [vmem:[%s1455 + $0x38] sm:$0xf]
    %v1900 = vld [vmem:[%s1455 + $0x3c] sm:$0xf]
    %v1902 = vunpack.c.l.b16 %v1884
    %v1903 = vpack.c.b16 %v1811, %v1902
    %v1904 = vrot.slane %v1903, 2
    %v1922 = vunpack.c.l.b16 %v1885
    %v1923 = vunpack.c.l.b16 %v1886
    %v1924 = vunpack.c.l.b16 %v1887
    %v1925 = vunpack.c.l.b16 %v1888
    %v1926 = vunpack.c.l.b16 %v1889
    %v1927 = vunpack.c.l.b16 %v1890
    %v1928 = vunpack.c.l.b16 %v1891
    %v1929 = vunpack.c.l.b16 %v1892
    %v1930 = vunpack.c.l.b16 %v1893
    %v1931 = vunpack.c.l.b16 %v1894
    %v1932 = vunpack.c.l.b16 %v1895
    %v1933 = vunpack.c.l.b16 %v1896
    %v1934 = vunpack.c.l.b16 %v1897
    %v1935 = vunpack.c.l.b16 %v1898
    %v1936 = vunpack.c.l.b16 %v1899
    %v1937 = vunpack.c.l.b16 %v1900
    %v1938 = vpack.c.b16 %v1923, %v1922
    %v1939 = vpack.c.b16 %v1925, %v1924
    %v1940 = vpack.c.b16 %v1927, %v1926
    %v1941 = vpack.c.b16 %v1929, %v1928
    %v1942 = vpack.c.b16 %v1931, %v1930
    %v1943 = vpack.c.b16 %v1933, %v1932
    %v1944 = vpack.c.b16 %v1935, %v1934
    %v1945 = vpack.c.b16 %v1937, %v1936
    %1954 = vmatpush.bf16.msra.mxu0 %v1945
    %1955 = vmatpush.bf16.msra.mxu0 %v1944
    %1956 = vmatpush.bf16.msra.mxu0 %v1943
    %1957 = vmatpush.bf16.msra.mxu0 %v1942
    %1958 = vmatpush.bf16.msra.mxu0 %v1941
    %1959 = vmatpush.bf16.msra.mxu0 %v1940
    %1960 = vmatpush.bf16.msra.mxu0 %v1939
    %1961 = vmatpush.bf16.msra.mxu0 %v1938
    %1962 = vmatmul.bf16.gmra.mxu0 %v1904
    %v1963 = vpop.f32.mrf.mxu0
    %v1964 = vadd.f32 0.0, %v1963
    %v1965 = vpop.f32.mrf.mxu0
    %1966 = vdwg.mxu0
    %v1967 = vadd.f32 %v1883, %v1964
    %1968 = vst [vmem:[#allocation4 + $0x8] sm:$0xff] %v1967
    %v1969 = vld [vmem:[#allocation4] sm:$0xff]
    %v1970 = vld [vmem:[#allocation4 + $0x8] sm:$0xff]
    %v1971 = vlaneseq
    %v1972 = vshrl.u32 %v1971, 7
    %v1973 = vadd.s32 %v1972, 8
    %vm1974 = vcmp.lt.s32.totalorder %v1972, 0
    %v1975 = vsub.s32 0, %v1972
    %v1976 = vsel %vm1974, %v1975, %v1972
    %v1977 = vshrl.u32 %v1976, 1
    %v1978 = vand.u32 %v1976, 1
    %v1979 = vsub.s32 0, %v1978
    %v1980 = vsel %vm1974, %v1979, %v1978
    %vm1981 = vcmp.lt.s32.totalorder %v1973, 0
    %v1982 = vsub.s32 0, %v1973
    %v1983 = vsel %vm1981, %v1982, %v1973
    %v1984 = vshrl.u32 %v1983, 1
    %v1985 = vand.u32 %v1983, 1
    %v1986 = vsub.s32 0, %v1985
    %v1987 = vsel %vm1981, %v1986, %v1985
    %vm1988 = vcmp.ne.s32.totalorder %v1980, 0
    %vm1989 = vcmp.ne.s32.totalorder %v1987, 0
    %vm1990 = vcmp.lt.s32.totalorder %v1980, 0
    %vm1991 = vcmp.lt.s32.totalorder %v1987, 0
    %vm1992 = vmand %vm1990, %vm1988
    %vm1993 = vmand %vm1991, %vm1989
    %v1994 = vadd.s32 %v1980, 2
    %v1995 = vadd.s32 %v1987, 2
    %v1996 = vsel %vm1992, %v1994, %v1980
    %v1997 = vsel %vm1993, %v1995, %v1987
    %vm1998 = vcmp.eq.s32.totalorder %v1996, 0
    %vm1999 = vcmp.eq.s32.totalorder %v1997, 0
    %v2000 = vsel %vm1998, 1, 0
    %v2001 = vsel %vm1999, 1, 0
    %v2002 = vcvt.s32.f32 %v2000
    %v2003 = vcvt.s32.f32 %v2001
    %v2004 = vmul.f32 %v1969, %v2002
    %v2005 = vmul.f32 %v1970, %v2003
    %v2006 = vadd.f32 %v2004, %v2005
    %v2007 = vrot.slane %v2006, 4
    %v2008 = vadd.f32 %v2006, %v2007
    %v2009 = vrot.slane %v2008, 2
    %v2010 = vadd.f32 %v2008, %v2009
    %v2011 = vrot.slane %v2010, 1
    %v2012 = vadd.f32 %v2010, %v2011
    %v2013 = vmul.f32 %v1969, %v1969
    %v2014 = vmul.f32 %v1970, %v1970
    %v2015 = vmul.f32 %v2013, %v2002
    %v2016 = vmul.f32 %v2014, %v2003
    %v2017 = vadd.f32 %v2015, %v2016
    %v2018 = vrot.slane %v2017, 4
    %v2019 = vadd.f32 %v2017, %v2018
    %v2020 = vrot.slane %v2019, 2
    %v2021 = vadd.f32 %v2019, %v2020
    %v2022 = vrot.slane %v2021, 1
    %v2023 = vadd.f32 %v2021, %v2022
    %v2024 = vld [vmem:[#allocation9] sm:$0xff]
    %v2025 = vld [vmem:[#allocation9 + $0x8] sm:$0xff]
    %v2026 = vld [vmem:[#allocation9 + $0x10] sm:$0xff]
    %v2027 = vld [vmem:[#allocation9 + $0x18] sm:$0xff]
    %v2028 = vld [vmem:[#allocation9 + $0x20] sm:$0xff]
    %v2029 = vld [vmem:[#allocation9 + $0x28] sm:$0xff]
    %v2030 = vld [vmem:[#allocation9 + $0x30] sm:$0xff]
    %v2031 = vld [vmem:[#allocation9 + $0x38] sm:$0xff]
    %v2032 = vld [vmem:[#allocation9 + $0x40] sm:$0xff]
    %v2033 = vld [vmem:[#allocation9 + $0x48] sm:$0xff]
    %v2034 = vld [vmem:[#allocation9 + $0x50] sm:$0xff]
    %v2035 = vld [vmem:[#allocation9 + $0x58] sm:$0xff]
    %v2036 = vld [vmem:[#allocation9 + $0x60] sm:$0xff]
    %v2037 = vld [vmem:[#allocation9 + $0x68] sm:$0xff]
    %v2038 = vld [vmem:[#allocation9 + $0x70] sm:$0xff]
    %v2039 = vld [vmem:[#allocation9 + $0x78] sm:$0xff]
    %2040 = vmatpush.msra.mxu0 %v2039
    %2041 = vmatpush.msra.mxu0 %v2038
    %2042 = vmatpush.msra.mxu0 %v2037
    %2043 = vmatpush.msra.mxu0 %v2036
    %2044 = vmatpush.msra.mxu0 %v2035
    %2045 = vmatpush.msra.mxu0 %v2034
    %2046 = vmatpush.msra.mxu0 %v2033
    %2047 = vmatpush.msra.mxu0 %v2032
    %2048 = vmatpush.msra.mxu0 %v2031
    %2049 = vmatpush.msra.mxu0 %v2030
    %2050 = vmatpush.msra.mxu0 %v2029
    %2051 = vmatpush.msra.mxu0 %v2028
    %2052 = vmatpush.msra.mxu0 %v2027
    %2053 = vmatpush.msra.mxu0 %v2026
    %2054 = vmatpush.msra.mxu0 %v2025
    %2055 = vmatpush.msra.mxu0 %v2024
    %2056 = vmatmul.f32.gmra.mxu0 %v2012
    %v2057 = vpop.f32.mrf.mxu0
    %v2058 = vadd.f32 0.0, %v2057
    %2059 = vdwg.mxu0
    %v2060 = vmul.f32 %v2058, 0.03125
    %2061 = vmatpush.msra.mxu0 %v2039
    %2062 = vmatpush.msra.mxu0 %v2038
    %2063 = vmatpush.msra.mxu0 %v2037
    %2064 = vmatpush.msra.mxu0 %v2036
    %2065 = vmatpush.msra.mxu0 %v2035
    %2066 = vmatpush.msra.mxu0 %v2034
    %2067 = vmatpush.msra.mxu0 %v2033
    %2068 = vmatpush.msra.mxu0 %v2032
    %2069 = vmatpush.msra.mxu0 %v2031
    %2070 = vmatpush.msra.mxu0 %v2030
    %2071 = vmatpush.msra.mxu0 %v2029
    %2072 = vmatpush.msra.mxu0 %v2028
    %2073 = vmatpush.msra.mxu0 %v2027
    %2074 = vmatpush.msra.mxu0 %v2026
    %2075 = vmatpush.msra.mxu0 %v2025
    %2076 = vmatpush.msra.mxu0 %v2024
    %2077 = vmatmul.f32.gmra.mxu0 %v2023
    %v2078 = vpop.f32.mrf.mxu0
    %v2079 = vadd.f32 0.0, %v2078
    %2080 = vdwg.mxu0
    %v2081 = vmul.f32 %v2079, 0.03125
    %v2082 = vmul.f32 %v2060, %v2060
    %v2083 = vsub.f32 %v2081, %v2082
    %v2084 = vld [vmem:[%s7] sm:$0x1]
    %v2085 = vadd.f32 %v2083, 1e-05
    %v2086 = vrsqrt.pop %v2085
    %v2087 = vmul.f32 %v2086, %v2085
    %v2088 = vmul.f32 %v2087, %v2086
    %v2089 = vmul.f32 0.5, %v2088
    %v2090 = vsub.f32 1.5, %v2089
    %v2091 = vmul.f32 %v2086, %v2090
    %vm2092 = vweird.f32 %v2085
    %vm2093 = vweird.f32 %v2086
    %vm2094 = vmor %vm2092, %vm2093
    %v2095 = vsel %vm2094, %v2086, %v2091
    %v2096 = vmul.f32 %v2084, %v2095
    %v2097 = vld [vmem:[%s8] sm:$0x1]
    %v2098 = vmul.f32 %v2060, %v2096
    %v2099 = vsub.f32 %v2097, %v2098
    %v2101 = vperm.slane %v2096, 0
    %v2103 = vmul.f32 %v1969, %v2101
    %v2104 = vmul.f32 %v1970, %v2101
    %v2106 = vperm.slane %v2099, 0
    %v2108 = vadd.f32 %v2103, %v2106
    %v2109 = vadd.f32 %v2104, %v2106
    %vm2110 = vcmp.gt.f32.partialorder %v2108, 0.0
    %vm2111 = vcmp.gt.f32.partialorder %v2109, 0.0
    %v2112 = vmul.f32 %v2108, 0.01
    %v2113 = vmul.f32 %v2109, 0.01
    %v2114 = vsel %vm2110, %v2108, %v2112
    %v2115 = vsel %vm2111, %v2109, %v2113
    %v2116 = vpack.c.bf16 %v2114, %v2114
    %v2117 = vpack.c.bf16 %v2115, %v2115
    %vm2118 = vcmask 1040384
    %vm2119 = vsmask.f32 256
    %vm2120 = vmand %vm2118, %vm2119
    %v2121 = vld [vmem:[#allocation5] sm:$0x1]
    %v2122 = vsel %vm2120, %v2116, %v2121
    %2123 = vst [vmem:[#allocation5] sm:$0x1] %v2122
    %v2125 = vrot.slane %v2116, 3
    %vm2126 = vcmask 1040384
    %v2129 = vsel %vm2126, %v2116, %v2125
    %v2130 = vshrl.u32 %v2129, 16
    %v2132 = vrot.slane %v2130, 7
    %v2133 = vrot.slane %v2132, 1
    %v2135 = vld [vmem:[#allocation5 + $0x1] sm:$0x1]
    %v2136 = vsel %vm2120, %v2133, %v2135
    %2137 = vst [vmem:[#allocation5 + $0x1] sm:$0x1] %v2136
    %2138 = vst [vmem:[#allocation1] sm:$0xff] %v2116
    %s2139 = scalar_lea.vmem [#allocation1], 1
    %v2140 = vld [vmem:[%s2139] ss:$4 sm:$0xff]
    %v2142 = vld [vmem:[#allocation5 + $0x2] sm:$0x1]
    %v2143 = vsel %vm2120, %v2140, %v2142
    %2144 = vst [vmem:[#allocation5 + $0x2] sm:$0x1] %v2143
    %2145 = vst [vmem:[#allocation1] sm:$0xff] %v2116
    %s2146 = scalar_lea.vmem [#allocation1], 1
    %v2147 = vld [vmem:[%s2146] ss:$4 sm:$0xff]
    %v2148 = vshrl.u32 %v2147, 16
    %v2150 = vrot.slane %v2148, 7
    %v2151 = vrot.slane %v2150, 1
    %v2153 = vld [vmem:[#allocation5 + $0x3] sm:$0x1]
    %v2154 = vsel %vm2120, %v2151, %v2153
    %2155 = vst [vmem:[#allocation5 + $0x3] sm:$0x1] %v2154
    %2156 = vst [vmem:[#allocation1] sm:$0xff] %v2116
    %s2157 = scalar_lea.vmem [#allocation1], 2
    %v2158 = vld [vmem:[%s2157] ss:$4 sm:$0xff]
    %v2160 = vld [vmem:[#allocation5 + $0x4] sm:$0x1]
    %v2161 = vsel %vm2120, %v2158, %v2160
    %2162 = vst [vmem:[#allocation5 + $0x4] sm:$0x1] %v2161
    %2163 = vst [vmem:[#allocation1] sm:$0xff] %v2116
    %s2164 = scalar_lea.vmem [#allocation1], 2
    %v2165 = vld [vmem:[%s2164] ss:$4 sm:$0xff]
    %v2166 = vshrl.u32 %v2165, 16
    %v2168 = vrot.slane %v2166, 7
    %v2169 = vrot.slane %v2168, 1
    %v2171 = vld [vmem:[#allocation5 + $0x5] sm:$0x1]
    %v2172 = vsel %vm2120, %v2169, %v2171
    %2173 = vst [vmem:[#allocation5 + $0x5] sm:$0x1] %v2172
    %2174 = vst [vmem:[#allocation1] sm:$0xff] %v2116
    %s2175 = scalar_lea.vmem [#allocation1], 3
    %v2176 = vld [vmem:[%s2175] ss:$4 sm:$0xff]
    %v2178 = vld [vmem:[#allocation5 + $0x6] sm:$0x1]
    %v2179 = vsel %vm2120, %v2176, %v2178
    %2180 = vst [vmem:[#allocation5 + $0x6] sm:$0x1] %v2179
    %2181 = vst [vmem:[#allocation1] sm:$0xff] %v2116
    %s2182 = scalar_lea.vmem [#allocation1], 3
    %v2183 = vld [vmem:[%s2182] ss:$4 sm:$0xff]
    %v2184 = vshrl.u32 %v2183, 16
    %v2186 = vrot.slane %v2184, 7
    %v2187 = vrot.slane %v2186, 1
    %v2189 = vld [vmem:[#allocation5 + $0x7] sm:$0x1]
    %v2190 = vsel %vm2120, %v2187, %v2189
    %2191 = vst [vmem:[#allocation5 + $0x7] sm:$0x1] %v2190
    %v2193 = vrot.slane %v2117, 3
    %v2196 = vsel %vm2126, %v2117, %v2193
    %v2197 = vshll.u32 %v2196, 16
    %vm2200 = vsmask.f32 7938
    %vm2201 = vmand %vm2118, %vm2200
    %v2202 = vld [vmem:[#allocation5] sm:$0x1]
    %v2203 = vsel %vm2201, %v2197, %v2202
    %2204 = vst [vmem:[#allocation5] sm:$0x1] %v2203
    %v2205 = vld [vmem:[#allocation5 + $0x1] sm:$0x1]
    %v2206 = vsel %vm2201, %v2117, %v2205
    %2207 = vst [vmem:[#allocation5 + $0x1] sm:$0x1] %v2206
    %2208 = vst [vmem:[#allocation1] sm:$0xff] %v2117
    %s2209 = scalar_lea.vmem [#allocation1], 1
    %v2210 = vld [vmem:[%s2209] ss:$4 sm:$0xff]
    %v2211 = vshll.u32 %v2210, 16
    %v2214 = vld [vmem:[#allocation5 + $0x2] sm:$0x1]
    %v2215 = vsel %vm2201, %v2211, %v2214
    %2216 = vst [vmem:[#allocation5 + $0x2] sm:$0x1] %v2215
    %2217 = vst [vmem:[#allocation1] sm:$0xff] %v2117
    %s2218 = scalar_lea.vmem [#allocation1], 1
    %v2219 = vld [vmem:[%s2218] ss:$4 sm:$0xff]
    %v2221 = vld [vmem:[#allocation5 + $0x3] sm:$0x1]
    %v2222 = vsel %vm2201, %v2219, %v2221
    %2223 = vst [vmem:[#allocation5 + $0x3] sm:$0x1] %v2222
    %2224 = vst [vmem:[#allocation1] sm:$0xff] %v2117
    %s2225 = scalar_lea.vmem [#allocation1], 2
    %v2226 = vld [vmem:[%s2225] ss:$4 sm:$0xff]
    %v2227 = vshll.u32 %v2226, 16
    %v2230 = vld [vmem:[#allocation5 + $0x4] sm:$0x1]
    %v2231 = vsel %vm2201, %v2227, %v2230
    %2232 = vst [vmem:[#allocation5 + $0x4] sm:$0x1] %v2231
    %2233 = vst [vmem:[#allocation1] sm:$0xff] %v2117
    %s2234 = scalar_lea.vmem [#allocation1], 2
    %v2235 = vld [vmem:[%s2234] ss:$4 sm:$0xff]
    %v2237 = vld [vmem:[#allocation5 + $0x5] sm:$0x1]
    %v2238 = vsel %vm2201, %v2235, %v2237
    %2239 = vst [vmem:[#allocation5 + $0x5] sm:$0x1] %v2238
    %2240 = vst [vmem:[#allocation1] sm:$0xff] %v2117
    %s2241 = scalar_lea.vmem [#allocation1], 3
    %v2242 = vld [vmem:[%s2241] ss:$4 sm:$0xff]
    %v2243 = vshll.u32 %v2242, 16
    %v2246 = vld [vmem:[#allocation5 + $0x6] sm:$0x1]
    %v2247 = vsel %vm2201, %v2243, %v2246
    %2248 = vst [vmem:[#allocation5 + $0x6] sm:$0x1] %v2247
    %2249 = vst [vmem:[#allocation1] sm:$0xff] %v2117
    %s2250 = scalar_lea.vmem [#allocation1], 3
    %v2251 = vld [vmem:[%s2250] ss:$4 sm:$0xff]
    %v2253 = vld [vmem:[#allocation5 + $0x7] sm:$0x1]
    %v2254 = vsel %vm2201, %v2251, %v2253
    %2255 = vst [vmem:[#allocation5 + $0x7] sm:$0x1] %v2254
    %v2256 = vld [vmem:[#allocation5] sm:$0xff]
    %v2257 = vld [vmem:[%s9] sm:$0xf]
    %v2258 = vld [vmem:[%s9 + $0x4] sm:$0xf]
    %v2259 = vld [vmem:[%s9 + $0x8] sm:$0xf]
    %v2260 = vld [vmem:[%s9 + $0xc] sm:$0xf]
    %v2261 = vld [vmem:[%s9 + $0x10] sm:$0xf]
    %v2262 = vld [vmem:[%s9 + $0x14] sm:$0xf]
    %v2263 = vld [vmem:[%s9 + $0x18] sm:$0xf]
    %v2264 = vld [vmem:[%s9 + $0x1c] sm:$0xf]
    %v2265 = vld [vmem:[%s9 + $0x20] sm:$0xf]
    %v2266 = vld [vmem:[%s9 + $0x24] sm:$0xf]
    %v2267 = vld [vmem:[%s9 + $0x28] sm:$0xf]
    %v2268 = vld [vmem:[%s9 + $0x2c] sm:$0xf]
    %v2269 = vld [vmem:[%s9 + $0x30] sm:$0xf]
    %v2270 = vld [vmem:[%s9 + $0x34] sm:$0xf]
    %v2271 = vld [vmem:[%s9 + $0x38] sm:$0xf]
    %v2272 = vld [vmem:[%s9 + $0x3c] sm:$0xf]
    %v2273 = vld [vmem:[%s9 + $0x40] sm:$0xf]
    %v2274 = vld [vmem:[%s9 + $0x44] sm:$0xf]
    %v2275 = vld [vmem:[%s9 + $0x48] sm:$0xf]
    %v2276 = vld [vmem:[%s9 + $0x4c] sm:$0xf]
    %v2277 = vld [vmem:[%s9 + $0x50] sm:$0xf]
    %v2278 = vld [vmem:[%s9 + $0x54] sm:$0xf]
    %v2279 = vld [vmem:[%s9 + $0x58] sm:$0xf]
    %v2280 = vld [vmem:[%s9 + $0x5c] sm:$0xf]
    %v2281 = vld [vmem:[%s9 + $0x60] sm:$0xf]
    %v2282 = vld [vmem:[%s9 + $0x64] sm:$0xf]
    %v2283 = vld [vmem:[%s9 + $0x68] sm:$0xf]
    %v2284 = vld [vmem:[%s9 + $0x6c] sm:$0xf]
    %v2285 = vld [vmem:[%s9 + $0x70] sm:$0xf]
    %v2286 = vld [vmem:[%s9 + $0x74] sm:$0xf]
    %v2287 = vld [vmem:[%s9 + $0x78] sm:$0xf]
    %v2288 = vld [vmem:[%s9 + $0x7c] sm:$0xf]
    %v2289 = vld [vmem:[%s9 + $0x80] sm:$0xf]
    %v2290 = vld [vmem:[%s9 + $0x84] sm:$0xf]
    %v2291 = vld [vmem:[%s9 + $0x88] sm:$0xf]
    %v2292 = vld [vmem:[%s9 + $0x8c] sm:$0xf]
    %v2293 = vld [vmem:[%s9 + $0x90] sm:$0xf]
    %v2294 = vld [vmem:[%s9 + $0x94] sm:$0xf]
    %v2295 = vld [vmem:[%s9 + $0x98] sm:$0xf]
    %v2296 = vld [vmem:[%s9 + $0x9c] sm:$0xf]
    %v2297 = vld [vmem:[%s9 + $0xa0] sm:$0xf]
    %v2298 = vld [vmem:[%s9 + $0xa4] sm:$0xf]
    %v2299 = vld [vmem:[%s9 + $0xa8] sm:$0xf]
    %v2300 = vld [vmem:[%s9 + $0xac] sm:$0xf]
    %v2301 = vld [vmem:[%s9 + $0xb0] sm:$0xf]
    %v2302 = vld [vmem:[%s9 + $0xb4] sm:$0xf]
    %v2303 = vld [vmem:[%s9 + $0xb8] sm:$0xf]
    %v2304 = vld [vmem:[%s9 + $0xbc] sm:$0xf]
    %v2305 = vld [vmem:[%s9 + $0xc0] sm:$0xf]
    %v2306 = vld [vmem:[%s9 + $0xc4] sm:$0xf]
    %v2307 = vld [vmem:[%s9 + $0xc8] sm:$0xf]
    %v2308 = vld [vmem:[%s9 + $0xcc] sm:$0xf]
    %v2309 = vld [vmem:[%s9 + $0xd0] sm:$0xf]
    %v2310 = vld [vmem:[%s9 + $0xd4] sm:$0xf]
    %v2311 = vld [vmem:[%s9 + $0xd8] sm:$0xf]
    %v2312 = vld [vmem:[%s9 + $0xdc] sm:$0xf]
    %v2313 = vld [vmem:[%s9 + $0xe0] sm:$0xf]
    %v2314 = vld [vmem:[%s9 + $0xe4] sm:$0xf]
    %v2315 = vld [vmem:[%s9 + $0xe8] sm:$0xf]
    %v2316 = vld [vmem:[%s9 + $0xec] sm:$0xf]
    %v2317 = vld [vmem:[%s9 + $0xf0] sm:$0xf]
    %v2318 = vld [vmem:[%s9 + $0xf4] sm:$0xf]
    %v2319 = vld [vmem:[%s9 + $0xf8] sm:$0xf]
    %v2320 = vld [vmem:[%s9 + $0xfc] sm:$0xf]
    %v2321 = vld [vmem:[%s9 + $0x100] sm:$0xf]
    %v2322 = vld [vmem:[%s9 + $0x104] sm:$0xf]
    %v2323 = vld [vmem:[%s9 + $0x108] sm:$0xf]
    %v2324 = vld [vmem:[%s9 + $0x10c] sm:$0xf]
    %v2325 = vld [vmem:[%s9 + $0x110] sm:$0xf]
    %v2326 = vld [vmem:[%s9 + $0x114] sm:$0xf]
    %v2327 = vld [vmem:[%s9 + $0x118] sm:$0xf]
    %v2328 = vld [vmem:[%s9 + $0x11c] sm:$0xf]
    %v2329 = vld [vmem:[%s9 + $0x120] sm:$0xf]
    %v2330 = vld [vmem:[%s9 + $0x124] sm:$0xf]
    %v2331 = vld [vmem:[%s9 + $0x128] sm:$0xf]
    %v2332 = vld [vmem:[%s9 + $0x12c] sm:$0xf]
    %v2333 = vld [vmem:[%s9 + $0x130] sm:$0xf]
    %v2334 = vld [vmem:[%s9 + $0x134] sm:$0xf]
    %v2335 = vld [vmem:[%s9 + $0x138] sm:$0xf]
    %v2336 = vld [vmem:[%s9 + $0x13c] sm:$0xf]
    %v2337 = vld [vmem:[%s9 + $0x140] sm:$0xf]
    %v2338 = vld [vmem:[%s9 + $0x144] sm:$0xf]
    %v2339 = vld [vmem:[%s9 + $0x148] sm:$0xf]
    %v2340 = vld [vmem:[%s9 + $0x14c] sm:$0xf]
    %v2341 = vld [vmem:[%s9 + $0x150] sm:$0xf]
    %v2342 = vld [vmem:[%s9 + $0x154] sm:$0xf]
    %v2343 = vld [vmem:[%s9 + $0x158] sm:$0xf]
    %v2344 = vld [vmem:[%s9 + $0x15c] sm:$0xf]
    %v2345 = vld [vmem:[%s9 + $0x160] sm:$0xf]
    %v2346 = vld [vmem:[%s9 + $0x164] sm:$0xf]
    %v2347 = vld [vmem:[%s9 + $0x168] sm:$0xf]
    %v2348 = vld [vmem:[%s9 + $0x16c] sm:$0xf]
    %v2349 = vld [vmem:[%s9 + $0x170] sm:$0xf]
    %v2350 = vld [vmem:[%s9 + $0x174] sm:$0xf]
    %v2351 = vld [vmem:[%s9 + $0x178] sm:$0xf]
    %v2352 = vld [vmem:[%s9 + $0x17c] sm:$0xf]
    %v2353 = vld [vmem:[%s9 + $0x180] sm:$0xf]
    %v2354 = vld [vmem:[%s9 + $0x184] sm:$0xf]
    %v2355 = vld [vmem:[%s9 + $0x188] sm:$0xf]
    %v2356 = vld [vmem:[%s9 + $0x18c] sm:$0xf]
    %v2357 = vld [vmem:[%s9 + $0x190] sm:$0xf]
    %v2358 = vld [vmem:[%s9 + $0x194] sm:$0xf]
    %v2359 = vld [vmem:[%s9 + $0x198] sm:$0xf]
    %v2360 = vld [vmem:[%s9 + $0x19c] sm:$0xf]
    %v2361 = vld [vmem:[%s9 + $0x1a0] sm:$0xf]
    %v2362 = vld [vmem:[%s9 + $0x1a4] sm:$0xf]
    %v2363 = vld [vmem:[%s9 + $0x1a8] sm:$0xf]
    %v2364 = vld [vmem:[%s9 + $0x1ac] sm:$0xf]
    %v2365 = vld [vmem:[%s9 + $0x1b0] sm:$0xf]
    %v2366 = vld [vmem:[%s9 + $0x1b4] sm:$0xf]
    %v2367 = vld [vmem:[%s9 + $0x1b8] sm:$0xf]
    %v2368 = vld [vmem:[%s9 + $0x1bc] sm:$0xf]
    %v2369 = vld [vmem:[%s9 + $0x1c0] sm:$0xf]
    %v2370 = vld [vmem:[%s9 + $0x1c4] sm:$0xf]
    %v2371 = vld [vmem:[%s9 + $0x1c8] sm:$0xf]
    %v2372 = vld [vmem:[%s9 + $0x1cc] sm:$0xf]
    %v2373 = vld [vmem:[%s9 + $0x1d0] sm:$0xf]
    %v2374 = vld [vmem:[%s9 + $0x1d4] sm:$0xf]
    %v2375 = vld [vmem:[%s9 + $0x1d8] sm:$0xf]
    %v2376 = vld [vmem:[%s9 + $0x1dc] sm:$0xf]
    %v2377 = vld [vmem:[%s9 + $0x1e0] sm:$0xf]
    %v2378 = vld [vmem:[%s9 + $0x1e4] sm:$0xf]
    %v2379 = vld [vmem:[%s9 + $0x1e8] sm:$0xf]
    %v2380 = vld [vmem:[%s9 + $0x1ec] sm:$0xf]
    %v2381 = vld [vmem:[%s9 + $0x1f0] sm:$0xf]
    %v2382 = vld [vmem:[%s9 + $0x1f4] sm:$0xf]
    %v2383 = vld [vmem:[%s9 + $0x1f8] sm:$0xf]
    %v2384 = vld [vmem:[%s9 + $0x1fc] sm:$0xf]
    %v2385 = vld [vmem:[%s10] sm:$0x1]
    %v2387 = vperm.slane %v2385, 0
    %2390 = vst [vmem:[#allocation1] ss:$9 sm:$0xff] %v2256
    %v2391 = vld [vmem:[#allocation1] sm:$0xff]
    %v2392 = vld [vmem:[#allocation1 + $0x9] sm:$0xff]
    %v2393 = vld [vmem:[#allocation1 + $0x12] sm:$0xff]
    %v2394 = vld [vmem:[#allocation1 + $0x1b] sm:$0xff]
    %v2395 = vld [vmem:[#allocation1 + $0x24] sm:$0xff]
    %v2396 = vld [vmem:[#allocation1 + $0x2d] sm:$0xff]
    %v2397 = vld [vmem:[#allocation1 + $0x36] sm:$0xff]
    %v2398 = vld [vmem:[#allocation1 + $0x3f] sm:$0xff]
    %v2535 = vunpack.c.l.b16 %v2257
    %v2536 = vunpack.c.l.b16 %v2258
    %v2537 = vunpack.c.l.b16 %v2259
    %v2538 = vunpack.c.l.b16 %v2260
    %v2539 = vunpack.c.l.b16 %v2261
    %v2540 = vunpack.c.l.b16 %v2262
    %v2541 = vunpack.c.l.b16 %v2263
    %v2542 = vunpack.c.l.b16 %v2264
    %v2543 = vunpack.c.l.b16 %v2265
    %v2544 = vunpack.c.l.b16 %v2266
    %v2545 = vunpack.c.l.b16 %v2267
    %v2546 = vunpack.c.l.b16 %v2268
    %v2547 = vunpack.c.l.b16 %v2269
    %v2548 = vunpack.c.l.b16 %v2270
    %v2549 = vunpack.c.l.b16 %v2271
    %v2550 = vunpack.c.l.b16 %v2272
    %v2551 = vunpack.c.l.b16 %v2273
    %v2552 = vunpack.c.l.b16 %v2274
    %v2553 = vunpack.c.l.b16 %v2275
    %v2554 = vunpack.c.l.b16 %v2276
    %v2555 = vunpack.c.l.b16 %v2277
    %v2556 = vunpack.c.l.b16 %v2278
    %v2557 = vunpack.c.l.b16 %v2279
    %v2558 = vunpack.c.l.b16 %v2280
    %v2559 = vunpack.c.l.b16 %v2281
    %v2560 = vunpack.c.l.b16 %v2282
    %v2561 = vunpack.c.l.b16 %v2283
    %v2562 = vunpack.c.l.b16 %v2284
    %v2563 = vunpack.c.l.b16 %v2285
    %v2564 = vunpack.c.l.b16 %v2286
    %v2565 = vunpack.c.l.b16 %v2287
    %v2566 = vunpack.c.l.b16 %v2288
    %v2567 = vunpack.c.l.b16 %v2289
    %v2568 = vunpack.c.l.b16 %v2290
    %v2569 = vunpack.c.l.b16 %v2291
    %v2570 = vunpack.c.l.b16 %v2292
    %v2571 = vunpack.c.l.b16 %v2293
    %v2572 = vunpack.c.l.b16 %v2294
    %v2573 = vunpack.c.l.b16 %v2295
    %v2574 = vunpack.c.l.b16 %v2296
    %v2575 = vunpack.c.l.b16 %v2297
    %v2576 = vunpack.c.l.b16 %v2298
    %v2577 = vunpack.c.l.b16 %v2299
    %v2578 = vunpack.c.l.b16 %v2300
    %v2579 = vunpack.c.l.b16 %v2301
    %v2580 = vunpack.c.l.b16 %v2302
    %v2581 = vunpack.c.l.b16 %v2303
    %v2582 = vunpack.c.l.b16 %v2304
    %v2583 = vunpack.c.l.b16 %v2305
    %v2584 = vunpack.c.l.b16 %v2306
    %v2585 = vunpack.c.l.b16 %v2307
    %v2586 = vunpack.c.l.b16 %v2308
    %v2587 = vunpack.c.l.b16 %v2309
    %v2588 = vunpack.c.l.b16 %v2310
    %v2589 = vunpack.c.l.b16 %v2311
    %v2590 = vunpack.c.l.b16 %v2312
    %v2591 = vunpack.c.l.b16 %v2313
    %v2592 = vunpack.c.l.b16 %v2314
    %v2593 = vunpack.c.l.b16 %v2315
    %v2594 = vunpack.c.l.b16 %v2316
    %v2595 = vunpack.c.l.b16 %v2317
    %v2596 = vunpack.c.l.b16 %v2318
    %v2597 = vunpack.c.l.b16 %v2319
    %v2598 = vunpack.c.l.b16 %v2320
    %v2599 = vunpack.c.l.b16 %v2321
    %v2600 = vunpack.c.l.b16 %v2322
    %v2601 = vunpack.c.l.b16 %v2323
    %v2602 = vunpack.c.l.b16 %v2324
    %v2603 = vunpack.c.l.b16 %v2325
    %v2604 = vunpack.c.l.b16 %v2326
    %v2605 = vunpack.c.l.b16 %v2327
    %v2606 = vunpack.c.l.b16 %v2328
    %v2607 = vunpack.c.l.b16 %v2329
    %v2608 = vunpack.c.l.b16 %v2330
    %v2609 = vunpack.c.l.b16 %v2331
    %v2610 = vunpack.c.l.b16 %v2332
    %v2611 = vunpack.c.l.b16 %v2333
    %v2612 = vunpack.c.l.b16 %v2334
    %v2613 = vunpack.c.l.b16 %v2335
    %v2614 = vunpack.c.l.b16 %v2336
    %v2615 = vunpack.c.l.b16 %v2337
    %v2616 = vunpack.c.l.b16 %v2338
    %v2617 = vunpack.c.l.b16 %v2339
    %v2618 = vunpack.c.l.b16 %v2340
    %v2619 = vunpack.c.l.b16 %v2341
    %v2620 = vunpack.c.l.b16 %v2342
    %v2621 = vunpack.c.l.b16 %v2343
    %v2622 = vunpack.c.l.b16 %v2344
    %v2623 = vunpack.c.l.b16 %v2345
    %v2624 = vunpack.c.l.b16 %v2346
    %v2625 = vunpack.c.l.b16 %v2347
    %v2626 = vunpack.c.l.b16 %v2348
    %v2627 = vunpack.c.l.b16 %v2349
    %v2628 = vunpack.c.l.b16 %v2350
    %v2629 = vunpack.c.l.b16 %v2351
    %v2630 = vunpack.c.l.b16 %v2352
    %v2631 = vunpack.c.l.b16 %v2353
    %v2632 = vunpack.c.l.b16 %v2354
    %v2633 = vunpack.c.l.b16 %v2355
    %v2634 = vunpack.c.l.b16 %v2356
    %v2635 = vunpack.c.l.b16 %v2357
    %v2636 = vunpack.c.l.b16 %v2358
    %v2637 = vunpack.c.l.b16 %v2359
    %v2638 = vunpack.c.l.b16 %v2360
    %v2639 = vunpack.c.l.b16 %v2361
    %v2640 = vunpack.c.l.b16 %v2362
    %v2641 = vunpack.c.l.b16 %v2363
    %v2642 = vunpack.c.l.b16 %v2364
    %v2643 = vunpack.c.l.b16 %v2365
    %v2644 = vunpack.c.l.b16 %v2366
    %v2645 = vunpack.c.l.b16 %v2367
    %v2646 = vunpack.c.l.b16 %v2368
    %v2647 = vunpack.c.l.b16 %v2369
    %v2648 = vunpack.c.l.b16 %v2370
    %v2649 = vunpack.c.l.b16 %v2371
    %v2650 = vunpack.c.l.b16 %v2372
    %v2651 = vunpack.c.l.b16 %v2373
    %v2652 = vunpack.c.l.b16 %v2374
    %v2653 = vunpack.c.l.b16 %v2375
    %v2654 = vunpack.c.l.b16 %v2376
    %v2655 = vunpack.c.l.b16 %v2377
    %v2656 = vunpack.c.l.b16 %v2378
    %v2657 = vunpack.c.l.b16 %v2379
    %v2658 = vunpack.c.l.b16 %v2380
    %v2659 = vunpack.c.l.b16 %v2381
    %v2660 = vunpack.c.l.b16 %v2382
    %v2661 = vunpack.c.l.b16 %v2383
    %v2662 = vunpack.c.l.b16 %v2384
    %v2663 = vpack.c.b16 %v2536, %v2535
    %v2664 = vpack.c.b16 %v2538, %v2537
    %v2665 = vpack.c.b16 %v2540, %v2539
    %v2666 = vpack.c.b16 %v2542, %v2541
    %v2667 = vpack.c.b16 %v2544, %v2543
    %v2668 = vpack.c.b16 %v2546, %v2545
    %v2669 = vpack.c.b16 %v2548, %v2547
    %v2670 = vpack.c.b16 %v2550, %v2549
    %v2671 = vpack.c.b16 %v2552, %v2551
    %v2672 = vpack.c.b16 %v2554, %v2553
    %v2673 = vpack.c.b16 %v2556, %v2555
    %v2674 = vpack.c.b16 %v2558, %v2557
    %v2675 = vpack.c.b16 %v2560, %v2559
    %v2676 = vpack.c.b16 %v2562, %v2561
    %v2677 = vpack.c.b16 %v2564, %v2563
    %v2678 = vpack.c.b16 %v2566, %v2565
    %v2679 = vpack.c.b16 %v2568, %v2567
    %v2680 = vpack.c.b16 %v2570, %v2569
    %v2681 = vpack.c.b16 %v2572, %v2571
    %v2682 = vpack.c.b16 %v2574, %v2573
    %v2683 = vpack.c.b16 %v2576, %v2575
    %v2684 = vpack.c.b16 %v2578, %v2577
    %v2685 = vpack.c.b16 %v2580, %v2579
    %v2686 = vpack.c.b16 %v2582, %v2581
    %v2687 = vpack.c.b16 %v2584, %v2583
    %v2688 = vpack.c.b16 %v2586, %v2585
    %v2689 = vpack.c.b16 %v2588, %v2587
    %v2690 = vpack.c.b16 %v2590, %v2589
    %v2691 = vpack.c.b16 %v2592, %v2591
    %v2692 = vpack.c.b16 %v2594, %v2593
    %v2693 = vpack.c.b16 %v2596, %v2595
    %v2694 = vpack.c.b16 %v2598, %v2597
    %v2695 = vpack.c.b16 %v2600, %v2599
    %v2696 = vpack.c.b16 %v2602, %v2601
    %v2697 = vpack.c.b16 %v2604, %v2603
    %v2698 = vpack.c.b16 %v2606, %v2605
    %v2699 = vpack.c.b16 %v2608, %v2607
    %v2700 = vpack.c.b16 %v2610, %v2609
    %v2701 = vpack.c.b16 %v2612, %v2611
    %v2702 = vpack.c.b16 %v2614, %v2613
    %v2703 = vpack.c.b16 %v2616, %v2615
    %v2704 = vpack.c.b16 %v2618, %v2617
    %v2705 = vpack.c.b16 %v2620, %v2619
    %v2706 = vpack.c.b16 %v2622, %v2621
    %v2707 = vpack.c.b16 %v2624, %v2623
    %v2708 = vpack.c.b16 %v2626, %v2625
    %v2709 = vpack.c.b16 %v2628, %v2627
    %v2710 = vpack.c.b16 %v2630, %v2629
    %v2711 = vpack.c.b16 %v2632, %v2631
    %v2712 = vpack.c.b16 %v2634, %v2633
    %v2713 = vpack.c.b16 %v2636, %v2635
    %v2714 = vpack.c.b16 %v2638, %v2637
    %v2715 = vpack.c.b16 %v2640, %v2639
    %v2716 = vpack.c.b16 %v2642, %v2641
    %v2717 = vpack.c.b16 %v2644, %v2643
    %v2718 = vpack.c.b16 %v2646, %v2645
    %v2719 = vpack.c.b16 %v2648, %v2647
    %v2720 = vpack.c.b16 %v2650, %v2649
    %v2721 = vpack.c.b16 %v2652, %v2651
    %v2722 = vpack.c.b16 %v2654, %v2653
    %v2723 = vpack.c.b16 %v2656, %v2655
    %v2724 = vpack.c.b16 %v2658, %v2657
    %v2725 = vpack.c.b16 %v2660, %v2659
    %v2726 = vpack.c.b16 %v2662, %v2661
    %2791 = vmatpush.bf16.msra.mxu0 %v2670
    %2792 = vmatpush.bf16.msra.mxu0 %v2669
    %2793 = vmatpush.bf16.msra.mxu0 %v2668
    %2794 = vmatpush.bf16.msra.mxu0 %v2667
    %2795 = vmatpush.bf16.msra.mxu0 %v2666
    %2796 = vmatpush.bf16.msra.mxu0 %v2665
    %2797 = vmatpush.bf16.msra.mxu0 %v2664
    %2798 = vmatpush.bf16.msra.mxu0 %v2663
    %2799 = vmatmul.bf16.gmra.mxu0 %v2391
    %v2800 = vpop.f32.mrf.mxu0
    %v2801 = vadd.f32 %v2387, %v2800
    %v2802 = vpop.f32.mrf.mxu0
    %2803 = vdwg.mxu0
    %2804 = vmatpush.bf16.msra.mxu0 %v2678
    %2805 = vmatpush.bf16.msra.mxu0 %v2677
    %2806 = vmatpush.bf16.msra.mxu0 %v2676
    %2807 = vmatpush.bf16.msra.mxu0 %v2675
    %2808 = vmatpush.bf16.msra.mxu0 %v2674
    %2809 = vmatpush.bf16.msra.mxu0 %v2673
    %2810 = vmatpush.bf16.msra.mxu0 %v2672
    %2811 = vmatpush.bf16.msra.mxu0 %v2671
    %2812 = vmatmul.bf16.gmra.mxu0 %v2392
    %v2813 = vpop.f32.mrf.mxu0
    %v2814 = vadd.f32 %v2801, %v2813
    %v2815 = vpop.f32.mrf.mxu0
    %2816 = vdwg.mxu0
    %2817 = vmatpush.bf16.msra.mxu0 %v2686
    %2818 = vmatpush.bf16.msra.mxu0 %v2685
    %2819 = vmatpush.bf16.msra.mxu0 %v2684
    %2820 = vmatpush.bf16.msra.mxu0 %v2683
    %2821 = vmatpush.bf16.msra.mxu0 %v2682
    %2822 = vmatpush.bf16.msra.mxu0 %v2681
    %2823 = vmatpush.bf16.msra.mxu0 %v2680
    %2824 = vmatpush.bf16.msra.mxu0 %v2679
    %2825 = vmatmul.bf16.gmra.mxu0 %v2393
    %v2826 = vpop.f32.mrf.mxu0
    %v2827 = vadd.f32 %v2814, %v2826
    %v2828 = vpop.f32.mrf.mxu0
    %2829 = vdwg.mxu0
    %2830 = vmatpush.bf16.msra.mxu0 %v2694
    %2831 = vmatpush.bf16.msra.mxu0 %v2693
    %2832 = vmatpush.bf16.msra.mxu0 %v2692
    %2833 = vmatpush.bf16.msra.mxu0 %v2691
    %2834 = vmatpush.bf16.msra.mxu0 %v2690
    %2835 = vmatpush.bf16.msra.mxu0 %v2689
    %2836 = vmatpush.bf16.msra.mxu0 %v2688
    %2837 = vmatpush.bf16.msra.mxu0 %v2687
    %2838 = vmatmul.bf16.gmra.mxu0 %v2394
    %v2839 = vpop.f32.mrf.mxu0
    %v2840 = vadd.f32 %v2827, %v2839
    %v2841 = vpop.f32.mrf.mxu0
    %2842 = vdwg.mxu0
    %2843 = vmatpush.bf16.msra.mxu0 %v2702
    %2844 = vmatpush.bf16.msra.mxu0 %v2701
    %2845 = vmatpush.bf16.msra.mxu0 %v2700
    %2846 = vmatpush.bf16.msra.mxu0 %v2699
    %2847 = vmatpush.bf16.msra.mxu0 %v2698
    %2848 = vmatpush.bf16.msra.mxu0 %v2697
    %2849 = vmatpush.bf16.msra.mxu0 %v2696
    %2850 = vmatpush.bf16.msra.mxu0 %v2695
    %2851 = vmatmul.bf16.gmra.mxu0 %v2395
    %v2852 = vpop.f32.mrf.mxu0
    %v2853 = vadd.f32 %v2840, %v2852
    %v2854 = vpop.f32.mrf.mxu0
    %2855 = vdwg.mxu0
    %2856 = vmatpush.bf16.msra.mxu0 %v2710
    %2857 = vmatpush.bf16.msra.mxu0 %v2709
    %2858 = vmatpush.bf16.msra.mxu0 %v2708
    %2859 = vmatpush.bf16.msra.mxu0 %v2707
    %2860 = vmatpush.bf16.msra.mxu0 %v2706
    %2861 = vmatpush.bf16.msra.mxu0 %v2705
    %2862 = vmatpush.bf16.msra.mxu0 %v2704
    %2863 = vmatpush.bf16.msra.mxu0 %v2703
    %2864 = vmatmul.bf16.gmra.mxu0 %v2396
    %v2865 = vpop.f32.mrf.mxu0
    %v2866 = vadd.f32 %v2853, %v2865
    %v2867 = vpop.f32.mrf.mxu0
    %2868 = vdwg.mxu0
    %2869 = vmatpush.bf16.msra.mxu0 %v2718
    %2870 = vmatpush.bf16.msra.mxu0 %v2717
    %2871 = vmatpush.bf16.msra.mxu0 %v2716
    %2872 = vmatpush.bf16.msra.mxu0 %v2715
    %2873 = vmatpush.bf16.msra.mxu0 %v2714
    %2874 = vmatpush.bf16.msra.mxu0 %v2713
    %2875 = vmatpush.bf16.msra.mxu0 %v2712
    %2876 = vmatpush.bf16.msra.mxu0 %v2711
    %2877 = vmatmul.bf16.gmra.mxu0 %v2397
    %v2878 = vpop.f32.mrf.mxu0
    %v2879 = vadd.f32 %v2866, %v2878
    %v2880 = vpop.f32.mrf.mxu0
    %2881 = vdwg.mxu0
    %2882 = vmatpush.bf16.msra.mxu0 %v2726
    %2883 = vmatpush.bf16.msra.mxu0 %v2725
    %2884 = vmatpush.bf16.msra.mxu0 %v2724
    %2885 = vmatpush.bf16.msra.mxu0 %v2723
    %2886 = vmatpush.bf16.msra.mxu0 %v2722
    %2887 = vmatpush.bf16.msra.mxu0 %v2721
    %2888 = vmatpush.bf16.msra.mxu0 %v2720
    %2889 = vmatpush.bf16.msra.mxu0 %v2719
    %2890 = vmatmul.bf16.gmra.mxu0 %v2398
    %v2891 = vpop.f32.mrf.mxu0
    %v2892 = vadd.f32 %v2879, %v2891
    %v2893 = vpop.f32.mrf.mxu0
    %2894 = vdwg.mxu0
    %vm2895 = vcmp.gt.f32.partialorder %v2892, 0.0
    %v2896 = vmul.f32 %v2892, 0.01
    %v2897 = vsel %vm2895, %v2892, %v2896
    %v2898 = vpack.c.bf16 %v2897, %v2897
    %v2899 = vld [vmem:[#allocation11] sm:$0xf]
    %v2900 = vld [vmem:[#allocation11 + $0x4] sm:$0xf]
    %v2901 = vld [vmem:[#allocation11 + $0x8] sm:$0xf]
    %v2902 = vld [vmem:[#allocation11 + $0xc] sm:$0xf]
    %v2903 = vld [vmem:[#allocation11 + $0x10] sm:$0xf]
    %v2904 = vld [vmem:[#allocation11 + $0x14] sm:$0xf]
    %v2905 = vld [vmem:[#allocation11 + $0x18] sm:$0xf]
    %v2906 = vld [vmem:[#allocation11 + $0x1c] sm:$0xf]
    %v2907 = vld [vmem:[#allocation11 + $0x20] sm:$0xf]
    %v2908 = vld [vmem:[#allocation11 + $0x24] sm:$0xf]
    %v2909 = vld [vmem:[#allocation11 + $0x28] sm:$0xf]
    %v2910 = vld [vmem:[#allocation11 + $0x2c] sm:$0xf]
    %v2911 = vld [vmem:[#allocation11 + $0x30] sm:$0xf]
    %v2912 = vld [vmem:[#allocation11 + $0x34] sm:$0xf]
    %v2913 = vld [vmem:[#allocation11 + $0x38] sm:$0xf]
    %v2914 = vld [vmem:[#allocation11 + $0x3c] sm:$0xf]
    %v2915 = vld [vmem:[%s12] sm:$0x1]
    %v2917 = vperm.slane %v2915, 0
    %v2935 = vunpack.c.l.b16 %v2899
    %v2936 = vunpack.c.l.b16 %v2900
    %v2937 = vunpack.c.l.b16 %v2901
    %v2938 = vunpack.c.l.b16 %v2902
    %v2939 = vunpack.c.l.b16 %v2903
    %v2940 = vunpack.c.l.b16 %v2904
    %v2941 = vunpack.c.l.b16 %v2905
    %v2942 = vunpack.c.l.b16 %v2906
    %v2943 = vunpack.c.l.b16 %v2907
    %v2944 = vunpack.c.l.b16 %v2908
    %v2945 = vunpack.c.l.b16 %v2909
    %v2946 = vunpack.c.l.b16 %v2910
    %v2947 = vunpack.c.l.b16 %v2911
    %v2948 = vunpack.c.l.b16 %v2912
    %v2949 = vunpack.c.l.b16 %v2913
    %v2950 = vunpack.c.l.b16 %v2914
    %v2951 = vpack.c.b16 %v2936, %v2935
    %v2952 = vpack.c.b16 %v2938, %v2937
    %v2953 = vpack.c.b16 %v2940, %v2939
    %v2954 = vpack.c.b16 %v2942, %v2941
    %v2955 = vpack.c.b16 %v2944, %v2943
    %v2956 = vpack.c.b16 %v2946, %v2945
    %v2957 = vpack.c.b16 %v2948, %v2947
    %v2958 = vpack.c.b16 %v2950, %v2949
    %2967 = vmatpush.bf16.msra.mxu0 %v2958
    %2968 = vmatpush.bf16.msra.mxu0 %v2957
    %2969 = vmatpush.bf16.msra.mxu0 %v2956
    %2970 = vmatpush.bf16.msra.mxu0 %v2955
    %2971 = vmatpush.bf16.msra.mxu0 %v2954
    %2972 = vmatpush.bf16.msra.mxu0 %v2953
    %2973 = vmatpush.bf16.msra.mxu0 %v2952
    %2974 = vmatpush.bf16.msra.mxu0 %v2951
    %2975 = vmatmul.bf16.gmra.mxu0 %v2898
    %v2976 = vpop.f32.mrf.mxu0
    %v2977 = vadd.f32 %v2917, %v2976
    %v2978 = vpop.f32.mrf.mxu0
    %2979 = vdwg.mxu0
    %vm2980 = vcmp.gt.f32.partialorder %v2977, 0.0
    %v2981 = vmul.f32 %v2977, 0.01
    %v2982 = vsel %vm2980, %v2977, %v2981
    %v2983 = vpack.c.bf16 %v2982, %v2982
    %v2984 = vld [vmem:[#allocation12] sm:$0xf]
    %v2985 = vld [vmem:[#allocation12 + $0x4] sm:$0xf]
    %v2986 = vld [vmem:[#allocation12 + $0x8] sm:$0xf]
    %v2987 = vld [vmem:[#allocation12 + $0xc] sm:$0xf]
    %v2988 = vld [vmem:[#allocation12 + $0x10] sm:$0xf]
    %v2989 = vld [vmem:[#allocation12 + $0x14] sm:$0xf]
    %v2990 = vld [vmem:[#allocation12 + $0x18] sm:$0xf]
    %v2991 = vld [vmem:[#allocation12 + $0x1c] sm:$0xf]
    %v2992 = vld [vmem:[#allocation12 + $0x20] sm:$0xf]
    %v2993 = vld [vmem:[#allocation12 + $0x24] sm:$0xf]
    %v2994 = vld [vmem:[#allocation12 + $0x28] sm:$0xf]
    %v2995 = vld [vmem:[#allocation12 + $0x2c] sm:$0xf]
    %v2996 = vld [vmem:[#allocation12 + $0x30] sm:$0xf]
    %v2997 = vld [vmem:[#allocation12 + $0x34] sm:$0xf]
    %v2998 = vld [vmem:[#allocation12 + $0x38] sm:$0xf]
    %v2999 = vld [vmem:[#allocation12 + $0x3c] sm:$0xf]
    %v3000 = vld [vmem:[%s14] sm:$0x1]
    %v3002 = vperm.slane %v3000, 0
    %v3020 = vunpack.c.l.b16 %v2984
    %v3021 = vunpack.c.l.b16 %v2985
    %v3022 = vunpack.c.l.b16 %v2986
    %v3023 = vunpack.c.l.b16 %v2987
    %v3024 = vunpack.c.l.b16 %v2988
    %v3025 = vunpack.c.l.b16 %v2989
    %v3026 = vunpack.c.l.b16 %v2990
    %v3027 = vunpack.c.l.b16 %v2991
    %v3028 = vunpack.c.l.b16 %v2992
    %v3029 = vunpack.c.l.b16 %v2993
    %v3030 = vunpack.c.l.b16 %v2994
    %v3031 = vunpack.c.l.b16 %v2995
    %v3032 = vunpack.c.l.b16 %v2996
    %v3033 = vunpack.c.l.b16 %v2997
    %v3034 = vunpack.c.l.b16 %v2998
    %v3035 = vunpack.c.l.b16 %v2999
    %v3036 = vpack.c.b16 %v3021, %v3020
    %v3037 = vpack.c.b16 %v3023, %v3022
    %v3038 = vpack.c.b16 %v3025, %v3024
    %v3039 = vpack.c.b16 %v3027, %v3026
    %v3040 = vpack.c.b16 %v3029, %v3028
    %v3041 = vpack.c.b16 %v3031, %v3030
    %v3042 = vpack.c.b16 %v3033, %v3032
    %v3043 = vpack.c.b16 %v3035, %v3034
    %3052 = vmatpush.bf16.msra.mxu0 %v3043
    %3053 = vmatpush.bf16.msra.mxu0 %v3042
    %3054 = vmatpush.bf16.msra.mxu0 %v3041
    %3055 = vmatpush.bf16.msra.mxu0 %v3040
    %3056 = vmatpush.bf16.msra.mxu0 %v3039
    %3057 = vmatpush.bf16.msra.mxu0 %v3038
    %3058 = vmatpush.bf16.msra.mxu0 %v3037
    %3059 = vmatpush.bf16.msra.mxu0 %v3036
    %3060 = vmatmul.bf16.gmra.mxu0 %v2983
    %v3061 = vpop.f32.mrf.mxu0
    %v3062 = vadd.f32 %v3002, %v3061
    %v3063 = vpop.f32.mrf.mxu0
    %3064 = vdwg.mxu0
    %v3065 = vlaneseq
    %v3066 = vand.u32 %v3065, 127
    %vm3067 = vcmp.lt.s32.totalorder %v3066, 5
    %v3068 = vsel %vm3067, %v3062, -1e+30
    %vm3069 = vcmask 1041408
    %v3070 = vsel %vm3069, %v3068, -inf
    %3071 = vmax.xlane.f32.xlu0 %v3070
    %v3072 = vpop.xlane.xlu0 %3071
    %v3073 = vsub.f32 %v3068, %v3072
    %v3074 = vmul.f32 %v3073, 1.442695
    %v3075 = vpow.pop %v3074
    %v3076 = vsel %vm3069, %v3075, 0.0
    %3077 = vadd.xlane.f32.xlu0 %v3076
    %v3078 = vpop.xlane.xlu0 %3077
    %v3079 = vrcp.pop %v3078
    %v3080 = vmul.f32 %v3078, %v3079
    %v3081 = vsub.f32 2.0, %v3080
    %v3082 = vmul.f32 %v3079, %v3081
    %v3083 = vmul.f32 %v3075, %v3082
    %3084 = vst [vmem:[#allocation14] sm:$0x3] %v3083
    // Predicated region
    $region78: #{forward.1} parent=1 // pred_check
      _
    $region79: #{forward.1} parent=1 // pred_check_branch
      %3086 = sbr.rel (0) target = $region81
    $region80: #{forward.1} parent=1 // pred_region
      %3088 = vsyncadd [#allocation8], 0
      %s3090 = sshll.u32 [#allocation14], 4
      %s3091 = int_to_ptr.vmem [resolvable:$true] %s3090
      %s3092 = sshll.u32 %s15, 4
      %s3093 = int_to_ptr.hbm [resolvable:$true] %s3092
      %3095 = dma.vmem_to_hbm [thread:$0]  %s3091, 32, %s3093, [#allocation8]
    $region81: #{forward.1} parent=1 // pred_fallthru
      _
    // Predicated region
    $region82: #{forward.1} parent=1 // pred_check
      _
    $region83: #{forward.1} parent=1 // pred_check_branch
      %3097 = sbr.rel (0) target = $region85
    $region84: #{forward.1} parent=1 // pred_region
      %3099 = dma.done [#allocation8], 32
    $region85: #{forward.1} parent=1 // pred_fallthru
      _
    %3100 = vsyncpa [#allocation7], 1
    %3101 = vsyncpa [#allocation10], 1
    %3102 = vsyncpa [#allocation13], 1
    %3103 = vsyncpa [#allocation8], 1

</llo_original>
